<compile_context>
chip_gen: v6e
topology: v6e:2x2x1
jax: 0.10.0
libtpu: 0.0.40
codegen_flags: <defaults>
</compile_context>

<pallas_src>
import numpy as np
import jax
import jax.numpy as jnp
from jax.experimental import pallas as pl
from jax.experimental.pallas import tpu as pltpu

# ------------------------------------------------------------------ geometry
KSZ = 5                                  # conv kernel size
H_IN, W_IN, W_PAD = 28, 28, 32           # input spatial dims; width lane-padded to 32
C1, C1P = 10, 16                         # conv1 channels: real / padded
C2, C2P = 20, 32                         # conv2 channels: real / padded
O1, O2 = 24, 8                           # conv1 / conv2 output height == width (VALID)
PW2 = 4                                  # pooled spatial size after stage 2
F1, FP = 50, 128                         # fc1 width: real / lane-padded
NCLS = 10                                # logits (padded to FP inside the kernel)

K1 = KSZ * W_PAD                         # 160: conv1 fused-tap contraction depth
L1 = O1 * C1P                            # 384: conv1 matmul output lanes (ow-major, ch-minor)
L1S = L1 - C1P                           # 368: lanes after shifted-slice column pool #1
L2 = O2 * C2P                            # 256: conv2 matmul output lanes
L2S = L2 - C2P                           # 224: lanes after shifted-slice column pool #2


# ------------------------------------------------------------------ the fused kernel
def _mnist_kernel(x_ref, w1_ref, b1_ref, w2_ref, b2_ref, w3_ref, b3_ref,
                  w4_ref, b4_ref, o_ref):
    f32, bf16 = jnp.float32, jnp.bfloat16
    B = o_ref.shape[0]                               # images per grid step

    # -------- conv1 + bias + ReLU: ONE fused matmul for all 24 output rows x B images.
    # LHS rows are ordered (g = oh%4, t = oh//4, b); lanes hold the 5 shifted input
    # rows (kh taps) concatenated, so the taps accumulate inside the MXU.
    h1 = jnp.dot(x_ref[...], w1_ref[...], preferred_element_type=f32)   # (24B, 384)
    h1 = jnp.maximum(h1 + b1_ref[...], 0.0)

    # -------- 2x2 max pool #1: rows via group-vs-group max, cols via shifted-slice
    # max whose sparse lane layout is absorbed by zero rows of w2.
    g0, g1 = h1[0 * 6 * B:1 * 6 * B, :], h1[1 * 6 * B:2 * 6 * B, :]
    g2, g3 = h1[2 * 6 * B:3 * 6 * B, :], h1[3 * 6 * B:4 * 6 * B, :]
    p1e = jnp.maximum(g0, g1)                         # pooled rows ih = 0,2,...,10
    p1o = jnp.maximum(g2, g3)                         # pooled rows ih = 1,3,...,11
    p1e = jnp.maximum(p1e[:, :L1S], p1e[:, C1P:]).astype(bf16)   # (6B, 368)
    p1o = jnp.maximum(p1o[:, :L1S], p1o[:, C1P:]).astype(bf16)

    # -------- conv2 + bias + ReLU (Dropout2d is identity in eval mode); M = 4B per tap.
    def conv2(sel):
        acc = None
        for kh in range(KSZ):
            part = jnp.dot(sel(kh), w2_ref[kh], preferred_element_type=f32)
            acc = part if acc is None else acc + part
        return jnp.maximum(acc + b2_ref[...], 0.0)    # (4B, 256)

    def even_sel(kh):                                  # conv2 output rows 0,2,4,6
        if kh % 2 == 0:
            s = kh // 2
            return p1e[s * B:(s + 4) * B, :]
        s = (kh - 1) // 2
        return p1o[s * B:(s + 4) * B, :]

    def odd_sel(kh):                                   # conv2 output rows 1,3,5,7
        if kh % 2 == 0:
            s = kh // 2
            return p1o[s * B:(s + 4) * B, :]
        s = (kh + 1) // 2
        return p1e[s * B:(s + 4) * B, :]

    h2e = conv2(even_sel)
    h2o = conv2(odd_sel)

    # -------- 2x2 max pool #2 --------------------------------------------------------
    p2 = jnp.maximum(h2e, h2o)                                   # (4B, 256), rows (ph, b)
    p2 = jnp.maximum(p2[:, :L2S], p2[:, C2P:]).astype(bf16)      # (4B, 224) sparse lanes

    # -------- fc1 + ReLU (NCHW flatten folded into w3's layout); M = B per dot -------
    acc = None
    for ph in range(PW2):
        part = jnp.dot(p2[ph * B:(ph + 1) * B, :], w3_ref[ph],
                       preferred_element_type=f32)
        acc = part if acc is None else acc + part
    h3 = jnp.maximum(acc + b3_ref[...], 0.0)                     # (B, 128)

    # -------- fc2 (F.dropout is identity in eval mode); lane-dense (B,128) store -----
    o_ref[...] = jnp.dot(h3.astype(bf16), w4_ref[...],
                         preferred_element_type=f32) + b4_ref[...]


# ------------------------------------------------------------------ weight preparation
def prepare_params(params):
    """One-time conversion of PyTorch-layout params into padded banded bf16 matrices."""
    w1 = np.asarray(params["conv1_w"], np.float32)                # (10, 1, 5, 5)
    b1 = np.asarray(params["conv1_b"], np.float32)
    w2 = np.asarray(params["conv2_w"], np.float32)                # (20, 10, 5, 5)
    b2 = np.asarray(params["conv2_b"], np.float32)
    fw1 = np.asarray(params["fc1_w"], np.float32)                 # (50, 320)
    fb1 = np.asarray(params["fc1_b"], np.float32)
    fw2 = np.asarray(params["fc2_w"], np.float32)                 # (10, 50)
    fb2 = np.asarray(params["fc2_b"], np.float32)

    # conv1 fused band: band1[kh*32 + j, ow*C1P + co] = w1[co, 0, kh, j - ow]
    band1 = np.zeros((K1, L1), np.float32)
    for kh in range(KSZ):
        for kw in range(KSZ):
            for ow in range(O1):
                band1[kh * W_PAD + ow + kw, ow * C1P:ow * C1P + C1] = w1[:, 0, kh, kw]
    b1t = np.zeros((1, L1), np.float32)
    for ow in range(O1):
        b1t[0, ow * C1P:ow * C1P + C1] = b1

    # conv2 band over the pooled sparse lane layout (stride 2*C1P = 32):
    # band2[kh, 32*jw + ci, ow*C2P + co] = w2[co, ci, kh, jw - ow]
    band2 = np.zeros((KSZ, L1S, L2), np.float32)
    for kh in range(KSZ):
        for kw in range(KSZ):
            for ow in range(O2):
                jw = ow + kw
                band2[kh, 2 * C1P * jw:2 * C1P * jw + C1,
                      ow * C2P:ow * C2P + C2] = w2[:, :, kh, kw].T
    b2t = np.zeros((1, L2), np.float32)
    for ow in range(O2):
        b2t[0, ow * C2P:ow * C2P + C2] = b2

    # fc1: rows follow the kernel's (ph, sparse lane = 2*C2P*pw + co) layout, i.e.
    # PyTorch's NCHW flatten index (co*16 + ph*4 + pw) is folded in here.
    w3 = np.zeros((PW2, L2S, FP), np.float32)
    for ph in range(PW2):
        for pw in range(PW2):
            for co in range(C2):
                w3[ph, 2 * C2P * pw + co, :F1] = fw1[:, co * 16 + ph * 4 + pw]
    b3t = np.zeros((1, FP), np.float32)
    b3t[0, :F1] = fb1

    w4 = np.zeros((FP, FP), np.float32)
    w4[:F1, :NCLS] = fw2.T
    b4t = np.zeros((1, FP), np.float32)
    b4t[0, :NCLS] = fb2

    bf = jnp.bfloat16
    return {
        "w1": jnp.asarray(band1, bf), "b1": jnp.asarray(b1t),
        "w2": jnp.asarray(band2, bf), "b2": jnp.asarray(b2t),
        "w3": jnp.asarray(w3, bf),    "b3": jnp.asarray(b3t),
        "w4": jnp.asarray(w4, bf),    "b4": jnp.asarray(b4t),
    }


# ------------------------------------------------------------------ host-side layout prep
def _prep_conv1_lhs(x_nchw, block_b):
    """Conv1 LHS: per output row oh, the 5 shifted input rows concatenated along lanes
    (K = 160, bf16), rows ordered (block, oh%4, oh//4, image).  Cheap: O(5 x input)."""
    n = x_nchw.shape[0]
    steps = -(-n // block_b)                         # cdiv
    n_pad = steps * block_b
    x = x_nchw.astype(jnp.float32).reshape(n, H_IN, W_IN)
    x = jnp.pad(x, ((0, n_pad - n), (0, 0), (0, W_PAD - W_IN))).astype(jnp.bfloat16)
    wins = jnp.stack([x[:, oh:oh + KSZ, :].reshape(n_pad, K1) for oh in range(O1)],
                     axis=0)                          # (24, n_pad, 160); oh = 4*t + g
    wins = wins.reshape(O1 // 4, 4, steps, block_b, K1)   # (t, g, step, b, lanes)
    wins = wins.transpose(2, 1, 0, 3, 4)                  # (step, g, t, b, lanes)
    return wins.reshape(steps * 4 * (O1 // 4) * block_b, K1), steps, n_pad


# ------------------------------------------------------------------ forward wrapper
def mnist_cnn_forward(prepped, x_nchw, block_b=32):
    """Eval-mode forward (Dropout2d / F.dropout are identities when not training)."""
    # TODO(synk): training-mode dropout (Dropout2d, F.dropout p=0.5) not implemented.
    if block_b % 16 != 0:      # keep bf16 sublane tiles aligned for in-kernel row slices
        raise ValueError("block_b must be a multiple of 16")
    n = x_nchw.shape[0]
    x_lhs, steps, n_pad = _prep_conv1_lhs(x_nchw, block_b)

    p = prepped
    weights = (p["w1"], p["b1"], p["w2"], p["b2"], p["w3"], p["b3"], p["w4"], p["b4"])

    def whole(a):  # whole-array block, constant index map (fetched once, stays in VMEM)
        return pl.BlockSpec(a.shape, lambda i: (0,) * a.ndim)

    rows_per_step = 4 * (O1 // 4) * block_b           # 24 * block_b conv1 LHS rows / step

    macs_per_img = (O1 * K1 * L1 + 2 * KSZ * 4 * L1S * L2 + PW2 * L2S * FP + FP * FP)
    weight_bytes = sum(int(a.size) * a.dtype.itemsize for a in weights)
    cost = pl.CostEstimate(
        flops=2 * n_pad * macs_per_img, transcendentals=0,
        bytes_accessed=weight_bytes + int(x_lhs.size) * 2 + n_pad * FP * 4)

    out = pl.pallas_call(
        _mnist_kernel,
        out_shape=jax.ShapeDtypeStruct((n_pad, FP), jnp.float32),
        grid=(steps,),
        in_specs=[pl.BlockSpec((rows_per_step, K1), lambda i: (i, 0))]
                 + [whole(a) for a in weights],
        out_specs=pl.BlockSpec((block_b, FP), lambda i: (i, 0)),
        compiler_params=pltpu.CompilerParams(
            dimension_semantics=("parallel",),        # megacore-shard batched grid (v7x)
            vmem_limit_bytes=32 * 1024 * 1024),       # v5e default scoped VMEM is 16 MiB
        cost_estimate=cost,
    )(x_lhs, *weights)
    return out[:n, :NCLS]                             # (n, 10) logits


# ------------------------------------------------------------------ reference & init
def reference_forward(params, x_nchw):
    """Pure-JAX/XLA reference with matching bf16-operand / f32-accumulate precision."""
    bf, f32 = jnp.bfloat16, jnp.float32

    def conv(x, w, b):
        y = jax.lax.conv_general_dilated(
            x.astype(bf), w.astype(bf), window_strides=(1, 1), padding="VALID",
            dimension_numbers=("NCHW", "OIHW", "NCHW"), preferred_element_type=f32)
        return y + b.reshape(1, -1, 1, 1)

    def pool(x):
        return jax.lax.reduce_window(x, -jnp.inf, jax.lax.max,
                                     (1, 1, 2, 2), (1, 1, 2, 2), "VALID")

    h = pool(jax.nn.relu(conv(x_nchw.astype(f32), params["conv1_w"], params["conv1_b"])))
    h = pool(jax.nn.relu(conv(h, params["conv2_w"], params["conv2_b"])))  # Dropout2d = id (eval)
    h = h.reshape(h.shape[0], C2 * PW2 * PW2)                             # NCHW flatten -> (n, 320)
    h = jax.nn.relu(jnp.dot(h.astype(bf), params["fc1_w"].T.astype(bf),
                            preferred_element_type=f32) + params["fc1_b"])
    return jnp.dot(h.astype(bf), params["fc2_w"].T.astype(bf),            # F.dropout = id (eval)
                   preferred_element_type=f32) + params["fc2_b"]


def init_params(key):
    ks = jax.random.split(key, 8)
    s = 0.1
    return {
        "conv1_w": jax.random.normal(ks[0], (10, 1, 5, 5), jnp.float32) * s,
        "conv1_b": jax.random.normal(ks[1], (10,), jnp.float32) * s,
        "conv2_w": jax.random.normal(ks[2], (20, 10, 5, 5), jnp.float32) * s,
        "conv2_b": jax.random.normal(ks[3], (20,), jnp.float32) * s,
        "fc1_w": jax.random.normal(ks[4], (50, 320), jnp.float32) * s,
        "fc1_b": jax.random.normal(ks[5], (50,), jnp.float32) * s,
        "fc2_w": jax.random.normal(ks[6], (10, 50), jnp.float32) * s,
        "fc2_b": jax.random.normal(ks[7], (10,), jnp.float32) * s,
    }


if __name__ == "__main__":
    key = jax.random.PRNGKey(0)
    pkey, xkey = jax.random.split(key)
    params = init_params(pkey)
    prepped = prepare_params(params)

    # MNIST-sized input is required so the flatten dim is exactly 320 (= 20*4*4).
    # 20 images with block_b=16 -> 2 grid steps (exercises multi-step grid + batch padding).
    x = jax.random.normal(xkey, (20, 1, 28, 28), jnp.float32)

    fwd = jax.jit(mnist_cnn_forward, static_argnames=("block_b",))
    out = fwd(prepped, x, block_b=16)
    jax.block_until_ready(out)
    assert out.shape == (20, NCLS) and out.dtype == jnp.float32

    ref = reference_forward(params, x)
    assert bool(jnp.allclose(out, ref, atol=2e-2, rtol=2e-2)), "mismatch vs XLA reference"
    print("KERNEL_OK")
</pallas_src>

<mosaic_0001>
module attributes {stable_mosaic.version = 11 : i64} {
  func.func @_mnist_kernel(%arg0: i32, %arg1: memref<384x160xbf16, #tpu.memory_space<vmem>>, %arg2: memref<160x384xbf16, #tpu.memory_space<vmem>>, %arg3: memref<1x384xf32, #tpu.memory_space<vmem>>, %arg4: memref<5x368x256xbf16, #tpu.memory_space<vmem>>, %arg5: memref<1x256xf32, #tpu.memory_space<vmem>>, %arg6: memref<4x224x128xbf16, #tpu.memory_space<vmem>>, %arg7: memref<1x128xf32, #tpu.memory_space<vmem>>, %arg8: memref<128x128xbf16, #tpu.memory_space<vmem>>, %arg9: memref<1x128xf32, #tpu.memory_space<vmem>>, %arg10: memref<16x128xf32, #tpu.memory_space<vmem>>) attributes {dimension_semantics = [#tpu.dimension_semantics<parallel>], iteration_bounds = array<i64: 2>, scalar_prefetch = 0 : i64, scratch_operands = 0 : i64, tpu.core_type = #tpu.core_type<tc>, window_params = [{transform_indices = @transform_0, window_bounds = array<i64: 384, 160>}, {pipeline_mode = #tpu.pipeline_mode<synchronous>, transform_indices = @transform_1, window_bounds = array<i64: 160, 384>}, {pipeline_mode = #tpu.pipeline_mode<synchronous>, transform_indices = @transform_2, window_bounds = array<i64: 1, 384>}, {pipeline_mode = #tpu.pipeline_mode<synchronous>, transform_indices = @transform_3, window_bounds = array<i64: 5, 368, 256>}, {pipeline_mode = #tpu.pipeline_mode<synchronous>, transform_indices = @transform_4, window_bounds = array<i64: 1, 256>}, {pipeline_mode = #tpu.pipeline_mode<synchronous>, transform_indices = @transform_5, window_bounds = array<i64: 4, 224, 128>}, {pipeline_mode = #tpu.pipeline_mode<synchronous>, transform_indices = @transform_6, window_bounds = array<i64: 1, 128>}, {pipeline_mode = #tpu.pipeline_mode<synchronous>, transform_indices = @transform_7, window_bounds = array<i64: 128, 128>}, {pipeline_mode = #tpu.pipeline_mode<synchronous>, transform_indices = @transform_8, window_bounds = array<i64: 1, 128>}, {transform_indices = @transform_9, window_bounds = array<i64: 16, 128>}]} {
    %c0 = arith.constant 0 : index
    %c0_0 = arith.constant 0 : index
    %0 = vector.load %arg1[%c0, %c0_0] : memref<384x160xbf16, #tpu.memory_space<vmem>>, vector<384x160xbf16>
    %c0_1 = arith.constant 0 : index
    %c0_2 = arith.constant 0 : index
    %1 = vector.load %arg2[%c0_1, %c0_2] : memref<160x384xbf16, #tpu.memory_space<vmem>>, vector<160x384xbf16>
    %cst = arith.constant dense<0.000000e+00> : vector<384x384xf32>
    %2 = tpu.matmul %0, %1, %cst {dimension_numbers = #tpu.dot_dimension_numbers<[1], [0], [0], [1], [0, 0, 1, 1], [], []>} : vector<384x160xbf16>, vector<160x384xbf16>, vector<384x384xf32> -> vector<384x384xf32>
    %c0_3 = arith.constant 0 : index
    %c0_4 = arith.constant 0 : index
    %3 = vector.load %arg3[%c0_3, %c0_4] : memref<1x384xf32, #tpu.memory_space<vmem>>, vector<1x384xf32>
    %4 = vector.broadcast %3 : vector<1x384xf32> to vector<384x384xf32>
    %5 = arith.addf %2, %4 : vector<384x384xf32>
    %cst_5 = arith.constant 0.000000e+00 : f32
    %6 = vector.broadcast %cst_5 : f32 to vector<384x384xf32>
    %7 = arith.maximumf %5, %6 : vector<384x384xf32>
    %8 = vector.extract_strided_slice %7 {offsets = [0, 0], sizes = [96, 384], strides = [1, 1]} : vector<384x384xf32> to vector<96x384xf32>
    %9 = vector.extract_strided_slice %7 {offsets = [96, 0], sizes = [96, 384], strides = [1, 1]} : vector<384x384xf32> to vector<96x384xf32>
    %10 = vector.extract_strided_slice %7 {offsets = [192, 0], sizes = [96, 384], strides = [1, 1]} : vector<384x384xf32> to vector<96x384xf32>
    %11 = vector.extract_strided_slice %7 {offsets = [288, 0], sizes = [96, 384], strides = [1, 1]} : vector<384x384xf32> to vector<96x384xf32>
    %12 = arith.maximumf %8, %9 : vector<96x384xf32>
    %13 = arith.maximumf %10, %11 : vector<96x384xf32>
    %14 = vector.extract_strided_slice %12 {offsets = [0, 0], sizes = [96, 368], strides = [1, 1]} : vector<96x384xf32> to vector<96x368xf32>
    %15 = vector.extract_strided_slice %12 {offsets = [0, 16], sizes = [96, 368], strides = [1, 1]} : vector<96x384xf32> to vector<96x368xf32>
    %16 = arith.maximumf %14, %15 : vector<96x368xf32>
    %17 = arith.truncf %16 : vector<96x368xf32> to vector<96x368xbf16>
    %18 = vector.extract_strided_slice %13 {offsets = [0, 0], sizes = [96, 368], strides = [1, 1]} : vector<96x384xf32> to vector<96x368xf32>
    %19 = vector.extract_strided_slice %13 {offsets = [0, 16], sizes = [96, 368], strides = [1, 1]} : vector<96x384xf32> to vector<96x368xf32>
    %20 = arith.maximumf %18, %19 : vector<96x368xf32>
    %21 = arith.truncf %20 : vector<96x368xf32> to vector<96x368xbf16>
    %22 = vector.extract_strided_slice %17 {offsets = [0, 0], sizes = [64, 368], strides = [1, 1]} : vector<96x368xbf16> to vector<64x368xbf16>
    %c0_6 = arith.constant 0 : index
    %c0_7 = arith.constant 0 : index
    %c0_8 = arith.constant 0 : index
    %23 = vector.load %arg4[%c0_6, %c0_7, %c0_8] : memref<5x368x256xbf16, #tpu.memory_space<vmem>>, vector<1x368x256xbf16>
    %24 = vector.shape_cast %23 : vector<1x368x256xbf16> to vector<368x256xbf16>
    %cst_9 = arith.constant dense<0.000000e+00> : vector<64x256xf32>
    %25 = tpu.matmul %22, %24, %cst_9 {dimension_numbers = #tpu.dot_dimension_numbers<[1], [0], [0], [1], [0, 0, 1, 1], [], []>} : vector<64x368xbf16>, vector<368x256xbf16>, vector<64x256xf32> -> vector<64x256xf32>
    %26 = vector.extract_strided_slice %21 {offsets = [0, 0], sizes = [64, 368], strides = [1, 1]} : vector<96x368xbf16> to vector<64x368xbf16>
    %c1 = arith.constant 1 : index
    %c0_10 = arith.constant 0 : index
    %c0_11 = arith.constant 0 : index
    %27 = vector.load %arg4[%c1, %c0_10, %c0_11] : memref<5x368x256xbf16, #tpu.memory_space<vmem>>, vector<1x368x256xbf16>
    %28 = vector.shape_cast %27 : vector<1x368x256xbf16> to vector<368x256xbf16>
    %cst_12 = arith.constant dense<0.000000e+00> : vector<64x256xf32>
    %29 = tpu.matmul %26, %28, %cst_12 {dimension_numbers = #tpu.dot_dimension_numbers<[1], [0], [0], [1], [0, 0, 1, 1], [], []>} : vector<64x368xbf16>, vector<368x256xbf16>, vector<64x256xf32> -> vector<64x256xf32>
    %30 = arith.addf %25, %29 : vector<64x256xf32>
    %31 = vector.extract_strided_slice %17 {offsets = [16, 0], sizes = [64, 368], strides = [1, 1]} : vector<96x368xbf16> to vector<64x368xbf16>
    %c2 = arith.constant 2 : index
    %c0_13 = arith.constant 0 : index
    %c0_14 = arith.constant 0 : index
    %32 = vector.load %arg4[%c2, %c0_13, %c0_14] : memref<5x368x256xbf16, #tpu.memory_space<vmem>>, vector<1x368x256xbf16>
    %33 = vector.shape_cast %32 : vector<1x368x256xbf16> to vector<368x256xbf16>
    %cst_15 = arith.constant dense<0.000000e+00> : vector<64x256xf32>
    %34 = tpu.matmul %31, %33, %cst_15 {dimension_numbers = #tpu.dot_dimension_numbers<[1], [0], [0], [1], [0, 0, 1, 1], [], []>} : vector<64x368xbf16>, vector<368x256xbf16>, vector<64x256xf32> -> vector<64x256xf32>
    %35 = arith.addf %30, %34 : vector<64x256xf32>
    %36 = vector.extract_strided_slice %21 {offsets = [16, 0], sizes = [64, 368], strides = [1, 1]} : vector<96x368xbf16> to vector<64x368xbf16>
    %c3 = arith.constant 3 : index
    %c0_16 = arith.constant 0 : index
    %c0_17 = arith.constant 0 : index
    %37 = vector.load %arg4[%c3, %c0_16, %c0_17] : memref<5x368x256xbf16, #tpu.memory_space<vmem>>, vector<1x368x256xbf16>
    %38 = vector.shape_cast %37 : vector<1x368x256xbf16> to vector<368x256xbf16>
    %cst_18 = arith.constant dense<0.000000e+00> : vector<64x256xf32>
    %39 = tpu.matmul %36, %38, %cst_18 {dimension_numbers = #tpu.dot_dimension_numbers<[1], [0], [0], [1], [0, 0, 1, 1], [], []>} : vector<64x368xbf16>, vector<368x256xbf16>, vector<64x256xf32> -> vector<64x256xf32>
    %40 = arith.addf %35, %39 : vector<64x256xf32>
    %41 = vector.extract_strided_slice %17 {offsets = [32, 0], sizes = [64, 368], strides = [1, 1]} : vector<96x368xbf16> to vector<64x368xbf16>
    %c4 = arith.constant 4 : index
    %c0_19 = arith.constant 0 : index
    %c0_20 = arith.constant 0 : index
    %42 = vector.load %arg4[%c4, %c0_19, %c0_20] : memref<5x368x256xbf16, #tpu.memory_space<vmem>>, vector<1x368x256xbf16>
    %43 = vector.shape_cast %42 : vector<1x368x256xbf16> to vector<368x256xbf16>
    %cst_21 = arith.constant dense<0.000000e+00> : vector<64x256xf32>
    %44 = tpu.matmul %41, %43, %cst_21 {dimension_numbers = #tpu.dot_dimension_numbers<[1], [0], [0], [1], [0, 0, 1, 1], [], []>} : vector<64x368xbf16>, vector<368x256xbf16>, vector<64x256xf32> -> vector<64x256xf32>
    %45 = arith.addf %40, %44 : vector<64x256xf32>
    %c0_22 = arith.constant 0 : index
    %c0_23 = arith.constant 0 : index
    %46 = vector.load %arg5[%c0_22, %c0_23] : memref<1x256xf32, #tpu.memory_space<vmem>>, vector<1x256xf32>
    %47 = vector.broadcast %46 : vector<1x256xf32> to vector<64x256xf32>
    %48 = arith.addf %45, %47 : vector<64x256xf32>
    %cst_24 = arith.constant 0.000000e+00 : f32
    %49 = vector.broadcast %cst_24 : f32 to vector<64x256xf32>
    %50 = arith.maximumf %48, %49 : vector<64x256xf32>
    %51 = vector.extract_strided_slice %21 {offsets = [0, 0], sizes = [64, 368], strides = [1, 1]} : vector<96x368xbf16> to vector<64x368xbf16>
    %c0_25 = arith.constant 0 : index
    %c0_26 = arith.constant 0 : index
    %c0_27 = arith.constant 0 : index
    %52 = vector.load %arg4[%c0_25, %c0_26, %c0_27] : memref<5x368x256xbf16, #tpu.memory_space<vmem>>, vector<1x368x256xbf16>
    %53 = vector.shape_cast %52 : vector<1x368x256xbf16> to vector<368x256xbf16>
    %cst_28 = arith.constant dense<0.000000e+00> : vector<64x256xf32>
    %54 = tpu.matmul %51, %53, %cst_28 {dimension_numbers = #tpu.dot_dimension_numbers<[1], [0], [0], [1], [0, 0, 1, 1], [], []>} : vector<64x368xbf16>, vector<368x256xbf16>, vector<64x256xf32> -> vector<64x256xf32>
    %55 = vector.extract_strided_slice %17 {offsets = [16, 0], sizes = [64, 368], strides = [1, 1]} : vector<96x368xbf16> to vector<64x368xbf16>
    %c1_29 = arith.constant 1 : index
    %c0_30 = arith.constant 0 : index
    %c0_31 = arith.constant 0 : index
    %56 = vector.load %arg4[%c1_29, %c0_30, %c0_31] : memref<5x368x256xbf16, #tpu.memory_space<vmem>>, vector<1x368x256xbf16>
    %57 = vector.shape_cast %56 : vector<1x368x256xbf16> to vector<368x256xbf16>
    %cst_32 = arith.constant dense<0.000000e+00> : vector<64x256xf32>
    %58 = tpu.matmul %55, %57, %cst_32 {dimension_numbers = #tpu.dot_dimension_numbers<[1], [0], [0], [1], [0, 0, 1, 1], [], []>} : vector<64x368xbf16>, vector<368x256xbf16>, vector<64x256xf32> -> vector<64x256xf32>
    %59 = arith.addf %54, %58 : vector<64x256xf32>
    %60 = vector.extract_strided_slice %21 {offsets = [16, 0], sizes = [64, 368], strides = [1, 1]} : vector<96x368xbf16> to vector<64x368xbf16>
    %c2_33 = arith.constant 2 : index
    %c0_34 = arith.constant 0 : index
    %c0_35 = arith.constant 0 : index
    %61 = vector.load %arg4[%c2_33, %c0_34, %c0_35] : memref<5x368x256xbf16, #tpu.memory_space<vmem>>, vector<1x368x256xbf16>
    %62 = vector.shape_cast %61 : vector<1x368x256xbf16> to vector<368x256xbf16>
    %cst_36 = arith.constant dense<0.000000e+00> : vector<64x256xf32>
    %63 = tpu.matmul %60, %62, %cst_36 {dimension_numbers = #tpu.dot_dimension_numbers<[1], [0], [0], [1], [0, 0, 1, 1], [], []>} : vector<64x368xbf16>, vector<368x256xbf16>, vector<64x256xf32> -> vector<64x256xf32>
    %64 = arith.addf %59, %63 : vector<64x256xf32>
    %65 = vector.extract_strided_slice %17 {offsets = [32, 0], sizes = [64, 368], strides = [1, 1]} : vector<96x368xbf16> to vector<64x368xbf16>
    %c3_37 = arith.constant 3 : index
    %c0_38 = arith.constant 0 : index
    %c0_39 = arith.constant 0 : index
    %66 = vector.load %arg4[%c3_37, %c0_38, %c0_39] : memref<5x368x256xbf16, #tpu.memory_space<vmem>>, vector<1x368x256xbf16>
    %67 = vector.shape_cast %66 : vector<1x368x256xbf16> to vector<368x256xbf16>
    %cst_40 = arith.constant dense<0.000000e+00> : vector<64x256xf32>
    %68 = tpu.matmul %65, %67, %cst_40 {dimension_numbers = #tpu.dot_dimension_numbers<[1], [0], [0], [1], [0, 0, 1, 1], [], []>} : vector<64x368xbf16>, vector<368x256xbf16>, vector<64x256xf32> -> vector<64x256xf32>
    %69 = arith.addf %64, %68 : vector<64x256xf32>
    %70 = vector.extract_strided_slice %21 {offsets = [32, 0], sizes = [64, 368], strides = [1, 1]} : vector<96x368xbf16> to vector<64x368xbf16>
    %c4_41 = arith.constant 4 : index
    %c0_42 = arith.constant 0 : index
    %c0_43 = arith.constant 0 : index
    %71 = vector.load %arg4[%c4_41, %c0_42, %c0_43] : memref<5x368x256xbf16, #tpu.memory_space<vmem>>, vector<1x368x256xbf16>
    %72 = vector.shape_cast %71 : vector<1x368x256xbf16> to vector<368x256xbf16>
    %cst_44 = arith.constant dense<0.000000e+00> : vector<64x256xf32>
    %73 = tpu.matmul %70, %72, %cst_44 {dimension_numbers = #tpu.dot_dimension_numbers<[1], [0], [0], [1], [0, 0, 1, 1], [], []>} : vector<64x368xbf16>, vector<368x256xbf16>, vector<64x256xf32> -> vector<64x256xf32>
    %74 = arith.addf %69, %73 : vector<64x256xf32>
    %c0_45 = arith.constant 0 : index
    %c0_46 = arith.constant 0 : index
    %75 = vector.load %arg5[%c0_45, %c0_46] : memref<1x256xf32, #tpu.memory_space<vmem>>, vector<1x256xf32>
    %76 = vector.broadcast %75 : vector<1x256xf32> to vector<64x256xf32>
    %77 = arith.addf %74, %76 : vector<64x256xf32>
    %cst_47 = arith.constant 0.000000e+00 : f32
    %78 = vector.broadcast %cst_47 : f32 to vector<64x256xf32>
    %79 = arith.maximumf %77, %78 : vector<64x256xf32>
    %80 = arith.maximumf %50, %79 : vector<64x256xf32>
    %81 = vector.extract_strided_slice %80 {offsets = [0, 0], sizes = [64, 224], strides = [1, 1]} : vector<64x256xf32> to vector<64x224xf32>
    %82 = vector.extract_strided_slice %80 {offsets = [0, 32], sizes = [64, 224], strides = [1, 1]} : vector<64x256xf32> to vector<64x224xf32>
    %83 = arith.maximumf %81, %82 : vector<64x224xf32>
    %84 = arith.truncf %83 : vector<64x224xf32> to vector<64x224xbf16>
    %85 = vector.extract_strided_slice %84 {offsets = [0, 0], sizes = [16, 224], strides = [1, 1]} : vector<64x224xbf16> to vector<16x224xbf16>
    %c0_48 = arith.constant 0 : index
    %c0_49 = arith.constant 0 : index
    %c0_50 = arith.constant 0 : index
    %86 = vector.load %arg6[%c0_48, %c0_49, %c0_50] : memref<4x224x128xbf16, #tpu.memory_space<vmem>>, vector<1x224x128xbf16>
    %87 = vector.shape_cast %86 : vector<1x224x128xbf16> to vector<224x128xbf16>
    %cst_51 = arith.constant dense<0.000000e+00> : vector<16x128xf32>
    %88 = tpu.matmul %85, %87, %cst_51 {dimension_numbers = #tpu.dot_dimension_numbers<[1], [0], [0], [1], [0, 0, 1, 1], [], []>} : vector<16x224xbf16>, vector<224x128xbf16>, vector<16x128xf32> -> vector<16x128xf32>
    %89 = vector.extract_strided_slice %84 {offsets = [16, 0], sizes = [16, 224], strides = [1, 1]} : vector<64x224xbf16> to vector<16x224xbf16>
    %c1_52 = arith.constant 1 : index
    %c0_53 = arith.constant 0 : index
    %c0_54 = arith.constant 0 : index
    %90 = vector.load %arg6[%c1_52, %c0_53, %c0_54] : memref<4x224x128xbf16, #tpu.memory_space<vmem>>, vector<1x224x128xbf16>
    %91 = vector.shape_cast %90 : vector<1x224x128xbf16> to vector<224x128xbf16>
    %cst_55 = arith.constant dense<0.000000e+00> : vector<16x128xf32>
    %92 = tpu.matmul %89, %91, %cst_55 {dimension_numbers = #tpu.dot_dimension_numbers<[1], [0], [0], [1], [0, 0, 1, 1], [], []>} : vector<16x224xbf16>, vector<224x128xbf16>, vector<16x128xf32> -> vector<16x128xf32>
    %93 = arith.addf %88, %92 : vector<16x128xf32>
    %94 = vector.extract_strided_slice %84 {offsets = [32, 0], sizes = [16, 224], strides = [1, 1]} : vector<64x224xbf16> to vector<16x224xbf16>
    %c2_56 = arith.constant 2 : index
    %c0_57 = arith.constant 0 : index
    %c0_58 = arith.constant 0 : index
    %95 = vector.load %arg6[%c2_56, %c0_57, %c0_58] : memref<4x224x128xbf16, #tpu.memory_space<vmem>>, vector<1x224x128xbf16>
    %96 = vector.shape_cast %95 : vector<1x224x128xbf16> to vector<224x128xbf16>
    %cst_59 = arith.constant dense<0.000000e+00> : vector<16x128xf32>
    %97 = tpu.matmul %94, %96, %cst_59 {dimension_numbers = #tpu.dot_dimension_numbers<[1], [0], [0], [1], [0, 0, 1, 1], [], []>} : vector<16x224xbf16>, vector<224x128xbf16>, vector<16x128xf32> -> vector<16x128xf32>
    %98 = arith.addf %93, %97 : vector<16x128xf32>
    %99 = vector.extract_strided_slice %84 {offsets = [48, 0], sizes = [16, 224], strides = [1, 1]} : vector<64x224xbf16> to vector<16x224xbf16>
    %c3_60 = arith.constant 3 : index
    %c0_61 = arith.constant 0 : index
    %c0_62 = arith.constant 0 : index
    %100 = vector.load %arg6[%c3_60, %c0_61, %c0_62] : memref<4x224x128xbf16, #tpu.memory_space<vmem>>, vector<1x224x128xbf16>
    %101 = vector.shape_cast %100 : vector<1x224x128xbf16> to vector<224x128xbf16>
    %cst_63 = arith.constant dense<0.000000e+00> : vector<16x128xf32>
    %102 = tpu.matmul %99, %101, %cst_63 {dimension_numbers = #tpu.dot_dimension_numbers<[1], [0], [0], [1], [0, 0, 1, 1], [], []>} : vector<16x224xbf16>, vector<224x128xbf16>, vector<16x128xf32> -> vector<16x128xf32>
    %103 = arith.addf %98, %102 : vector<16x128xf32>
    %c0_64 = arith.constant 0 : index
    %c0_65 = arith.constant 0 : index
    %104 = vector.load %arg7[%c0_64, %c0_65] : memref<1x128xf32, #tpu.memory_space<vmem>>, vector<1x128xf32>
    %105 = vector.broadcast %104 : vector<1x128xf32> to vector<16x128xf32>
    %106 = arith.addf %103, %105 : vector<16x128xf32>
    %cst_66 = arith.constant 0.000000e+00 : f32
    %107 = vector.broadcast %cst_66 : f32 to vector<16x128xf32>
    %108 = arith.maximumf %106, %107 : vector<16x128xf32>
    %109 = arith.truncf %108 : vector<16x128xf32> to vector<16x128xbf16>
    %c0_67 = arith.constant 0 : index
    %c0_68 = arith.constant 0 : index
    %110 = vector.load %arg8[%c0_67, %c0_68] : memref<128x128xbf16, #tpu.memory_space<vmem>>, vector<128x128xbf16>
    %cst_69 = arith.constant dense<0.000000e+00> : vector<16x128xf32>
    %111 = tpu.matmul %109, %110, %cst_69 {dimension_numbers = #tpu.dot_dimension_numbers<[1], [0], [0], [1], [0, 0, 1, 1], [], []>} : vector<16x128xbf16>, vector<128x128xbf16>, vector<16x128xf32> -> vector<16x128xf32>
    %c0_70 = arith.constant 0 : index
    %c0_71 = arith.constant 0 : index
    %112 = vector.load %arg9[%c0_70, %c0_71] : memref<1x128xf32, #tpu.memory_space<vmem>>, vector<1x128xf32>
    %113 = vector.broadcast %112 : vector<1x128xf32> to vector<16x128xf32>
    %114 = arith.addf %111, %113 : vector<16x128xf32>
    %c0_72 = arith.constant 0 : index
    %c0_73 = arith.constant 0 : index
    %115 = vector.load %arg10[%c0_72, %c0_73] : memref<16x128xf32, #tpu.memory_space<vmem>>, vector<16x128xf32>
    tpu.vector_store %arg10[%c0_72, %c0_73], %114 {strides = array<i32>} : memref<16x128xf32, #tpu.memory_space<vmem>>, vector<16x128xf32>,
    return
  }
  func.func @transform_0(%arg0: i32) -> (i32, i32) {
    %c0_i32 = arith.constant 0 : i32
    %c0_i32_0 = arith.constant 0 : i32
    return %arg0, %c0_i32 : i32, i32
  }
  func.func @transform_1(%arg0: i32) -> (i32, i32) {
    %c0_i32 = arith.constant 0 : i32
    %c0_i32_0 = arith.constant 0 : i32
    %c0_i32_1 = arith.constant 0 : i32
    return %c0_i32, %c0_i32_0 : i32, i32
  }
  func.func @transform_2(%arg0: i32) -> (i32, i32) {
    %c0_i32 = arith.constant 0 : i32
    %c0_i32_0 = arith.constant 0 : i32
    %c0_i32_1 = arith.constant 0 : i32
    return %c0_i32, %c0_i32_0 : i32, i32
  }
  func.func @transform_3(%arg0: i32) -> (i32, i32, i32) {
    %c0_i32 = arith.constant 0 : i32
    %c0_i32_0 = arith.constant 0 : i32
    %c0_i32_1 = arith.constant 0 : i32
    %c0_i32_2 = arith.constant 0 : i32
    return %c0_i32, %c0_i32_0, %c0_i32_1 : i32, i32, i32
  }
  func.func @transform_4(%arg0: i32) -> (i32, i32) {
    %c0_i32 = arith.constant 0 : i32
    %c0_i32_0 = arith.constant 0 : i32
    %c0_i32_1 = arith.constant 0 : i32
    return %c0_i32, %c0_i32_0 : i32, i32
  }
  func.func @transform_5(%arg0: i32) -> (i32, i32, i32) {
    %c0_i32 = arith.constant 0 : i32
    %c0_i32_0 = arith.constant 0 : i32
    %c0_i32_1 = arith.constant 0 : i32
    %c0_i32_2 = arith.constant 0 : i32
    return %c0_i32, %c0_i32_0, %c0_i32_1 : i32, i32, i32
  }
  func.func @transform_6(%arg0: i32) -> (i32, i32) {
    %c0_i32 = arith.constant 0 : i32
    %c0_i32_0 = arith.constant 0 : i32
    %c0_i32_1 = arith.constant 0 : i32
    return %c0_i32, %c0_i32_0 : i32, i32
  }
  func.func @transform_7(%arg0: i32) -> (i32, i32) {
    %c0_i32 = arith.constant 0 : i32
    %c0_i32_0 = arith.constant 0 : i32
    %c0_i32_1 = arith.constant 0 : i32
    return %c0_i32, %c0_i32_0 : i32, i32
  }
  func.func @transform_8(%arg0: i32) -> (i32, i32) {
    %c0_i32 = arith.constant 0 : i32
    %c0_i32_0 = arith.constant 0 : i32
    %c0_i32_1 = arith.constant 0 : i32
    return %c0_i32, %c0_i32_0 : i32, i32
  }
  func.func @transform_9(%arg0: i32) -> (i32, i32) {
    %c0_i32 = arith.constant 0 : i32
    %c0_i32_0 = arith.constant 0 : i32
    return %arg0, %c0_i32 : i32, i32
  }
}

</mosaic_0001>

<llo_original>
// kernel: mnist_cnn_forward.1
$region0: #{mnist_cnn_forward.1}
  #allocation0 [shape = 'u32[]', space=smem, size = 0x4, offset = 0x4, fixed_abs, tag = 'smem constant byte address 0x4 - core index']
  #allocation1 [shape = 'u32[144,128]{1,0:T(1,128)}', space=vmem, size = 0x12000, scoped, tag = 'internal scratch']
  %s0 = inlined_call_operand.vmem [shape: bf16[768,160], index: 0, kind: input, shape index: {}]
  %s1 = inlined_call_operand.vmem [shape: bf16[160,384], index: 1, kind: input, shape index: {}]
  %s2 = inlined_call_operand.vmem [shape: f32[1,384], index: 2, kind: input, shape index: {}]
  %s3 = inlined_call_operand.vmem [shape: bf16[5,368,256], index: 3, kind: input, shape index: {}]
  %s4 = inlined_call_operand.vmem [shape: f32[1,256], index: 4, kind: input, shape index: {}]
  %s5 = inlined_call_operand.vmem [shape: bf16[4,224,128], index: 5, kind: input, shape index: {}]
  %s6 = inlined_call_operand.vmem [shape: f32[1,128], index: 6, kind: input, shape index: {}]
  %s7 = inlined_call_operand.vmem [shape: bf16[128,128], index: 7, kind: input, shape index: {}]
  %s8 = inlined_call_operand.vmem [shape: f32[1,128], index: 8, kind: input, shape index: {}]
  %s9 = inlined_call_operand.vmem [shape: f32[32,128], index: 9, kind: output, shape index: {}]
  %s10 = sld [smem:[#allocation0]]
  $region69: #{mnist_cnn_forward.1} parent=0
    _
  %s12 = ssub.s32 1, %s10
  %s13 = scalar_select 0, %s12, %s10
  loop: start=0, step=1, limit=4
  $region2: #{mnist_cnn_forward.1} parent=0 // loop_pre_header
    _
  $region3: #{mnist_cnn_forward.1} parent=0 // loop_header
    %s15 = sphi 0, %s19
    %p16 = scmp.ge.s32.totalorder %s15, 4
    %s25 = sphi 0, %s27
    %s28 = sphi 0, %s25
    %s29 = sphi 0, %s28
    %s45 = sphi 0, %s29
    %s49 = sphi 0, %s49
    %s51 = sphi 0, %s49
    %s52 = sphi 0, %s51
    %s66 = sphi 0, %s52
    %s70 = sphi 0, %s70
    %s72 = sphi 0, %s70
    %s73 = sphi 0, %s72
    %s87 = sphi 0, %s73
    %s91 = sphi 0, %s91
    %s93 = sphi 0, %s91
    %s94 = sphi 0, %s93
    %s108 = sphi 0, %s94
    %s112 = sphi 0, %s112
    %s114 = sphi 0, %s112
    %s115 = sphi 0, %s114
    %s129 = sphi 0, %s115
    %s133 = sphi 0, %s133
    %s135 = sphi 0, %s133
    %s136 = sphi 0, %s135
    %s150 = sphi 0, %s136
    %s154 = sphi 0, %s154
    %s156 = sphi 0, %s154
    %s157 = sphi 0, %s156
    %s171 = sphi 0, %s157
    %s175 = sphi 0, %s175
    %s177 = sphi 0, %s175
    %s178 = sphi 0, %s177
    %s192 = sphi 0, %s178
    %s196 = sphi 0, %s196
    %s198 = sphi 0, %s196
    %s199 = sphi 0, %s198
    %s213 = sphi 0, %s199
    %s219 = sphi 0, %s221
    %s222 = sphi 0, %s219
    %s223 = sphi 0, %s222
    %s239 = sphi 0, %s223
  $region4: #{mnist_cnn_forward.1} parent=0 // loop_header_branch
    %18 = sbr.rel (%p16) target = $region8
  $region5: #{mnist_cnn_forward.1} parent=0 // loop_body
    %s20 = ssub.s32 %s15, 1
    %s21 = ssub.s32 %s15, 2
    %s22 = sadd.s32 %s15, 1
    %s23 = ssub.s32 %s15, %s22
    %p24 = scmp.eq.s32.totalorder %s23, 0
    %s26 = sadd.s32 %s25, 1
    %s27 = scalar_select %p24, %s25, %s26
    %p30 = pneg %p24
    %p31 = scmp.eq.s32.totalorder %s15, 1
    %p32 = por %p30, %p31
    %p33 = scmp.ne.s32.totalorder %s25, %s28
    %p34 = scmp.eq.s32.totalorder %s15, 0
    %p35 = por %p33, %p34
    %p36 = scmp.ne.s32.totalorder %s25, %s28
    %p37 = scmp.eq.s32.totalorder %s20, 1
    %p38 = por %p36, %p37
    %p39 = scmp.ne.s32.totalorder %s28, %s29
    %p40 = scmp.eq.s32.totalorder %s20, 0
    %p41 = por %p39, %p40
    %p42 = scmp.ne.s32.totalorder %s28, %s29
    %p43 = scmp.eq.s32.totalorder %s21, 1
    %p44 = por %p42, %p43
    %p46 = scmp.ne.s32.totalorder %s29, %s45
    %p47 = scmp.eq.s32.totalorder %s21, 0
    %p48 = por %p46, %p47
    %s50 = sadd.s32 %s49, 1
    %p53 = scmp.eq.s32.totalorder %s15, 1
    %p54 = scmp.ne.s32.totalorder %s49, %s51
    %p55 = scmp.eq.s32.totalorder %s15, 0
    %p56 = por %p54, %p55
    %p57 = scmp.ne.s32.totalorder %s49, %s51
    %p58 = scmp.eq.s32.totalorder %s20, 1
    %p59 = por %p57, %p58
    %p60 = scmp.ne.s32.totalorder %s51, %s52
    %p61 = scmp.eq.s32.totalorder %s20, 0
    %p62 = por %p60, %p61
    %p63 = scmp.ne.s32.totalorder %s51, %s52
    %p64 = scmp.eq.s32.totalorder %s21, 1
    %p65 = por %p63, %p64
    %p67 = scmp.ne.s32.totalorder %s52, %s66
    %p68 = scmp.eq.s32.totalorder %s21, 0
    %p69 = por %p67, %p68
    %s71 = sadd.s32 %s70, 1
    %p74 = scmp.eq.s32.totalorder %s15, 1
    %p75 = scmp.ne.s32.totalorder %s70, %s72
    %p76 = scmp.eq.s32.totalorder %s15, 0
    %p77 = por %p75, %p76
    %p78 = scmp.ne.s32.totalorder %s70, %s72
    %p79 = scmp.eq.s32.totalorder %s20, 1
    %p80 = por %p78, %p79
    %p81 = scmp.ne.s32.totalorder %s72, %s73
    %p82 = scmp.eq.s32.totalorder %s20, 0
    %p83 = por %p81, %p82
    %p84 = scmp.ne.s32.totalorder %s72, %s73
    %p85 = scmp.eq.s32.totalorder %s21, 1
    %p86 = por %p84, %p85
    %p88 = scmp.ne.s32.totalorder %s73, %s87
    %p89 = scmp.eq.s32.totalorder %s21, 0
    %p90 = por %p88, %p89
    %s92 = sadd.s32 %s91, 1
    %p95 = scmp.eq.s32.totalorder %s15, 1
    %p96 = scmp.ne.s32.totalorder %s91, %s93
    %p97 = scmp.eq.s32.totalorder %s15, 0
    %p98 = por %p96, %p97
    %p99 = scmp.ne.s32.totalorder %s91, %s93
    %p100 = scmp.eq.s32.totalorder %s20, 1
    %p101 = por %p99, %p100
    %p102 = scmp.ne.s32.totalorder %s93, %s94
    %p103 = scmp.eq.s32.totalorder %s20, 0
    %p104 = por %p102, %p103
    %p105 = scmp.ne.s32.totalorder %s93, %s94
    %p106 = scmp.eq.s32.totalorder %s21, 1
    %p107 = por %p105, %p106
    %p109 = scmp.ne.s32.totalorder %s94, %s108
    %p110 = scmp.eq.s32.totalorder %s21, 0
    %p111 = por %p109, %p110
    %s113 = sadd.s32 %s112, 1
    %p116 = scmp.eq.s32.totalorder %s15, 1
    %p117 = scmp.ne.s32.totalorder %s112, %s114
    %p118 = scmp.eq.s32.totalorder %s15, 0
    %p119 = por %p117, %p118
    %p120 = scmp.ne.s32.totalorder %s112, %s114
    %p121 = scmp.eq.s32.totalorder %s20, 1
    %p122 = por %p120, %p121
    %p123 = scmp.ne.s32.totalorder %s114, %s115
    %p124 = scmp.eq.s32.totalorder %s20, 0
    %p125 = por %p123, %p124
    %p126 = scmp.ne.s32.totalorder %s114, %s115
    %p127 = scmp.eq.s32.totalorder %s21, 1
    %p128 = por %p126, %p127
    %p130 = scmp.ne.s32.totalorder %s115, %s129
    %p131 = scmp.eq.s32.totalorder %s21, 0
    %p132 = por %p130, %p131
    %s134 = sadd.s32 %s133, 1
    %p137 = scmp.eq.s32.totalorder %s15, 1
    %p138 = scmp.ne.s32.totalorder %s133, %s135
    %p139 = scmp.eq.s32.totalorder %s15, 0
    %p140 = por %p138, %p139
    %p141 = scmp.ne.s32.totalorder %s133, %s135
    %p142 = scmp.eq.s32.totalorder %s20, 1
    %p143 = por %p141, %p142
    %p144 = scmp.ne.s32.totalorder %s135, %s136
    %p145 = scmp.eq.s32.totalorder %s20, 0
    %p146 = por %p144, %p145
    %p147 = scmp.ne.s32.totalorder %s135, %s136
    %p148 = scmp.eq.s32.totalorder %s21, 1
    %p149 = por %p147, %p148
    %p151 = scmp.ne.s32.totalorder %s136, %s150
    %p152 = scmp.eq.s32.totalorder %s21, 0
    %p153 = por %p151, %p152
    %s155 = sadd.s32 %s154, 1
    %p158 = scmp.eq.s32.totalorder %s15, 1
    %p159 = scmp.ne.s32.totalorder %s154, %s156
    %p160 = scmp.eq.s32.totalorder %s15, 0
    %p161 = por %p159, %p160
    %p162 = scmp.ne.s32.totalorder %s154, %s156
    %p163 = scmp.eq.s32.totalorder %s20, 1
    %p164 = por %p162, %p163
    %p165 = scmp.ne.s32.totalorder %s156, %s157
    %p166 = scmp.eq.s32.totalorder %s20, 0
    %p167 = por %p165, %p166
    %p168 = scmp.ne.s32.totalorder %s156, %s157
    %p169 = scmp.eq.s32.totalorder %s21, 1
    %p170 = por %p168, %p169
    %p172 = scmp.ne.s32.totalorder %s157, %s171
    %p173 = scmp.eq.s32.totalorder %s21, 0
    %p174 = por %p172, %p173
    %s176 = sadd.s32 %s175, 1
    %p179 = scmp.eq.s32.totalorder %s15, 1
    %p180 = scmp.ne.s32.totalorder %s175, %s177
    %p181 = scmp.eq.s32.totalorder %s15, 0
    %p182 = por %p180, %p181
    %p183 = scmp.ne.s32.totalorder %s175, %s177
    %p184 = scmp.eq.s32.totalorder %s20, 1
    %p185 = por %p183, %p184
    %p186 = scmp.ne.s32.totalorder %s177, %s178
    %p187 = scmp.eq.s32.totalorder %s20, 0
    %p188 = por %p186, %p187
    %p189 = scmp.ne.s32.totalorder %s177, %s178
    %p190 = scmp.eq.s32.totalorder %s21, 1
    %p191 = por %p189, %p190
    %p193 = scmp.ne.s32.totalorder %s178, %s192
    %p194 = scmp.eq.s32.totalorder %s21, 0
    %p195 = por %p193, %p194
    %s197 = sadd.s32 %s196, 1
    %p200 = scmp.eq.s32.totalorder %s15, 1
    %p201 = scmp.ne.s32.totalorder %s196, %s198
    %p202 = scmp.eq.s32.totalorder %s15, 0
    %p203 = por %p201, %p202
    %p204 = scmp.ne.s32.totalorder %s196, %s198
    %p205 = scmp.eq.s32.totalorder %s20, 1
    %p206 = por %p204, %p205
    %p207 = scmp.ne.s32.totalorder %s198, %s199
    %p208 = scmp.eq.s32.totalorder %s20, 0
    %p209 = por %p207, %p208
    %p210 = scmp.ne.s32.totalorder %s198, %s199
    %p211 = scmp.eq.s32.totalorder %s21, 1
    %p212 = por %p210, %p211
    %p214 = scmp.ne.s32.totalorder %s199, %s213
    %p215 = scmp.eq.s32.totalorder %s21, 0
    %p216 = por %p214, %p215
    %s217 = ssub.s32 %s15, %s22
    %p218 = scmp.eq.s32.totalorder %s217, 0
    %s220 = sadd.s32 %s219, 1
    %s221 = scalar_select %p218, %s219, %s220
    %p224 = pneg %p218
    %p225 = scmp.eq.s32.totalorder %s15, 1
    %p226 = por %p224, %p225
    %p227 = scmp.ne.s32.totalorder %s219, %s222
    %p228 = scmp.eq.s32.totalorder %s15, 0
    %p229 = por %p227, %p228
    %p230 = scmp.ne.s32.totalorder %s219, %s222
    %p231 = scmp.eq.s32.totalorder %s20, 1
    %p232 = por %p230, %p231
    %p233 = scmp.ne.s32.totalorder %s222, %s223
    %p234 = scmp.eq.s32.totalorder %s20, 0
    %p235 = por %p233, %p234
    %p236 = scmp.ne.s32.totalorder %s222, %s223
    %p237 = scmp.eq.s32.totalorder %s21, 1
    %p238 = por %p236, %p237
    %p240 = scmp.ne.s32.totalorder %s223, %s239
    %p241 = scmp.eq.s32.totalorder %s21, 0
    %p242 = por %p240, %p241
    %p243 = scmp.le.s32.totalorder 1, %s15
    %p244 = scmp.lt.s32.totalorder %s15, 3
    %p245 = pnand %p243, %p244
    %p246 = pneg %p245
    // Predicated region
    $region9: #{mnist_cnn_forward.1} parent=5 // pred_check
      _
    $region10: #{mnist_cnn_forward.1} parent=5 // pred_check_branch
      %248 = sbr.rel (%p245) target = $region12
    $region11: #{mnist_cnn_forward.1} parent=5 // pred_region
      %s249 = ssub.s32 %s15, 1
      // Predicated region
      $region13: #{mnist_cnn_forward.1} parent=11 // pred_check
        %p250 = pneg %p62
      $region14: #{mnist_cnn_forward.1} parent=11 // pred_check_branch
        %252 = sbr.rel (%p250) target = $region16
      $region15: #{mnist_cnn_forward.1} parent=11 // pred_region
        _
      $region16: #{mnist_cnn_forward.1} parent=11 // pred_fallthru
        _
      // Predicated region
      $region17: #{mnist_cnn_forward.1} parent=11 // pred_check
        %p253 = pneg %p83
      $region18: #{mnist_cnn_forward.1} parent=11 // pred_check_branch
        %255 = sbr.rel (%p253) target = $region20
      $region19: #{mnist_cnn_forward.1} parent=11 // pred_region
        _
      $region20: #{mnist_cnn_forward.1} parent=11 // pred_fallthru
        _
      // Predicated region
      $region21: #{mnist_cnn_forward.1} parent=11 // pred_check
        %p256 = pneg %p104
      $region22: #{mnist_cnn_forward.1} parent=11 // pred_check_branch
        %258 = sbr.rel (%p256) target = $region24
      $region23: #{mnist_cnn_forward.1} parent=11 // pred_region
        _
      $region24: #{mnist_cnn_forward.1} parent=11 // pred_fallthru
        _
      // Predicated region
      $region25: #{mnist_cnn_forward.1} parent=11 // pred_check
        %p259 = pneg %p125
      $region26: #{mnist_cnn_forward.1} parent=11 // pred_check_branch
        %261 = sbr.rel (%p259) target = $region28
      $region27: #{mnist_cnn_forward.1} parent=11 // pred_region
        _
      $region28: #{mnist_cnn_forward.1} parent=11 // pred_fallthru
        _
      // Predicated region
      $region29: #{mnist_cnn_forward.1} parent=11 // pred_check
        %p262 = pneg %p146
      $region30: #{mnist_cnn_forward.1} parent=11 // pred_check_branch
        %264 = sbr.rel (%p262) target = $region32
      $region31: #{mnist_cnn_forward.1} parent=11 // pred_region
        _
      $region32: #{mnist_cnn_forward.1} parent=11 // pred_fallthru
        _
      // Predicated region
      $region33: #{mnist_cnn_forward.1} parent=11 // pred_check
        %p265 = pneg %p167
      $region34: #{mnist_cnn_forward.1} parent=11 // pred_check_branch
        %267 = sbr.rel (%p265) target = $region36
      $region35: #{mnist_cnn_forward.1} parent=11 // pred_region
        _
      $region36: #{mnist_cnn_forward.1} parent=11 // pred_fallthru
        _
      // Predicated region
      $region37: #{mnist_cnn_forward.1} parent=11 // pred_check
        %p268 = pneg %p188
      $region38: #{mnist_cnn_forward.1} parent=11 // pred_check_branch
        %270 = sbr.rel (%p268) target = $region40
      $region39: #{mnist_cnn_forward.1} parent=11 // pred_region
        _
      $region40: #{mnist_cnn_forward.1} parent=11 // pred_fallthru
        _
      // Predicated region
      $region41: #{mnist_cnn_forward.1} parent=11 // pred_check
        %p271 = pneg %p209
      $region42: #{mnist_cnn_forward.1} parent=11 // pred_check_branch
        %273 = sbr.rel (%p271) target = $region44
      $region43: #{mnist_cnn_forward.1} parent=11 // pred_region
        _
      $region44: #{mnist_cnn_forward.1} parent=11 // pred_fallthru
        _
    $region12: #{mnist_cnn_forward.1} parent=5 // pred_fallthru
      _
    %p274 = scmp.lt.s32.totalorder %s15, 2
    // Predicated region
    $region45: #{mnist_cnn_forward.1} parent=5 // pred_check
      %p275 = pneg %p274
    $region46: #{mnist_cnn_forward.1} parent=5 // pred_check_branch
      %277 = sbr.rel (%p275) target = $region48
    $region47: #{mnist_cnn_forward.1} parent=5 // pred_region
      // Predicated region
      $region49: #{mnist_cnn_forward.1} parent=47 // pred_check
        %p278 = pneg %p35
      $region50: #{mnist_cnn_forward.1} parent=47 // pred_check_branch
        %280 = sbr.rel (%p278) target = $region52
      $region51: #{mnist_cnn_forward.1} parent=47 // pred_region
        %s281 = smul.u32 48, %s15
        %p282 = scmp.lt.s32.totalorder %s281, 95
        %s283 = scalar_select %p282, %s281, 95
        %s284 = smul.addr %s283, 2
        %s285 = smul.addr %s284, 4
        %s286 = scalar_lea.vmem %s0, %s285
        %s287 = smul.u32 48, %s15
      $region52: #{mnist_cnn_forward.1} parent=47 // pred_fallthru
        _
    $region48: #{mnist_cnn_forward.1} parent=5 // pred_fallthru
      _
    %p288 = scmp.le.s32.totalorder 1, %s15
    %p289 = scmp.lt.s32.totalorder %s15, 3
    %p290 = pnand %p288, %p289
    %p291 = pneg %p290
    // Predicated region
    $region53: #{mnist_cnn_forward.1} parent=5 // pred_check
      _
    $region54: #{mnist_cnn_forward.1} parent=5 // pred_check_branch
      %293 = sbr.rel (%p290) target = $region56
    $region55: #{mnist_cnn_forward.1} parent=5 // pred_region
      %s294 = ssub.s32 %s15, 1
      %s295 = smul.u32 48, %s20
      %p296 = scmp.lt.s32.totalorder %s295, 95
      %s297 = scalar_select %p296, %s295, 95
      %s298 = smul.addr %s297, 2
      %s299 = smul.addr %s298, 4
      %s300 = scalar_lea.vmem %s0, %s299
      %p301 = pneg %p41
      %p302 = pneg %p38
      %p303 = pneg %p62
      %p304 = pneg %p59
      %p305 = pneg %p83
      %p306 = pneg %p80
      %p307 = pneg %p104
      %p308 = pneg %p101
      %p309 = pneg %p125
      %p310 = pneg %p122
      %p311 = pneg %p146
      %p312 = pneg %p143
      %p313 = pneg %p167
      %p314 = pneg %p164
      %p315 = pneg %p188
      %p316 = pneg %p185
      %p317 = pneg %p209
      %p318 = pneg %p206
      %p319 = pneg %p235
      %p320 = pneg %p232
      %s321 = smul.u32 2, %s20
      %p322 = scmp.lt.s32.totalorder %s321, 3
      %s323 = scalar_select %p322, %s321, 3
      %s324 = smul.addr %s323, 8
      %s325 = scalar_lea.vmem %s9, %s324
      %s326 = smul.u32 48, %s20
      %p327 = scmp.lt.s32.totalorder %s326, 95
      %s328 = scalar_select %p327, %s326, 95
      %s329 = smul.addr %s328, 2
      %s330 = smul.addr %s329, 4
      %s331 = scalar_lea.vmem %s0, %s330
      %s332 = smul.u32 48, %s20
      %s333 = smul.u32 2, %s20
      %p334 = scmp.lt.s32.totalorder %s333, 3
      %s335 = scalar_select %p334, %s333, 3
      %s336 = smul.addr %s335, 8
      %s337 = scalar_lea.vmem %s9, %s336
      %s338 = smul.u32 2, %s20
      %v340 = vld [vmem:[%s331] sm:$0xff]
      %v341 = vld [vmem:[%s331 + $0x8] sm:$0xff]
      %v342 = vld [vmem:[%s331 + $0x10] sm:$0xff]
      %v343 = vld [vmem:[%s331 + $0x18] sm:$0xff]
      %v344 = vld [vmem:[%s331 + $0x20] sm:$0xff]
      %v345 = vld [vmem:[%s331 + $0x28] sm:$0xff]
      %v346 = vld [vmem:[%s331 + $0x30] sm:$0xff]
      %v347 = vld [vmem:[%s331 + $0x38] sm:$0xff]
      %v348 = vld [vmem:[%s331 + $0x40] sm:$0xff]
      %v349 = vld [vmem:[%s331 + $0x48] sm:$0xff]
      %v350 = vld [vmem:[%s331 + $0x50] sm:$0xff]
      %v351 = vld [vmem:[%s331 + $0x58] sm:$0xff]
      %v352 = vld [vmem:[%s331 + $0x60] sm:$0xff]
      %v353 = vld [vmem:[%s331 + $0x68] sm:$0xff]
      %v354 = vld [vmem:[%s331 + $0x70] sm:$0xff]
      %v355 = vld [vmem:[%s331 + $0x78] sm:$0xff]
      %v356 = vld [vmem:[%s331 + $0x80] sm:$0xff]
      %v357 = vld [vmem:[%s331 + $0x88] sm:$0xff]
      %v358 = vld [vmem:[%s331 + $0x90] sm:$0xff]
      %v359 = vld [vmem:[%s331 + $0x98] sm:$0xff]
      %v360 = vld [vmem:[%s331 + $0xa0] sm:$0xff]
      %v361 = vld [vmem:[%s331 + $0xa8] sm:$0xff]
      %v362 = vld [vmem:[%s331 + $0xb0] sm:$0xff]
      %v363 = vld [vmem:[%s331 + $0xb8] sm:$0xff]
      %v364 = vld [vmem:[%s331 + $0xc0] sm:$0xff]
      %v365 = vld [vmem:[%s331 + $0xc8] sm:$0xff]
      %v366 = vld [vmem:[%s331 + $0xd0] sm:$0xff]
      %v367 = vld [vmem:[%s331 + $0xd8] sm:$0xff]
      %v368 = vld [vmem:[%s331 + $0xe0] sm:$0xff]
      %v369 = vld [vmem:[%s331 + $0xe8] sm:$0xff]
      %v370 = vld [vmem:[%s331 + $0xf0] sm:$0xff]
      %v371 = vld [vmem:[%s331 + $0xf8] sm:$0xff]
      %v372 = vld [vmem:[%s331 + $0x100] sm:$0xff]
      %v373 = vld [vmem:[%s331 + $0x108] sm:$0xff]
      %v374 = vld [vmem:[%s331 + $0x110] sm:$0xff]
      %v375 = vld [vmem:[%s331 + $0x118] sm:$0xff]
      %v376 = vld [vmem:[%s331 + $0x120] sm:$0xff]
      %v377 = vld [vmem:[%s331 + $0x128] sm:$0xff]
      %v378 = vld [vmem:[%s331 + $0x130] sm:$0xff]
      %v379 = vld [vmem:[%s331 + $0x138] sm:$0xff]
      %v380 = vld [vmem:[%s331 + $0x140] sm:$0xff]
      %v381 = vld [vmem:[%s331 + $0x148] sm:$0xff]
      %v382 = vld [vmem:[%s331 + $0x150] sm:$0xff]
      %v383 = vld [vmem:[%s331 + $0x158] sm:$0xff]
      %v384 = vld [vmem:[%s331 + $0x160] sm:$0xff]
      %v385 = vld [vmem:[%s331 + $0x168] sm:$0xff]
      %v386 = vld [vmem:[%s331 + $0x170] sm:$0xff]
      %v387 = vld [vmem:[%s331 + $0x178] sm:$0xff]
      %v388 = vld [vmem:[%s1] sm:$0xff]
      %v389 = vld [vmem:[%s1 + $0x8] sm:$0xf]
      %v390 = vld [vmem:[%s1 + $0xc] sm:$0xff]
      %v391 = vld [vmem:[%s1 + $0x14] sm:$0xf]
      %v392 = vld [vmem:[%s1 + $0x18] sm:$0xff]
      %v393 = vld [vmem:[%s1 + $0x20] sm:$0xf]
      %v394 = vld [vmem:[%s1 + $0x24] sm:$0xff]
      %v395 = vld [vmem:[%s1 + $0x2c] sm:$0xf]
      %v396 = vld [vmem:[%s1 + $0x30] sm:$0xff]
      %v397 = vld [vmem:[%s1 + $0x38] sm:$0xf]
      %v398 = vld [vmem:[%s1 + $0x3c] sm:$0xff]
      %v399 = vld [vmem:[%s1 + $0x44] sm:$0xf]
      %v400 = vld [vmem:[%s1 + $0x48] sm:$0xff]
      %v401 = vld [vmem:[%s1 + $0x50] sm:$0xf]
      %v402 = vld [vmem:[%s1 + $0x54] sm:$0xff]
      %v403 = vld [vmem:[%s1 + $0x5c] sm:$0xf]
      %v404 = vld [vmem:[%s1 + $0x60] sm:$0xff]
      %v405 = vld [vmem:[%s1 + $0x68] sm:$0xf]
      %v406 = vld [vmem:[%s1 + $0x6c] sm:$0xff]
      %v407 = vld [vmem:[%s1 + $0x74] sm:$0xf]
      %v408 = vld [vmem:[%s1 + $0x78] sm:$0xff]
      %v409 = vld [vmem:[%s1 + $0x80] sm:$0xf]
      %v410 = vld [vmem:[%s1 + $0x84] sm:$0xff]
      %v411 = vld [vmem:[%s1 + $0x8c] sm:$0xf]
      %v412 = vld [vmem:[%s1 + $0x90] sm:$0xff]
      %v413 = vld [vmem:[%s1 + $0x98] sm:$0xf]
      %v414 = vld [vmem:[%s1 + $0x9c] sm:$0xff]
      %v415 = vld [vmem:[%s1 + $0xa4] sm:$0xf]
      %v416 = vld [vmem:[%s1 + $0xa8] sm:$0xff]
      %v417 = vld [vmem:[%s1 + $0xb0] sm:$0xf]
      %v418 = vld [vmem:[%s1 + $0xb4] sm:$0xff]
      %v419 = vld [vmem:[%s1 + $0xbc] sm:$0xf]
      %v420 = vld [vmem:[%s1 + $0xc0] sm:$0xff]
      %v421 = vld [vmem:[%s1 + $0xc8] sm:$0xf]
      %v422 = vld [vmem:[%s1 + $0xcc] sm:$0xff]
      %v423 = vld [vmem:[%s1 + $0xd4] sm:$0xf]
      %v424 = vld [vmem:[%s1 + $0xd8] sm:$0xff]
      %v425 = vld [vmem:[%s1 + $0xe0] sm:$0xf]
      %v426 = vld [vmem:[%s1 + $0xe4] sm:$0xff]
      %v427 = vld [vmem:[%s1 + $0xec] sm:$0xf]
      %v428 = vld [vmem:[%s2] sm:$0x7]
      %v430 = vlaneseq
      %v431 = vshrl.u32 %v430, 7
      %v432 = vsub.s32 0, %v431
      %v433 = vrot.slane %v428, %v432
      %v434 = vlaneseq
      %v435 = vshrl.u32 %v434, 7
      %v436 = vsub.s32 1, %v435
      %v437 = vrot.slane %v428, %v436
      %v438 = vlaneseq
      %v439 = vshrl.u32 %v438, 7
      %v440 = vsub.s32 2, %v439
      %v441 = vrot.slane %v428, %v440
      %v493 = vunpack.c.l.b16 %v340
      %v494 = vunpack.c.h.b16 %v340
      %v495 = vunpack.c.l.b16 %v341
      %v496 = vunpack.c.h.b16 %v341
      %v497 = vunpack.c.l.b16 %v342
      %v498 = vunpack.c.h.b16 %v342
      %v499 = vunpack.c.l.b16 %v343
      %v500 = vunpack.c.h.b16 %v343
      %v501 = vunpack.c.l.b16 %v344
      %v502 = vunpack.c.h.b16 %v344
      %v503 = vunpack.c.l.b16 %v345
      %v504 = vunpack.c.h.b16 %v345
      %v505 = vunpack.c.l.b16 %v346
      %v506 = vunpack.c.h.b16 %v346
      %v507 = vunpack.c.l.b16 %v347
      %v508 = vunpack.c.h.b16 %v347
      %v509 = vunpack.c.l.b16 %v348
      %v510 = vunpack.c.h.b16 %v348
      %v511 = vunpack.c.l.b16 %v349
      %v512 = vunpack.c.h.b16 %v349
      %v513 = vunpack.c.l.b16 %v350
      %v514 = vunpack.c.h.b16 %v350
      %v515 = vunpack.c.l.b16 %v351
      %v516 = vunpack.c.h.b16 %v351
      %v517 = vunpack.c.l.b16 %v352
      %v518 = vunpack.c.h.b16 %v352
      %v519 = vunpack.c.l.b16 %v353
      %v520 = vunpack.c.h.b16 %v353
      %v521 = vunpack.c.l.b16 %v354
      %v522 = vunpack.c.h.b16 %v354
      %v523 = vunpack.c.l.b16 %v355
      %v524 = vunpack.c.h.b16 %v355
      %v525 = vunpack.c.l.b16 %v356
      %v526 = vunpack.c.h.b16 %v356
      %v527 = vunpack.c.l.b16 %v357
      %v528 = vunpack.c.h.b16 %v357
      %v529 = vunpack.c.l.b16 %v358
      %v530 = vunpack.c.h.b16 %v358
      %v531 = vunpack.c.l.b16 %v359
      %v532 = vunpack.c.h.b16 %v359
      %v533 = vunpack.c.l.b16 %v360
      %v534 = vunpack.c.h.b16 %v360
      %v535 = vunpack.c.l.b16 %v361
      %v536 = vunpack.c.h.b16 %v361
      %v537 = vunpack.c.l.b16 %v362
      %v538 = vunpack.c.h.b16 %v362
      %v539 = vunpack.c.l.b16 %v363
      %v540 = vunpack.c.h.b16 %v363
      %v541 = vunpack.c.l.b16 %v364
      %v542 = vunpack.c.h.b16 %v364
      %v543 = vunpack.c.l.b16 %v365
      %v544 = vunpack.c.h.b16 %v365
      %v545 = vunpack.c.l.b16 %v366
      %v546 = vunpack.c.h.b16 %v366
      %v547 = vunpack.c.l.b16 %v367
      %v548 = vunpack.c.h.b16 %v367
      %v549 = vunpack.c.l.b16 %v368
      %v550 = vunpack.c.h.b16 %v368
      %v551 = vunpack.c.l.b16 %v369
      %v552 = vunpack.c.h.b16 %v369
      %v553 = vunpack.c.l.b16 %v370
      %v554 = vunpack.c.h.b16 %v370
      %v555 = vunpack.c.l.b16 %v371
      %v556 = vunpack.c.h.b16 %v371
      %v557 = vunpack.c.l.b16 %v372
      %v558 = vunpack.c.h.b16 %v372
      %v559 = vunpack.c.l.b16 %v373
      %v560 = vunpack.c.h.b16 %v373
      %v561 = vunpack.c.l.b16 %v374
      %v562 = vunpack.c.h.b16 %v374
      %v563 = vunpack.c.l.b16 %v375
      %v564 = vunpack.c.h.b16 %v375
      %v565 = vunpack.c.l.b16 %v376
      %v566 = vunpack.c.h.b16 %v376
      %v567 = vunpack.c.l.b16 %v377
      %v568 = vunpack.c.h.b16 %v377
      %v569 = vunpack.c.l.b16 %v378
      %v570 = vunpack.c.h.b16 %v378
      %v571 = vunpack.c.l.b16 %v379
      %v572 = vunpack.c.h.b16 %v379
      %v573 = vunpack.c.l.b16 %v380
      %v574 = vunpack.c.h.b16 %v380
      %v575 = vunpack.c.l.b16 %v381
      %v576 = vunpack.c.h.b16 %v381
      %v577 = vunpack.c.l.b16 %v382
      %v578 = vunpack.c.h.b16 %v382
      %v579 = vunpack.c.l.b16 %v383
      %v580 = vunpack.c.h.b16 %v383
      %v581 = vunpack.c.l.b16 %v384
      %v582 = vunpack.c.h.b16 %v384
      %v583 = vunpack.c.l.b16 %v385
      %v584 = vunpack.c.h.b16 %v385
      %v585 = vunpack.c.l.b16 %v386
      %v586 = vunpack.c.h.b16 %v386
      %v587 = vunpack.c.l.b16 %v387
      %v588 = vunpack.c.h.b16 %v387
      %v589 = vpack.c.b16 %v495, %v493
      %v590 = vpack.c.b16 %v496, %v494
      %v591 = vpack.c.b16 %v499, %v497
      %v592 = vpack.c.b16 %v500, %v498
      %v593 = vpack.c.b16 %v503, %v501
      %v594 = vpack.c.b16 %v504, %v502
      %v595 = vpack.c.b16 %v507, %v505
      %v596 = vpack.c.b16 %v508, %v506
      %v597 = vpack.c.b16 %v511, %v509
      %v598 = vpack.c.b16 %v512, %v510
      %v599 = vpack.c.b16 %v515, %v513
      %v600 = vpack.c.b16 %v516, %v514
      %v601 = vpack.c.b16 %v519, %v517
      %v602 = vpack.c.b16 %v520, %v518
      %v603 = vpack.c.b16 %v523, %v521
      %v604 = vpack.c.b16 %v524, %v522
      %v605 = vpack.c.b16 %v527, %v525
      %v606 = vpack.c.b16 %v528, %v526
      %v607 = vpack.c.b16 %v531, %v529
      %v608 = vpack.c.b16 %v532, %v530
      %v609 = vpack.c.b16 %v535, %v533
      %v610 = vpack.c.b16 %v536, %v534
      %v611 = vpack.c.b16 %v539, %v537
      %v612 = vpack.c.b16 %v540, %v538
      %v613 = vpack.c.b16 %v543, %v541
      %v614 = vpack.c.b16 %v544, %v542
      %v615 = vpack.c.b16 %v547, %v545
      %v616 = vpack.c.b16 %v548, %v546
      %v617 = vpack.c.b16 %v551, %v549
      %v618 = vpack.c.b16 %v552, %v550
      %v619 = vpack.c.b16 %v555, %v553
      %v620 = vpack.c.b16 %v556, %v554
      %v621 = vpack.c.b16 %v559, %v557
      %v622 = vpack.c.b16 %v560, %v558
      %v623 = vpack.c.b16 %v563, %v561
      %v624 = vpack.c.b16 %v564, %v562
      %v625 = vpack.c.b16 %v567, %v565
      %v626 = vpack.c.b16 %v568, %v566
      %v627 = vpack.c.b16 %v571, %v569
      %v628 = vpack.c.b16 %v572, %v570
      %v629 = vpack.c.b16 %v575, %v573
      %v630 = vpack.c.b16 %v576, %v574
      %v631 = vpack.c.b16 %v579, %v577
      %v632 = vpack.c.b16 %v580, %v578
      %v633 = vpack.c.b16 %v583, %v581
      %v634 = vpack.c.b16 %v584, %v582
      %v635 = vpack.c.b16 %v587, %v585
      %v636 = vpack.c.b16 %v588, %v586
      %v701 = vunpack.c.l.b16 %v388
      %v702 = vunpack.c.h.b16 %v388
      %v703 = vunpack.c.l.b16 %v389
      %v704 = vunpack.c.l.b16 %v390
      %v705 = vunpack.c.h.b16 %v390
      %v706 = vunpack.c.l.b16 %v391
      %v707 = vunpack.c.l.b16 %v392
      %v708 = vunpack.c.h.b16 %v392
      %v709 = vunpack.c.l.b16 %v393
      %v710 = vunpack.c.l.b16 %v394
      %v711 = vunpack.c.h.b16 %v394
      %v712 = vunpack.c.l.b16 %v395
      %v713 = vunpack.c.l.b16 %v396
      %v714 = vunpack.c.h.b16 %v396
      %v715 = vunpack.c.l.b16 %v397
      %v716 = vunpack.c.l.b16 %v398
      %v717 = vunpack.c.h.b16 %v398
      %v718 = vunpack.c.l.b16 %v399
      %v719 = vunpack.c.l.b16 %v400
      %v720 = vunpack.c.h.b16 %v400
      %v721 = vunpack.c.l.b16 %v401
      %v722 = vunpack.c.l.b16 %v402
      %v723 = vunpack.c.h.b16 %v402
      %v724 = vunpack.c.l.b16 %v403
      %v725 = vunpack.c.l.b16 %v404
      %v726 = vunpack.c.h.b16 %v404
      %v727 = vunpack.c.l.b16 %v405
      %v728 = vunpack.c.l.b16 %v406
      %v729 = vunpack.c.h.b16 %v406
      %v730 = vunpack.c.l.b16 %v407
      %v731 = vunpack.c.l.b16 %v408
      %v732 = vunpack.c.h.b16 %v408
      %v733 = vunpack.c.l.b16 %v409
      %v734 = vunpack.c.l.b16 %v410
      %v735 = vunpack.c.h.b16 %v410
      %v736 = vunpack.c.l.b16 %v411
      %v737 = vunpack.c.l.b16 %v412
      %v738 = vunpack.c.h.b16 %v412
      %v739 = vunpack.c.l.b16 %v413
      %v740 = vunpack.c.l.b16 %v414
      %v741 = vunpack.c.h.b16 %v414
      %v742 = vunpack.c.l.b16 %v415
      %v743 = vunpack.c.l.b16 %v416
      %v744 = vunpack.c.h.b16 %v416
      %v745 = vunpack.c.l.b16 %v417
      %v746 = vunpack.c.l.b16 %v418
      %v747 = vunpack.c.h.b16 %v418
      %v748 = vunpack.c.l.b16 %v419
      %v749 = vunpack.c.l.b16 %v420
      %v750 = vunpack.c.h.b16 %v420
      %v751 = vunpack.c.l.b16 %v421
      %v752 = vunpack.c.l.b16 %v422
      %v753 = vunpack.c.h.b16 %v422
      %v754 = vunpack.c.l.b16 %v423
      %v755 = vunpack.c.l.b16 %v424
      %v756 = vunpack.c.h.b16 %v424
      %v757 = vunpack.c.l.b16 %v425
      %v758 = vunpack.c.l.b16 %v426
      %v759 = vunpack.c.h.b16 %v426
      %v760 = vunpack.c.l.b16 %v427
      %v761 = vpack.c.b16 %v704, %v701
      %v762 = vpack.c.b16 %v705, %v702
      %v763 = vpack.c.b16 %v706, %v703
      %v764 = vpack.c.b16 %v710, %v707
      %v765 = vpack.c.b16 %v711, %v708
      %v766 = vpack.c.b16 %v712, %v709
      %v767 = vpack.c.b16 %v716, %v713
      %v768 = vpack.c.b16 %v717, %v714
      %v769 = vpack.c.b16 %v718, %v715
      %v770 = vpack.c.b16 %v722, %v719
      %v771 = vpack.c.b16 %v723, %v720
      %v772 = vpack.c.b16 %v724, %v721
      %v773 = vpack.c.b16 %v728, %v725
      %v774 = vpack.c.b16 %v729, %v726
      %v775 = vpack.c.b16 %v730, %v727
      %v776 = vpack.c.b16 %v734, %v731
      %v777 = vpack.c.b16 %v735, %v732
      %v778 = vpack.c.b16 %v736, %v733
      %v779 = vpack.c.b16 %v740, %v737
      %v780 = vpack.c.b16 %v741, %v738
      %v781 = vpack.c.b16 %v742, %v739
      %v782 = vpack.c.b16 %v746, %v743
      %v783 = vpack.c.b16 %v747, %v744
      %v784 = vpack.c.b16 %v748, %v745
      %v785 = vpack.c.b16 %v752, %v749
      %v786 = vpack.c.b16 %v753, %v750
      %v787 = vpack.c.b16 %v754, %v751
      %v788 = vpack.c.b16 %v758, %v755
      %v789 = vpack.c.b16 %v759, %v756
      %v790 = vpack.c.b16 %v760, %v757
      %vm821 = vcmask 261120
      %v823 = vsel %vm821, %v590, 0
      %v826 = vsel %vm821, %v592, 0
      %v829 = vsel %vm821, %v594, 0
      %v832 = vsel %vm821, %v596, 0
      %v835 = vsel %vm821, %v598, 0
      %v838 = vsel %vm821, %v600, 0
      %v841 = vsel %vm821, %v602, 0
      %v844 = vsel %vm821, %v604, 0
      %v847 = vsel %vm821, %v606, 0
      %v850 = vsel %vm821, %v608, 0
      %v853 = vsel %vm821, %v610, 0
      %v856 = vsel %vm821, %v612, 0
      %v859 = vsel %vm821, %v614, 0
      %v862 = vsel %vm821, %v616, 0
      %v865 = vsel %vm821, %v618, 0
      %v868 = vsel %vm821, %v620, 0
      %v871 = vsel %vm821, %v622, 0
      %v874 = vsel %vm821, %v624, 0
      %v877 = vsel %vm821, %v626, 0
      %v880 = vsel %vm821, %v628, 0
      %v883 = vsel %vm821, %v630, 0
      %v886 = vsel %vm821, %v632, 0
      %v889 = vsel %vm821, %v634, 0
      %v892 = vsel %vm821, %v636, 0
      %894 = vmatprep.subr.bf16.mxu0 %v783
      %895 = vmatpush1.bf16.msra.mxu0 %v782
      %896 = vmatprep.subr.bf16.mxu0 %v780
      %897 = vmatpush1.bf16.msra.mxu0 %v779
      %898 = vmatprep.subr.bf16.mxu0 %v777
      %899 = vmatpush1.bf16.msra.mxu0 %v776
      %900 = vmatprep.subr.bf16.mxu0 %v774
      %901 = vmatpush1.bf16.msra.mxu0 %v773
      %902 = vmatprep.subr.bf16.mxu0 %v771
      %903 = vmatpush1.bf16.msra.mxu0 %v770
      %904 = vmatprep.subr.bf16.mxu0 %v768
      %905 = vmatpush1.bf16.msra.mxu0 %v767
      %906 = vmatprep.subr.bf16.mxu0 %v765
      %907 = vmatpush1.bf16.msra.mxu0 %v764
      %908 = vmatprep.subr.bf16.mxu0 %v762
      %909 = vmatpush1.bf16.msra.mxu0 %v761
      %910 = vmatprep.subr.bf16.mxu0 0
      %911 = vmatpush2.bf16.msra.mxu0 0
      %912 = vmatprep.subr.bf16.mxu0 0
      %913 = vmatpush2.bf16.msra.mxu0 0
      %914 = vmatprep.subr.bf16.mxu0 0
      %915 = vmatpush2.bf16.msra.mxu0 0
      %916 = vmatprep.subr.bf16.mxu0 0
      %917 = vmatpush2.bf16.msra.mxu0 0
      %918 = vmatprep.subr.bf16.mxu0 0
      %919 = vmatpush2.bf16.msra.mxu0 0
      %920 = vmatprep.subr.bf16.mxu0 0
      %921 = vmatpush2.bf16.msra.mxu0 0
      %922 = vmatprep.subr.bf16.mxu0 %v789
      %923 = vmatpush2.bf16.msra.mxu0 %v788
      %924 = vmatprep.subr.bf16.mxu0 %v786
      %925 = vmatpush2.bf16.msra.mxu0 %v785
      %926 = vmatprep.mubr.bf16.mxu0 %v823
      %927 = vmatmul.mubr.bf16.gmra.mxu0 %v589
      %v928 = vpop.f32.mrf.mxu0
      %v929 = vadd.f32 %v433, %v928
      %v930 = vpop.f32.mrf.mxu0
      %v931 = vadd.f32 %v437, %v930
      %v932 = vpop.f32.mrf.mxu0
      %v933 = vadd.f32 %v433, %v932
      %v934 = vpop.f32.mrf.mxu0
      %v935 = vadd.f32 %v437, %v934
      %936 = vmatprep.mubr.bf16.mxu0 %v826
      %937 = vmatmul.mubr.bf16.gmra.mxu0 %v591
      %v938 = vpop.f32.mrf.mxu0
      %v939 = vadd.f32 %v433, %v938
      %v940 = vpop.f32.mrf.mxu0
      %v941 = vadd.f32 %v437, %v940
      %v942 = vpop.f32.mrf.mxu0
      %v943 = vadd.f32 %v433, %v942
      %v944 = vpop.f32.mrf.mxu0
      %v945 = vadd.f32 %v437, %v944
      %946 = vmatprep.mubr.bf16.mxu0 %v829
      %947 = vmatmul.mubr.bf16.gmra.mxu0 %v593
      %v948 = vpop.f32.mrf.mxu0
      %v949 = vadd.f32 %v433, %v948
      %v950 = vpop.f32.mrf.mxu0
      %v951 = vadd.f32 %v437, %v950
      %v952 = vpop.f32.mrf.mxu0
      %v953 = vadd.f32 %v433, %v952
      %v954 = vpop.f32.mrf.mxu0
      %v955 = vadd.f32 %v437, %v954
      %956 = vmatprep.mubr.bf16.mxu0 %v832
      %957 = vmatmul.mubr.bf16.gmra.mxu0 %v595
      %v958 = vpop.f32.mrf.mxu0
      %v959 = vadd.f32 %v433, %v958
      %v960 = vpop.f32.mrf.mxu0
      %v961 = vadd.f32 %v437, %v960
      %v962 = vpop.f32.mrf.mxu0
      %v963 = vadd.f32 %v433, %v962
      %v964 = vpop.f32.mrf.mxu0
      %v965 = vadd.f32 %v437, %v964
      %966 = vmatprep.mubr.bf16.mxu0 %v835
      %967 = vmatmul.mubr.bf16.gmra.mxu0 %v597
      %v968 = vpop.f32.mrf.mxu0
      %v969 = vadd.f32 %v433, %v968
      %v970 = vpop.f32.mrf.mxu0
      %v971 = vadd.f32 %v437, %v970
      %v972 = vpop.f32.mrf.mxu0
      %v973 = vadd.f32 %v433, %v972
      %v974 = vpop.f32.mrf.mxu0
      %v975 = vadd.f32 %v437, %v974
      %976 = vmatprep.mubr.bf16.mxu0 %v838
      %977 = vmatmul.mubr.bf16.gmra.mxu0 %v599
      %v978 = vpop.f32.mrf.mxu0
      %v979 = vadd.f32 %v433, %v978
      %v980 = vpop.f32.mrf.mxu0
      %v981 = vadd.f32 %v437, %v980
      %v982 = vpop.f32.mrf.mxu0
      %v983 = vadd.f32 %v433, %v982
      %v984 = vpop.f32.mrf.mxu0
      %v985 = vadd.f32 %v437, %v984
      %986 = vmatprep.mubr.bf16.mxu0 %v841
      %987 = vmatmul.mubr.bf16.gmra.mxu0 %v601
      %v988 = vpop.f32.mrf.mxu0
      %v989 = vadd.f32 %v433, %v988
      %v990 = vpop.f32.mrf.mxu0
      %v991 = vadd.f32 %v437, %v990
      %v992 = vpop.f32.mrf.mxu0
      %v993 = vadd.f32 %v433, %v992
      %v994 = vpop.f32.mrf.mxu0
      %v995 = vadd.f32 %v437, %v994
      %996 = vmatprep.mubr.bf16.mxu0 %v844
      %997 = vmatmul.mubr.bf16.gmra.mxu0 %v603
      %v998 = vpop.f32.mrf.mxu0
      %v999 = vadd.f32 %v433, %v998
      %v1000 = vpop.f32.mrf.mxu0
      %v1001 = vadd.f32 %v437, %v1000
      %v1002 = vpop.f32.mrf.mxu0
      %v1003 = vadd.f32 %v433, %v1002
      %v1004 = vpop.f32.mrf.mxu0
      %v1005 = vadd.f32 %v437, %v1004
      %1006 = vmatprep.mubr.bf16.mxu0 %v847
      %1007 = vmatmul.mubr.bf16.gmra.mxu0 %v605
      %v1008 = vpop.f32.mrf.mxu0
      %v1009 = vadd.f32 %v433, %v1008
      %v1010 = vpop.f32.mrf.mxu0
      %v1011 = vadd.f32 %v437, %v1010
      %v1012 = vpop.f32.mrf.mxu0
      %v1013 = vadd.f32 %v433, %v1012
      %v1014 = vpop.f32.mrf.mxu0
      %v1015 = vadd.f32 %v437, %v1014
      %1016 = vmatprep.mubr.bf16.mxu0 %v850
      %1017 = vmatmul.mubr.bf16.gmra.mxu0 %v607
      %v1018 = vpop.f32.mrf.mxu0
      %v1019 = vadd.f32 %v433, %v1018
      %v1020 = vpop.f32.mrf.mxu0
      %v1021 = vadd.f32 %v437, %v1020
      %v1022 = vpop.f32.mrf.mxu0
      %v1023 = vadd.f32 %v433, %v1022
      %v1024 = vpop.f32.mrf.mxu0
      %v1025 = vadd.f32 %v437, %v1024
      %1026 = vmatprep.mubr.bf16.mxu0 %v853
      %1027 = vmatmul.mubr.bf16.gmra.mxu0 %v609
      %v1028 = vpop.f32.mrf.mxu0
      %v1029 = vadd.f32 %v433, %v1028
      %v1030 = vpop.f32.mrf.mxu0
      %v1031 = vadd.f32 %v437, %v1030
      %v1032 = vpop.f32.mrf.mxu0
      %v1033 = vadd.f32 %v433, %v1032
      %v1034 = vpop.f32.mrf.mxu0
      %v1035 = vadd.f32 %v437, %v1034
      %1036 = vmatprep.mubr.bf16.mxu0 %v856
      %1037 = vmatmul.mubr.bf16.gmra.mxu0 %v611
      %v1038 = vpop.f32.mrf.mxu0
      %v1039 = vadd.f32 %v433, %v1038
      %v1040 = vpop.f32.mrf.mxu0
      %v1041 = vadd.f32 %v437, %v1040
      %v1042 = vpop.f32.mrf.mxu0
      %v1043 = vadd.f32 %v433, %v1042
      %v1044 = vpop.f32.mrf.mxu0
      %v1045 = vadd.f32 %v437, %v1044
      %1046 = vmatprep.mubr.bf16.mxu0 %v859
      %1047 = vmatmul.mubr.bf16.gmra.mxu0 %v613
      %v1048 = vpop.f32.mrf.mxu0
      %v1049 = vadd.f32 %v433, %v1048
      %v1050 = vpop.f32.mrf.mxu0
      %v1051 = vadd.f32 %v437, %v1050
      %v1052 = vpop.f32.mrf.mxu0
      %v1053 = vadd.f32 %v433, %v1052
      %v1054 = vpop.f32.mrf.mxu0
      %v1055 = vadd.f32 %v437, %v1054
      %1056 = vmatprep.mubr.bf16.mxu0 %v862
      %1057 = vmatmul.mubr.bf16.gmra.mxu0 %v615
      %v1058 = vpop.f32.mrf.mxu0
      %v1059 = vadd.f32 %v433, %v1058
      %v1060 = vpop.f32.mrf.mxu0
      %v1061 = vadd.f32 %v437, %v1060
      %v1062 = vpop.f32.mrf.mxu0
      %v1063 = vadd.f32 %v433, %v1062
      %v1064 = vpop.f32.mrf.mxu0
      %v1065 = vadd.f32 %v437, %v1064
      %1066 = vmatprep.mubr.bf16.mxu0 %v865
      %1067 = vmatmul.mubr.bf16.gmra.mxu0 %v617
      %v1068 = vpop.f32.mrf.mxu0
      %v1069 = vadd.f32 %v433, %v1068
      %v1070 = vpop.f32.mrf.mxu0
      %v1071 = vadd.f32 %v437, %v1070
      %v1072 = vpop.f32.mrf.mxu0
      %v1073 = vadd.f32 %v433, %v1072
      %v1074 = vpop.f32.mrf.mxu0
      %v1075 = vadd.f32 %v437, %v1074
      %1076 = vmatprep.mubr.bf16.mxu0 %v868
      %1077 = vmatmul.mubr.bf16.gmra.mxu0 %v619
      %v1078 = vpop.f32.mrf.mxu0
      %v1079 = vadd.f32 %v433, %v1078
      %v1080 = vpop.f32.mrf.mxu0
      %v1081 = vadd.f32 %v437, %v1080
      %v1082 = vpop.f32.mrf.mxu0
      %v1083 = vadd.f32 %v433, %v1082
      %v1084 = vpop.f32.mrf.mxu0
      %v1085 = vadd.f32 %v437, %v1084
      %1086 = vmatprep.mubr.bf16.mxu0 %v871
      %1087 = vmatmul.mubr.bf16.gmra.mxu0 %v621
      %v1088 = vpop.f32.mrf.mxu0
      %v1089 = vadd.f32 %v433, %v1088
      %v1090 = vpop.f32.mrf.mxu0
      %v1091 = vadd.f32 %v437, %v1090
      %v1092 = vpop.f32.mrf.mxu0
      %v1093 = vadd.f32 %v433, %v1092
      %v1094 = vpop.f32.mrf.mxu0
      %v1095 = vadd.f32 %v437, %v1094
      %1096 = vmatprep.mubr.bf16.mxu0 %v874
      %1097 = vmatmul.mubr.bf16.gmra.mxu0 %v623
      %v1098 = vpop.f32.mrf.mxu0
      %v1099 = vadd.f32 %v433, %v1098
      %v1100 = vpop.f32.mrf.mxu0
      %v1101 = vadd.f32 %v437, %v1100
      %v1102 = vpop.f32.mrf.mxu0
      %v1103 = vadd.f32 %v433, %v1102
      %v1104 = vpop.f32.mrf.mxu0
      %v1105 = vadd.f32 %v437, %v1104
      %1106 = vmatprep.mubr.bf16.mxu0 %v877
      %1107 = vmatmul.mubr.bf16.gmra.mxu0 %v625
      %v1108 = vpop.f32.mrf.mxu0
      %v1109 = vadd.f32 %v433, %v1108
      %v1110 = vpop.f32.mrf.mxu0
      %v1111 = vadd.f32 %v437, %v1110
      %v1112 = vpop.f32.mrf.mxu0
      %v1113 = vadd.f32 %v433, %v1112
      %v1114 = vpop.f32.mrf.mxu0
      %v1115 = vadd.f32 %v437, %v1114
      %1116 = vmatprep.mubr.bf16.mxu0 %v880
      %1117 = vmatmul.mubr.bf16.gmra.mxu0 %v627
      %v1118 = vpop.f32.mrf.mxu0
      %v1119 = vadd.f32 %v433, %v1118
      %v1120 = vpop.f32.mrf.mxu0
      %v1121 = vadd.f32 %v437, %v1120
      %v1122 = vpop.f32.mrf.mxu0
      %v1123 = vadd.f32 %v433, %v1122
      %v1124 = vpop.f32.mrf.mxu0
      %v1125 = vadd.f32 %v437, %v1124
      %1126 = vmatprep.mubr.bf16.mxu0 %v883
      %1127 = vmatmul.mubr.bf16.gmra.mxu0 %v629
      %v1128 = vpop.f32.mrf.mxu0
      %v1129 = vadd.f32 %v433, %v1128
      %v1130 = vpop.f32.mrf.mxu0
      %v1131 = vadd.f32 %v437, %v1130
      %v1132 = vpop.f32.mrf.mxu0
      %v1133 = vadd.f32 %v433, %v1132
      %v1134 = vpop.f32.mrf.mxu0
      %v1135 = vadd.f32 %v437, %v1134
      %1136 = vmatprep.mubr.bf16.mxu0 %v886
      %1137 = vmatmul.mubr.bf16.gmra.mxu0 %v631
      %v1138 = vpop.f32.mrf.mxu0
      %v1139 = vadd.f32 %v433, %v1138
      %v1140 = vpop.f32.mrf.mxu0
      %v1141 = vadd.f32 %v437, %v1140
      %v1142 = vpop.f32.mrf.mxu0
      %v1143 = vadd.f32 %v433, %v1142
      %v1144 = vpop.f32.mrf.mxu0
      %v1145 = vadd.f32 %v437, %v1144
      %1146 = vmatprep.mubr.bf16.mxu0 %v889
      %1147 = vmatmul.mubr.bf16.gmra.mxu0 %v633
      %v1148 = vpop.f32.mrf.mxu0
      %v1149 = vadd.f32 %v433, %v1148
      %v1150 = vpop.f32.mrf.mxu0
      %v1151 = vadd.f32 %v437, %v1150
      %v1152 = vpop.f32.mrf.mxu0
      %v1153 = vadd.f32 %v433, %v1152
      %v1154 = vpop.f32.mrf.mxu0
      %v1155 = vadd.f32 %v437, %v1154
      %1156 = vmatprep.mubr.bf16.mxu0 %v892
      %1157 = vmatmul.mubr.bf16.gmra.mxu0 %v635
      %v1158 = vpop.f32.mrf.mxu0
      %v1159 = vadd.f32 %v433, %v1158
      %v1160 = vpop.f32.mrf.mxu0
      %v1161 = vadd.f32 %v437, %v1160
      %v1162 = vpop.f32.mrf.mxu0
      %v1163 = vadd.f32 %v433, %v1162
      %v1164 = vpop.f32.mrf.mxu0
      %v1165 = vadd.f32 %v437, %v1164
      %1166 = vdwg.mxu0
      %1167 = vmatprep.subr.bf16.mxu0 0
      %1168 = vmatpush1.bf16.msra.mxu0 %v784
      %1169 = vmatprep.subr.bf16.mxu0 0
      %1170 = vmatpush1.bf16.msra.mxu0 %v781
      %1171 = vmatprep.subr.bf16.mxu0 0
      %1172 = vmatpush1.bf16.msra.mxu0 %v778
      %1173 = vmatprep.subr.bf16.mxu0 0
      %1174 = vmatpush1.bf16.msra.mxu0 %v775
      %1175 = vmatprep.subr.bf16.mxu0 0
      %1176 = vmatpush1.bf16.msra.mxu0 %v772
      %1177 = vmatprep.subr.bf16.mxu0 0
      %1178 = vmatpush1.bf16.msra.mxu0 %v769
      %1179 = vmatprep.subr.bf16.mxu0 0
      %1180 = vmatpush1.bf16.msra.mxu0 %v766
      %1181 = vmatprep.subr.bf16.mxu0 0
      %1182 = vmatpush1.bf16.msra.mxu0 %v763
      %1183 = vmatprep.subr.bf16.mxu0 0
      %1184 = vmatpush2.bf16.msra.mxu0 0
      %1185 = vmatprep.subr.bf16.mxu0 0
      %1186 = vmatpush2.bf16.msra.mxu0 0
      %1187 = vmatprep.subr.bf16.mxu0 0
      %1188 = vmatpush2.bf16.msra.mxu0 0
      %1189 = vmatprep.subr.bf16.mxu0 0
      %1190 = vmatpush2.bf16.msra.mxu0 0
      %1191 = vmatprep.subr.bf16.mxu0 0
      %1192 = vmatpush2.bf16.msra.mxu0 0
      %1193 = vmatprep.subr.bf16.mxu0 0
      %1194 = vmatpush2.bf16.msra.mxu0 0
      %1195 = vmatprep.subr.bf16.mxu0 0
      %1196 = vmatpush2.bf16.msra.mxu0 %v790
      %1197 = vmatprep.subr.bf16.mxu0 0
      %1198 = vmatpush2.bf16.msra.mxu0 %v787
      %1199 = vmatprep.mubr.bf16.mxu0 %v823
      %1200 = vmatmul.mubr.bf16.gmra.mxu0 %v589
      %v1201 = vpop.f32.mrf.mxu0
      %v1202 = vadd.f32 %v441, %v1201
      %v1203 = vpop.f32.mrf.mxu0
      %v1204 = vpop.f32.mrf.mxu0
      %v1205 = vadd.f32 %v441, %v1204
      %v1206 = vpop.f32.mrf.mxu0
      %1207 = vmatprep.mubr.bf16.mxu0 %v826
      %1208 = vmatmul.mubr.bf16.gmra.mxu0 %v591
      %v1209 = vpop.f32.mrf.mxu0
      %v1210 = vadd.f32 %v441, %v1209
      %v1211 = vpop.f32.mrf.mxu0
      %v1212 = vpop.f32.mrf.mxu0
      %v1213 = vadd.f32 %v441, %v1212
      %v1214 = vpop.f32.mrf.mxu0
      %1215 = vmatprep.mubr.bf16.mxu0 %v829
      %1216 = vmatmul.mubr.bf16.gmra.mxu0 %v593
      %v1217 = vpop.f32.mrf.mxu0
      %v1218 = vadd.f32 %v441, %v1217
      %v1219 = vpop.f32.mrf.mxu0
      %v1220 = vpop.f32.mrf.mxu0
      %v1221 = vadd.f32 %v441, %v1220
      %v1222 = vpop.f32.mrf.mxu0
      %1223 = vmatprep.mubr.bf16.mxu0 %v832
      %1224 = vmatmul.mubr.bf16.gmra.mxu0 %v595
      %v1225 = vpop.f32.mrf.mxu0
      %v1226 = vadd.f32 %v441, %v1225
      %v1227 = vpop.f32.mrf.mxu0
      %v1228 = vpop.f32.mrf.mxu0
      %v1229 = vadd.f32 %v441, %v1228
      %v1230 = vpop.f32.mrf.mxu0
      %1231 = vmatprep.mubr.bf16.mxu0 %v835
      %1232 = vmatmul.mubr.bf16.gmra.mxu0 %v597
      %v1233 = vpop.f32.mrf.mxu0
      %v1234 = vadd.f32 %v441, %v1233
      %v1235 = vpop.f32.mrf.mxu0
      %v1236 = vpop.f32.mrf.mxu0
      %v1237 = vadd.f32 %v441, %v1236
      %v1238 = vpop.f32.mrf.mxu0
      %1239 = vmatprep.mubr.bf16.mxu0 %v838
      %1240 = vmatmul.mubr.bf16.gmra.mxu0 %v599
      %v1241 = vpop.f32.mrf.mxu0
      %v1242 = vadd.f32 %v441, %v1241
      %v1243 = vpop.f32.mrf.mxu0
      %v1244 = vpop.f32.mrf.mxu0
      %v1245 = vadd.f32 %v441, %v1244
      %v1246 = vpop.f32.mrf.mxu0
      %1247 = vmatprep.mubr.bf16.mxu0 %v841
      %1248 = vmatmul.mubr.bf16.gmra.mxu0 %v601
      %v1249 = vpop.f32.mrf.mxu0
      %v1250 = vadd.f32 %v441, %v1249
      %v1251 = vpop.f32.mrf.mxu0
      %v1252 = vpop.f32.mrf.mxu0
      %v1253 = vadd.f32 %v441, %v1252
      %v1254 = vpop.f32.mrf.mxu0
      %1255 = vmatprep.mubr.bf16.mxu0 %v844
      %1256 = vmatmul.mubr.bf16.gmra.mxu0 %v603
      %v1257 = vpop.f32.mrf.mxu0
      %v1258 = vadd.f32 %v441, %v1257
      %v1259 = vpop.f32.mrf.mxu0
      %v1260 = vpop.f32.mrf.mxu0
      %v1261 = vadd.f32 %v441, %v1260
      %v1262 = vpop.f32.mrf.mxu0
      %1263 = vmatprep.mubr.bf16.mxu0 %v847
      %1264 = vmatmul.mubr.bf16.gmra.mxu0 %v605
      %v1265 = vpop.f32.mrf.mxu0
      %v1266 = vadd.f32 %v441, %v1265
      %v1267 = vpop.f32.mrf.mxu0
      %v1268 = vpop.f32.mrf.mxu0
      %v1269 = vadd.f32 %v441, %v1268
      %v1270 = vpop.f32.mrf.mxu0
      %1271 = vmatprep.mubr.bf16.mxu0 %v850
      %1272 = vmatmul.mubr.bf16.gmra.mxu0 %v607
      %v1273 = vpop.f32.mrf.mxu0
      %v1274 = vadd.f32 %v441, %v1273
      %v1275 = vpop.f32.mrf.mxu0
      %v1276 = vpop.f32.mrf.mxu0
      %v1277 = vadd.f32 %v441, %v1276
      %v1278 = vpop.f32.mrf.mxu0
      %1279 = vmatprep.mubr.bf16.mxu0 %v853
      %1280 = vmatmul.mubr.bf16.gmra.mxu0 %v609
      %v1281 = vpop.f32.mrf.mxu0
      %v1282 = vadd.f32 %v441, %v1281
      %v1283 = vpop.f32.mrf.mxu0
      %v1284 = vpop.f32.mrf.mxu0
      %v1285 = vadd.f32 %v441, %v1284
      %v1286 = vpop.f32.mrf.mxu0
      %1287 = vmatprep.mubr.bf16.mxu0 %v856
      %1288 = vmatmul.mubr.bf16.gmra.mxu0 %v611
      %v1289 = vpop.f32.mrf.mxu0
      %v1290 = vadd.f32 %v441, %v1289
      %v1291 = vpop.f32.mrf.mxu0
      %v1292 = vpop.f32.mrf.mxu0
      %v1293 = vadd.f32 %v441, %v1292
      %v1294 = vpop.f32.mrf.mxu0
      %1295 = vmatprep.mubr.bf16.mxu0 %v859
      %1296 = vmatmul.mubr.bf16.gmra.mxu0 %v613
      %v1297 = vpop.f32.mrf.mxu0
      %v1298 = vadd.f32 %v441, %v1297
      %v1299 = vpop.f32.mrf.mxu0
      %v1300 = vpop.f32.mrf.mxu0
      %v1301 = vadd.f32 %v441, %v1300
      %v1302 = vpop.f32.mrf.mxu0
      %1303 = vmatprep.mubr.bf16.mxu0 %v862
      %1304 = vmatmul.mubr.bf16.gmra.mxu0 %v615
      %v1305 = vpop.f32.mrf.mxu0
      %v1306 = vadd.f32 %v441, %v1305
      %v1307 = vpop.f32.mrf.mxu0
      %v1308 = vpop.f32.mrf.mxu0
      %v1309 = vadd.f32 %v441, %v1308
      %v1310 = vpop.f32.mrf.mxu0
      %1311 = vmatprep.mubr.bf16.mxu0 %v865
      %1312 = vmatmul.mubr.bf16.gmra.mxu0 %v617
      %v1313 = vpop.f32.mrf.mxu0
      %v1314 = vadd.f32 %v441, %v1313
      %v1315 = vpop.f32.mrf.mxu0
      %v1316 = vpop.f32.mrf.mxu0
      %v1317 = vadd.f32 %v441, %v1316
      %v1318 = vpop.f32.mrf.mxu0
      %1319 = vmatprep.mubr.bf16.mxu0 %v868
      %1320 = vmatmul.mubr.bf16.gmra.mxu0 %v619
      %v1321 = vpop.f32.mrf.mxu0
      %v1322 = vadd.f32 %v441, %v1321
      %v1323 = vpop.f32.mrf.mxu0
      %v1324 = vpop.f32.mrf.mxu0
      %v1325 = vadd.f32 %v441, %v1324
      %v1326 = vpop.f32.mrf.mxu0
      %1327 = vmatprep.mubr.bf16.mxu0 %v871
      %1328 = vmatmul.mubr.bf16.gmra.mxu0 %v621
      %v1329 = vpop.f32.mrf.mxu0
      %v1330 = vadd.f32 %v441, %v1329
      %v1331 = vpop.f32.mrf.mxu0
      %v1332 = vpop.f32.mrf.mxu0
      %v1333 = vadd.f32 %v441, %v1332
      %v1334 = vpop.f32.mrf.mxu0
      %1335 = vmatprep.mubr.bf16.mxu0 %v874
      %1336 = vmatmul.mubr.bf16.gmra.mxu0 %v623
      %v1337 = vpop.f32.mrf.mxu0
      %v1338 = vadd.f32 %v441, %v1337
      %v1339 = vpop.f32.mrf.mxu0
      %v1340 = vpop.f32.mrf.mxu0
      %v1341 = vadd.f32 %v441, %v1340
      %v1342 = vpop.f32.mrf.mxu0
      %1343 = vmatprep.mubr.bf16.mxu0 %v877
      %1344 = vmatmul.mubr.bf16.gmra.mxu0 %v625
      %v1345 = vpop.f32.mrf.mxu0
      %v1346 = vadd.f32 %v441, %v1345
      %v1347 = vpop.f32.mrf.mxu0
      %v1348 = vpop.f32.mrf.mxu0
      %v1349 = vadd.f32 %v441, %v1348
      %v1350 = vpop.f32.mrf.mxu0
      %1351 = vmatprep.mubr.bf16.mxu0 %v880
      %1352 = vmatmul.mubr.bf16.gmra.mxu0 %v627
      %v1353 = vpop.f32.mrf.mxu0
      %v1354 = vadd.f32 %v441, %v1353
      %v1355 = vpop.f32.mrf.mxu0
      %v1356 = vpop.f32.mrf.mxu0
      %v1357 = vadd.f32 %v441, %v1356
      %v1358 = vpop.f32.mrf.mxu0
      %1359 = vmatprep.mubr.bf16.mxu0 %v883
      %1360 = vmatmul.mubr.bf16.gmra.mxu0 %v629
      %v1361 = vpop.f32.mrf.mxu0
      %v1362 = vadd.f32 %v441, %v1361
      %v1363 = vpop.f32.mrf.mxu0
      %v1364 = vpop.f32.mrf.mxu0
      %v1365 = vadd.f32 %v441, %v1364
      %v1366 = vpop.f32.mrf.mxu0
      %1367 = vmatprep.mubr.bf16.mxu0 %v886
      %1368 = vmatmul.mubr.bf16.gmra.mxu0 %v631
      %v1369 = vpop.f32.mrf.mxu0
      %v1370 = vadd.f32 %v441, %v1369
      %v1371 = vpop.f32.mrf.mxu0
      %v1372 = vpop.f32.mrf.mxu0
      %v1373 = vadd.f32 %v441, %v1372
      %v1374 = vpop.f32.mrf.mxu0
      %1375 = vmatprep.mubr.bf16.mxu0 %v889
      %1376 = vmatmul.mubr.bf16.gmra.mxu0 %v633
      %v1377 = vpop.f32.mrf.mxu0
      %v1378 = vadd.f32 %v441, %v1377
      %v1379 = vpop.f32.mrf.mxu0
      %v1380 = vpop.f32.mrf.mxu0
      %v1381 = vadd.f32 %v441, %v1380
      %v1382 = vpop.f32.mrf.mxu0
      %1383 = vmatprep.mubr.bf16.mxu0 %v892
      %1384 = vmatmul.mubr.bf16.gmra.mxu0 %v635
      %v1385 = vpop.f32.mrf.mxu0
      %v1386 = vadd.f32 %v441, %v1385
      %v1387 = vpop.f32.mrf.mxu0
      %v1388 = vpop.f32.mrf.mxu0
      %v1389 = vadd.f32 %v441, %v1388
      %v1390 = vpop.f32.mrf.mxu0
      %1391 = vdwg.mxu0
      %v1392 = vmax.f32 %v929, 0.0
      %v1393 = vmax.f32 %v931, 0.0
      %v1394 = vmax.f32 %v1202, 0.0
      %v1395 = vmax.f32 %v933, 0.0
      %v1396 = vmax.f32 %v935, 0.0
      %v1397 = vmax.f32 %v1205, 0.0
      %v1398 = vmax.f32 %v939, 0.0
      %v1399 = vmax.f32 %v941, 0.0
      %v1400 = vmax.f32 %v1210, 0.0
      %v1401 = vmax.f32 %v943, 0.0
      %v1402 = vmax.f32 %v945, 0.0
      %v1403 = vmax.f32 %v1213, 0.0
      %v1404 = vmax.f32 %v949, 0.0
      %v1405 = vmax.f32 %v951, 0.0
      %v1406 = vmax.f32 %v1218, 0.0
      %v1407 = vmax.f32 %v953, 0.0
      %v1408 = vmax.f32 %v955, 0.0
      %v1409 = vmax.f32 %v1221, 0.0
      %v1410 = vmax.f32 %v959, 0.0
      %v1411 = vmax.f32 %v961, 0.0
      %v1412 = vmax.f32 %v1226, 0.0
      %v1413 = vmax.f32 %v963, 0.0
      %v1414 = vmax.f32 %v965, 0.0
      %v1415 = vmax.f32 %v1229, 0.0
      %v1416 = vmax.f32 %v969, 0.0
      %v1417 = vmax.f32 %v971, 0.0
      %v1418 = vmax.f32 %v1234, 0.0
      %v1419 = vmax.f32 %v973, 0.0
      %v1420 = vmax.f32 %v975, 0.0
      %v1421 = vmax.f32 %v1237, 0.0
      %v1422 = vmax.f32 %v979, 0.0
      %v1423 = vmax.f32 %v981, 0.0
      %v1424 = vmax.f32 %v1242, 0.0
      %v1425 = vmax.f32 %v983, 0.0
      %v1426 = vmax.f32 %v985, 0.0
      %v1427 = vmax.f32 %v1245, 0.0
      %v1428 = vmax.f32 %v989, 0.0
      %v1429 = vmax.f32 %v991, 0.0
      %v1430 = vmax.f32 %v1250, 0.0
      %v1431 = vmax.f32 %v993, 0.0
      %v1432 = vmax.f32 %v995, 0.0
      %v1433 = vmax.f32 %v1253, 0.0
      %v1434 = vmax.f32 %v999, 0.0
      %v1435 = vmax.f32 %v1001, 0.0
      %v1436 = vmax.f32 %v1258, 0.0
      %v1437 = vmax.f32 %v1003, 0.0
      %v1438 = vmax.f32 %v1005, 0.0
      %v1439 = vmax.f32 %v1261, 0.0
      %v1440 = vmax.f32 %v1009, 0.0
      %v1441 = vmax.f32 %v1011, 0.0
      %v1442 = vmax.f32 %v1266, 0.0
      %v1443 = vmax.f32 %v1013, 0.0
      %v1444 = vmax.f32 %v1015, 0.0
      %v1445 = vmax.f32 %v1269, 0.0
      %v1446 = vmax.f32 %v1019, 0.0
      %v1447 = vmax.f32 %v1021, 0.0
      %v1448 = vmax.f32 %v1274, 0.0
      %v1449 = vmax.f32 %v1023, 0.0
      %v1450 = vmax.f32 %v1025, 0.0
      %v1451 = vmax.f32 %v1277, 0.0
      %v1452 = vmax.f32 %v1029, 0.0
      %v1453 = vmax.f32 %v1031, 0.0
      %v1454 = vmax.f32 %v1282, 0.0
      %v1455 = vmax.f32 %v1033, 0.0
      %v1456 = vmax.f32 %v1035, 0.0
      %v1457 = vmax.f32 %v1285, 0.0
      %v1458 = vmax.f32 %v1039, 0.0
      %v1459 = vmax.f32 %v1041, 0.0
      %v1460 = vmax.f32 %v1290, 0.0
      %v1461 = vmax.f32 %v1043, 0.0
      %v1462 = vmax.f32 %v1045, 0.0
      %v1463 = vmax.f32 %v1293, 0.0
      %v1464 = vmax.f32 %v1049, 0.0
      %v1465 = vmax.f32 %v1051, 0.0
      %v1466 = vmax.f32 %v1298, 0.0
      %v1467 = vmax.f32 %v1053, 0.0
      %v1468 = vmax.f32 %v1055, 0.0
      %v1469 = vmax.f32 %v1301, 0.0
      %v1470 = vmax.f32 %v1059, 0.0
      %v1471 = vmax.f32 %v1061, 0.0
      %v1472 = vmax.f32 %v1306, 0.0
      %v1473 = vmax.f32 %v1063, 0.0
      %v1474 = vmax.f32 %v1065, 0.0
      %v1475 = vmax.f32 %v1309, 0.0
      %v1476 = vmax.f32 %v1069, 0.0
      %v1477 = vmax.f32 %v1071, 0.0
      %v1478 = vmax.f32 %v1314, 0.0
      %v1479 = vmax.f32 %v1073, 0.0
      %v1480 = vmax.f32 %v1075, 0.0
      %v1481 = vmax.f32 %v1317, 0.0
      %v1482 = vmax.f32 %v1079, 0.0
      %v1483 = vmax.f32 %v1081, 0.0
      %v1484 = vmax.f32 %v1322, 0.0
      %v1485 = vmax.f32 %v1083, 0.0
      %v1486 = vmax.f32 %v1085, 0.0
      %v1487 = vmax.f32 %v1325, 0.0
      %v1488 = vmax.f32 %v1089, 0.0
      %v1489 = vmax.f32 %v1091, 0.0
      %v1490 = vmax.f32 %v1330, 0.0
      %v1491 = vmax.f32 %v1093, 0.0
      %v1492 = vmax.f32 %v1095, 0.0
      %v1493 = vmax.f32 %v1333, 0.0
      %v1494 = vmax.f32 %v1099, 0.0
      %v1495 = vmax.f32 %v1101, 0.0
      %v1496 = vmax.f32 %v1338, 0.0
      %v1497 = vmax.f32 %v1103, 0.0
      %v1498 = vmax.f32 %v1105, 0.0
      %v1499 = vmax.f32 %v1341, 0.0
      %v1500 = vmax.f32 %v1109, 0.0
      %v1501 = vmax.f32 %v1111, 0.0
      %v1502 = vmax.f32 %v1346, 0.0
      %v1503 = vmax.f32 %v1113, 0.0
      %v1504 = vmax.f32 %v1115, 0.0
      %v1505 = vmax.f32 %v1349, 0.0
      %v1506 = vmax.f32 %v1119, 0.0
      %v1507 = vmax.f32 %v1121, 0.0
      %v1508 = vmax.f32 %v1354, 0.0
      %v1509 = vmax.f32 %v1123, 0.0
      %v1510 = vmax.f32 %v1125, 0.0
      %v1511 = vmax.f32 %v1357, 0.0
      %v1512 = vmax.f32 %v1129, 0.0
      %v1513 = vmax.f32 %v1131, 0.0
      %v1514 = vmax.f32 %v1362, 0.0
      %v1515 = vmax.f32 %v1133, 0.0
      %v1516 = vmax.f32 %v1135, 0.0
      %v1517 = vmax.f32 %v1365, 0.0
      %v1518 = vmax.f32 %v1139, 0.0
      %v1519 = vmax.f32 %v1141, 0.0
      %v1520 = vmax.f32 %v1370, 0.0
      %v1521 = vmax.f32 %v1143, 0.0
      %v1522 = vmax.f32 %v1145, 0.0
      %v1523 = vmax.f32 %v1373, 0.0
      %v1524 = vmax.f32 %v1149, 0.0
      %v1525 = vmax.f32 %v1151, 0.0
      %v1526 = vmax.f32 %v1378, 0.0
      %v1527 = vmax.f32 %v1153, 0.0
      %v1528 = vmax.f32 %v1155, 0.0
      %v1529 = vmax.f32 %v1381, 0.0
      %v1530 = vmax.f32 %v1159, 0.0
      %v1531 = vmax.f32 %v1161, 0.0
      %v1532 = vmax.f32 %v1386, 0.0
      %v1533 = vmax.f32 %v1163, 0.0
      %v1534 = vmax.f32 %v1165, 0.0
      %v1535 = vmax.f32 %v1389, 0.0
      %v1536 = vmax.f32 %v1392, %v1428
      %v1537 = vmax.f32 %v1393, %v1429
      %v1538 = vmax.f32 %v1394, %v1430
      %v1539 = vmax.f32 %v1395, %v1431
      %v1540 = vmax.f32 %v1396, %v1432
      %v1541 = vmax.f32 %v1397, %v1433
      %v1542 = vmax.f32 %v1398, %v1434
      %v1543 = vmax.f32 %v1399, %v1435
      %v1544 = vmax.f32 %v1400, %v1436
      %v1545 = vmax.f32 %v1401, %v1437
      %v1546 = vmax.f32 %v1402, %v1438
      %v1547 = vmax.f32 %v1403, %v1439
      %v1548 = vmax.f32 %v1404, %v1440
      %v1549 = vmax.f32 %v1405, %v1441
      %v1550 = vmax.f32 %v1406, %v1442
      %v1551 = vmax.f32 %v1407, %v1443
      %v1552 = vmax.f32 %v1408, %v1444
      %v1553 = vmax.f32 %v1409, %v1445
      %v1554 = vmax.f32 %v1410, %v1446
      %v1555 = vmax.f32 %v1411, %v1447
      %v1556 = vmax.f32 %v1412, %v1448
      %v1557 = vmax.f32 %v1413, %v1449
      %v1558 = vmax.f32 %v1414, %v1450
      %v1559 = vmax.f32 %v1415, %v1451
      %v1560 = vmax.f32 %v1416, %v1452
      %v1561 = vmax.f32 %v1417, %v1453
      %v1562 = vmax.f32 %v1418, %v1454
      %v1563 = vmax.f32 %v1419, %v1455
      %v1564 = vmax.f32 %v1420, %v1456
      %v1565 = vmax.f32 %v1421, %v1457
      %v1566 = vmax.f32 %v1422, %v1458
      %v1567 = vmax.f32 %v1423, %v1459
      %v1568 = vmax.f32 %v1424, %v1460
      %v1569 = vmax.f32 %v1425, %v1461
      %v1570 = vmax.f32 %v1426, %v1462
      %v1571 = vmax.f32 %v1427, %v1463
      %v1572 = vmax.f32 %v1464, %v1500
      %v1573 = vmax.f32 %v1465, %v1501
      %v1574 = vmax.f32 %v1466, %v1502
      %v1575 = vmax.f32 %v1467, %v1503
      %v1576 = vmax.f32 %v1468, %v1504
      %v1577 = vmax.f32 %v1469, %v1505
      %v1578 = vmax.f32 %v1470, %v1506
      %v1579 = vmax.f32 %v1471, %v1507
      %v1580 = vmax.f32 %v1472, %v1508
      %v1581 = vmax.f32 %v1473, %v1509
      %v1582 = vmax.f32 %v1474, %v1510
      %v1583 = vmax.f32 %v1475, %v1511
      %v1584 = vmax.f32 %v1476, %v1512
      %v1585 = vmax.f32 %v1477, %v1513
      %v1586 = vmax.f32 %v1478, %v1514
      %v1587 = vmax.f32 %v1479, %v1515
      %v1588 = vmax.f32 %v1480, %v1516
      %v1589 = vmax.f32 %v1481, %v1517
      %v1590 = vmax.f32 %v1482, %v1518
      %v1591 = vmax.f32 %v1483, %v1519
      %v1592 = vmax.f32 %v1484, %v1520
      %v1593 = vmax.f32 %v1485, %v1521
      %v1594 = vmax.f32 %v1486, %v1522
      %v1595 = vmax.f32 %v1487, %v1523
      %v1596 = vmax.f32 %v1488, %v1524
      %v1597 = vmax.f32 %v1489, %v1525
      %v1598 = vmax.f32 %v1490, %v1526
      %v1599 = vmax.f32 %v1491, %v1527
      %v1600 = vmax.f32 %v1492, %v1528
      %v1601 = vmax.f32 %v1493, %v1529
      %v1602 = vmax.f32 %v1494, %v1530
      %v1603 = vmax.f32 %v1495, %v1531
      %v1604 = vmax.f32 %v1496, %v1532
      %v1605 = vmax.f32 %v1497, %v1533
      %v1606 = vmax.f32 %v1498, %v1534
      %v1607 = vmax.f32 %v1499, %v1535
      %1644 = vrot.lane.b32.xlu0 %v1536, 112
      %v1645 = vpop.permute.xlu0 %1644
      %1646 = vrot.lane.b32.xlu0 %v1537, 112
      %v1647 = vpop.permute.xlu0 %1646
      %1648 = vrot.lane.b32.xlu0 %v1538, 112
      %v1649 = vpop.permute.xlu0 %1648
      %1650 = vrot.lane.b32.xlu0 %v1539, 112
      %v1651 = vpop.permute.xlu0 %1650
      %1652 = vrot.lane.b32.xlu0 %v1540, 112
      %v1653 = vpop.permute.xlu0 %1652
      %1654 = vrot.lane.b32.xlu0 %v1541, 112
      %v1655 = vpop.permute.xlu0 %1654
      %1656 = vrot.lane.b32.xlu0 %v1542, 112
      %v1657 = vpop.permute.xlu0 %1656
      %1658 = vrot.lane.b32.xlu0 %v1543, 112
      %v1659 = vpop.permute.xlu0 %1658
      %1660 = vrot.lane.b32.xlu0 %v1544, 112
      %v1661 = vpop.permute.xlu0 %1660
      %1662 = vrot.lane.b32.xlu0 %v1545, 112
      %v1663 = vpop.permute.xlu0 %1662
      %1664 = vrot.lane.b32.xlu0 %v1546, 112
      %v1665 = vpop.permute.xlu0 %1664
      %1666 = vrot.lane.b32.xlu0 %v1547, 112
      %v1667 = vpop.permute.xlu0 %1666
      %1668 = vrot.lane.b32.xlu0 %v1548, 112
      %v1669 = vpop.permute.xlu0 %1668
      %1670 = vrot.lane.b32.xlu0 %v1549, 112
      %v1671 = vpop.permute.xlu0 %1670
      %1672 = vrot.lane.b32.xlu0 %v1550, 112
      %v1673 = vpop.permute.xlu0 %1672
      %1674 = vrot.lane.b32.xlu0 %v1551, 112
      %v1675 = vpop.permute.xlu0 %1674
      %1676 = vrot.lane.b32.xlu0 %v1552, 112
      %v1677 = vpop.permute.xlu0 %1676
      %1678 = vrot.lane.b32.xlu0 %v1553, 112
      %v1679 = vpop.permute.xlu0 %1678
      %1680 = vrot.lane.b32.xlu0 %v1554, 112
      %v1681 = vpop.permute.xlu0 %1680
      %1682 = vrot.lane.b32.xlu0 %v1555, 112
      %v1683 = vpop.permute.xlu0 %1682
      %1684 = vrot.lane.b32.xlu0 %v1556, 112
      %v1685 = vpop.permute.xlu0 %1684
      %1686 = vrot.lane.b32.xlu0 %v1557, 112
      %v1687 = vpop.permute.xlu0 %1686
      %1688 = vrot.lane.b32.xlu0 %v1558, 112
      %v1689 = vpop.permute.xlu0 %1688
      %1690 = vrot.lane.b32.xlu0 %v1559, 112
      %v1691 = vpop.permute.xlu0 %1690
      %1692 = vrot.lane.b32.xlu0 %v1560, 112
      %v1693 = vpop.permute.xlu0 %1692
      %1694 = vrot.lane.b32.xlu0 %v1561, 112
      %v1695 = vpop.permute.xlu0 %1694
      %1696 = vrot.lane.b32.xlu0 %v1562, 112
      %v1697 = vpop.permute.xlu0 %1696
      %1698 = vrot.lane.b32.xlu0 %v1563, 112
      %v1699 = vpop.permute.xlu0 %1698
      %1700 = vrot.lane.b32.xlu0 %v1564, 112
      %v1701 = vpop.permute.xlu0 %1700
      %1702 = vrot.lane.b32.xlu0 %v1565, 112
      %v1703 = vpop.permute.xlu0 %1702
      %1704 = vrot.lane.b32.xlu0 %v1566, 112
      %v1705 = vpop.permute.xlu0 %1704
      %1706 = vrot.lane.b32.xlu0 %v1567, 112
      %v1707 = vpop.permute.xlu0 %1706
      %1708 = vrot.lane.b32.xlu0 %v1568, 112
      %v1709 = vpop.permute.xlu0 %1708
      %1710 = vrot.lane.b32.xlu0 %v1569, 112
      %v1711 = vpop.permute.xlu0 %1710
      %1712 = vrot.lane.b32.xlu0 %v1570, 112
      %v1713 = vpop.permute.xlu0 %1712
      %1714 = vrot.lane.b32.xlu0 %v1571, 112
      %v1715 = vpop.permute.xlu0 %1714
      %vm1716 = vcmask 916480
      %v1717 = vsel %vm1716, %v1645, %v1647
      %v1718 = vsel %vm1716, %v1647, %v1649
      %v1719 = vsel %vm1716, %v1651, %v1653
      %v1720 = vsel %vm1716, %v1653, %v1655
      %v1721 = vsel %vm1716, %v1657, %v1659
      %v1722 = vsel %vm1716, %v1659, %v1661
      %v1723 = vsel %vm1716, %v1663, %v1665
      %v1724 = vsel %vm1716, %v1665, %v1667
      %v1725 = vsel %vm1716, %v1669, %v1671
      %v1726 = vsel %vm1716, %v1671, %v1673
      %v1727 = vsel %vm1716, %v1675, %v1677
      %v1728 = vsel %vm1716, %v1677, %v1679
      %v1729 = vsel %vm1716, %v1681, %v1683
      %v1730 = vsel %vm1716, %v1683, %v1685
      %v1731 = vsel %vm1716, %v1687, %v1689
      %v1732 = vsel %vm1716, %v1689, %v1691
      %v1733 = vsel %vm1716, %v1693, %v1695
      %v1734 = vsel %vm1716, %v1695, %v1697
      %v1735 = vsel %vm1716, %v1699, %v1701
      %v1736 = vsel %vm1716, %v1701, %v1703
      %v1737 = vsel %vm1716, %v1705, %v1707
      %v1738 = vsel %vm1716, %v1707, %v1709
      %v1739 = vsel %vm1716, %v1711, %v1713
      %v1740 = vsel %vm1716, %v1713, %v1715
      %v1777 = vmax.f32 %v1536, %v1717
      %v1778 = vmax.f32 %v1537, %v1718
      %v1779 = vmax.f32 %v1538, %v1649
      %v1780 = vmax.f32 %v1539, %v1719
      %v1781 = vmax.f32 %v1540, %v1720
      %v1782 = vmax.f32 %v1541, %v1655
      %v1783 = vmax.f32 %v1542, %v1721
      %v1784 = vmax.f32 %v1543, %v1722
      %v1785 = vmax.f32 %v1544, %v1661
      %v1786 = vmax.f32 %v1545, %v1723
      %v1787 = vmax.f32 %v1546, %v1724
      %v1788 = vmax.f32 %v1547, %v1667
      %v1789 = vmax.f32 %v1548, %v1725
      %v1790 = vmax.f32 %v1549, %v1726
      %v1791 = vmax.f32 %v1550, %v1673
      %v1792 = vmax.f32 %v1551, %v1727
      %v1793 = vmax.f32 %v1552, %v1728
      %v1794 = vmax.f32 %v1553, %v1679
      %v1795 = vmax.f32 %v1554, %v1729
      %v1796 = vmax.f32 %v1555, %v1730
      %v1797 = vmax.f32 %v1556, %v1685
      %v1798 = vmax.f32 %v1557, %v1731
      %v1799 = vmax.f32 %v1558, %v1732
      %v1800 = vmax.f32 %v1559, %v1691
      %v1801 = vmax.f32 %v1560, %v1733
      %v1802 = vmax.f32 %v1561, %v1734
      %v1803 = vmax.f32 %v1562, %v1697
      %v1804 = vmax.f32 %v1563, %v1735
      %v1805 = vmax.f32 %v1564, %v1736
      %v1806 = vmax.f32 %v1565, %v1703
      %v1807 = vmax.f32 %v1566, %v1737
      %v1808 = vmax.f32 %v1567, %v1738
      %v1809 = vmax.f32 %v1568, %v1709
      %v1810 = vmax.f32 %v1569, %v1739
      %v1811 = vmax.f32 %v1570, %v1740
      %v1812 = vmax.f32 %v1571, %v1715
      %v1813 = vpack.c.bf16 %v1780, %v1777
      %v1814 = vpack.c.bf16 %v1781, %v1778
      %v1815 = vpack.c.bf16 %v1782, %v1779
      %v1816 = vpack.c.bf16 %v1786, %v1783
      %v1817 = vpack.c.bf16 %v1787, %v1784
      %v1818 = vpack.c.bf16 %v1788, %v1785
      %v1819 = vpack.c.bf16 %v1792, %v1789
      %v1820 = vpack.c.bf16 %v1793, %v1790
      %v1821 = vpack.c.bf16 %v1794, %v1791
      %v1822 = vpack.c.bf16 %v1798, %v1795
      %v1823 = vpack.c.bf16 %v1799, %v1796
      %v1824 = vpack.c.bf16 %v1800, %v1797
      %v1825 = vpack.c.bf16 %v1804, %v1801
      %v1826 = vpack.c.bf16 %v1805, %v1802
      %v1827 = vpack.c.bf16 %v1806, %v1803
      %v1828 = vpack.c.bf16 %v1810, %v1807
      %v1829 = vpack.c.bf16 %v1811, %v1808
      %v1830 = vpack.c.bf16 %v1812, %v1809
      %1867 = vrot.lane.b32.xlu0 %v1572, 112
      %v1868 = vpop.permute.xlu0 %1867
      %1869 = vrot.lane.b32.xlu0 %v1573, 112
      %v1870 = vpop.permute.xlu0 %1869
      %1871 = vrot.lane.b32.xlu0 %v1574, 112
      %v1872 = vpop.permute.xlu0 %1871
      %1873 = vrot.lane.b32.xlu0 %v1575, 112
      %v1874 = vpop.permute.xlu0 %1873
      %1875 = vrot.lane.b32.xlu0 %v1576, 112
      %v1876 = vpop.permute.xlu0 %1875
      %1877 = vrot.lane.b32.xlu0 %v1577, 112
      %v1878 = vpop.permute.xlu0 %1877
      %1879 = vrot.lane.b32.xlu0 %v1578, 112
      %v1880 = vpop.permute.xlu0 %1879
      %1881 = vrot.lane.b32.xlu0 %v1579, 112
      %v1882 = vpop.permute.xlu0 %1881
      %1883 = vrot.lane.b32.xlu0 %v1580, 112
      %v1884 = vpop.permute.xlu0 %1883
      %1885 = vrot.lane.b32.xlu0 %v1581, 112
      %v1886 = vpop.permute.xlu0 %1885
      %1887 = vrot.lane.b32.xlu0 %v1582, 112
      %v1888 = vpop.permute.xlu0 %1887
      %1889 = vrot.lane.b32.xlu0 %v1583, 112
      %v1890 = vpop.permute.xlu0 %1889
      %1891 = vrot.lane.b32.xlu0 %v1584, 112
      %v1892 = vpop.permute.xlu0 %1891
      %1893 = vrot.lane.b32.xlu0 %v1585, 112
      %v1894 = vpop.permute.xlu0 %1893
      %1895 = vrot.lane.b32.xlu0 %v1586, 112
      %v1896 = vpop.permute.xlu0 %1895
      %1897 = vrot.lane.b32.xlu0 %v1587, 112
      %v1898 = vpop.permute.xlu0 %1897
      %1899 = vrot.lane.b32.xlu0 %v1588, 112
      %v1900 = vpop.permute.xlu0 %1899
      %1901 = vrot.lane.b32.xlu0 %v1589, 112
      %v1902 = vpop.permute.xlu0 %1901
      %1903 = vrot.lane.b32.xlu0 %v1590, 112
      %v1904 = vpop.permute.xlu0 %1903
      %1905 = vrot.lane.b32.xlu0 %v1591, 112
      %v1906 = vpop.permute.xlu0 %1905
      %1907 = vrot.lane.b32.xlu0 %v1592, 112
      %v1908 = vpop.permute.xlu0 %1907
      %1909 = vrot.lane.b32.xlu0 %v1593, 112
      %v1910 = vpop.permute.xlu0 %1909
      %1911 = vrot.lane.b32.xlu0 %v1594, 112
      %v1912 = vpop.permute.xlu0 %1911
      %1913 = vrot.lane.b32.xlu0 %v1595, 112
      %v1914 = vpop.permute.xlu0 %1913
      %1915 = vrot.lane.b32.xlu0 %v1596, 112
      %v1916 = vpop.permute.xlu0 %1915
      %1917 = vrot.lane.b32.xlu0 %v1597, 112
      %v1918 = vpop.permute.xlu0 %1917
      %1919 = vrot.lane.b32.xlu0 %v1598, 112
      %v1920 = vpop.permute.xlu0 %1919
      %1921 = vrot.lane.b32.xlu0 %v1599, 112
      %v1922 = vpop.permute.xlu0 %1921
      %1923 = vrot.lane.b32.xlu0 %v1600, 112
      %v1924 = vpop.permute.xlu0 %1923
      %1925 = vrot.lane.b32.xlu0 %v1601, 112
      %v1926 = vpop.permute.xlu0 %1925
      %1927 = vrot.lane.b32.xlu0 %v1602, 112
      %v1928 = vpop.permute.xlu0 %1927
      %1929 = vrot.lane.b32.xlu0 %v1603, 112
      %v1930 = vpop.permute.xlu0 %1929
      %1931 = vrot.lane.b32.xlu0 %v1604, 112
      %v1932 = vpop.permute.xlu0 %1931
      %1933 = vrot.lane.b32.xlu0 %v1605, 112
      %v1934 = vpop.permute.xlu0 %1933
      %1935 = vrot.lane.b32.xlu0 %v1606, 112
      %v1936 = vpop.permute.xlu0 %1935
      %1937 = vrot.lane.b32.xlu0 %v1607, 112
      %v1938 = vpop.permute.xlu0 %1937
      %v1939 = vsel %vm1716, %v1868, %v1870
      %v1940 = vsel %vm1716, %v1870, %v1872
      %v1941 = vsel %vm1716, %v1874, %v1876
      %v1942 = vsel %vm1716, %v1876, %v1878
      %v1943 = vsel %vm1716, %v1880, %v1882
      %v1944 = vsel %vm1716, %v1882, %v1884
      %v1945 = vsel %vm1716, %v1886, %v1888
      %v1946 = vsel %vm1716, %v1888, %v1890
      %v1947 = vsel %vm1716, %v1892, %v1894
      %v1948 = vsel %vm1716, %v1894, %v1896
      %v1949 = vsel %vm1716, %v1898, %v1900
      %v1950 = vsel %vm1716, %v1900, %v1902
      %v1951 = vsel %vm1716, %v1904, %v1906
      %v1952 = vsel %vm1716, %v1906, %v1908
      %v1953 = vsel %vm1716, %v1910, %v1912
      %v1954 = vsel %vm1716, %v1912, %v1914
      %v1955 = vsel %vm1716, %v1916, %v1918
      %v1956 = vsel %vm1716, %v1918, %v1920
      %v1957 = vsel %vm1716, %v1922, %v1924
      %v1958 = vsel %vm1716, %v1924, %v1926
      %v1959 = vsel %vm1716, %v1928, %v1930
      %v1960 = vsel %vm1716, %v1930, %v1932
      %v1961 = vsel %vm1716, %v1934, %v1936
      %v1962 = vsel %vm1716, %v1936, %v1938
      %v1999 = vmax.f32 %v1572, %v1939
      %v2000 = vmax.f32 %v1573, %v1940
      %v2001 = vmax.f32 %v1574, %v1872
      %v2002 = vmax.f32 %v1575, %v1941
      %v2003 = vmax.f32 %v1576, %v1942
      %v2004 = vmax.f32 %v1577, %v1878
      %v2005 = vmax.f32 %v1578, %v1943
      %v2006 = vmax.f32 %v1579, %v1944
      %v2007 = vmax.f32 %v1580, %v1884
      %v2008 = vmax.f32 %v1581, %v1945
      %v2009 = vmax.f32 %v1582, %v1946
      %v2010 = vmax.f32 %v1583, %v1890
      %v2011 = vmax.f32 %v1584, %v1947
      %v2012 = vmax.f32 %v1585, %v1948
      %v2013 = vmax.f32 %v1586, %v1896
      %v2014 = vmax.f32 %v1587, %v1949
      %v2015 = vmax.f32 %v1588, %v1950
      %v2016 = vmax.f32 %v1589, %v1902
      %v2017 = vmax.f32 %v1590, %v1951
      %v2018 = vmax.f32 %v1591, %v1952
      %v2019 = vmax.f32 %v1592, %v1908
      %v2020 = vmax.f32 %v1593, %v1953
      %v2021 = vmax.f32 %v1594, %v1954
      %v2022 = vmax.f32 %v1595, %v1914
      %v2023 = vmax.f32 %v1596, %v1955
      %v2024 = vmax.f32 %v1597, %v1956
      %v2025 = vmax.f32 %v1598, %v1920
      %v2026 = vmax.f32 %v1599, %v1957
      %v2027 = vmax.f32 %v1600, %v1958
      %v2028 = vmax.f32 %v1601, %v1926
      %v2029 = vmax.f32 %v1602, %v1959
      %v2030 = vmax.f32 %v1603, %v1960
      %v2031 = vmax.f32 %v1604, %v1932
      %v2032 = vmax.f32 %v1605, %v1961
      %v2033 = vmax.f32 %v1606, %v1962
      %v2034 = vmax.f32 %v1607, %v1938
      %v2035 = vpack.c.bf16 %v2002, %v1999
      %v2036 = vpack.c.bf16 %v2003, %v2000
      %v2037 = vpack.c.bf16 %v2004, %v2001
      %v2038 = vpack.c.bf16 %v2008, %v2005
      %v2039 = vpack.c.bf16 %v2009, %v2006
      %v2040 = vpack.c.bf16 %v2010, %v2007
      %v2041 = vpack.c.bf16 %v2014, %v2011
      %v2042 = vpack.c.bf16 %v2015, %v2012
      %v2043 = vpack.c.bf16 %v2016, %v2013
      %v2044 = vpack.c.bf16 %v2020, %v2017
      %v2045 = vpack.c.bf16 %v2021, %v2018
      %v2046 = vpack.c.bf16 %v2022, %v2019
      %v2047 = vpack.c.bf16 %v2026, %v2023
      %v2048 = vpack.c.bf16 %v2027, %v2024
      %v2049 = vpack.c.bf16 %v2028, %v2025
      %v2050 = vpack.c.bf16 %v2032, %v2029
      %v2051 = vpack.c.bf16 %v2033, %v2030
      %v2052 = vpack.c.bf16 %v2034, %v2031
      %v2053 = vld [vmem:[%s3] sm:$0xff]
      %v2054 = vld [vmem:[%s3 + $0x8] sm:$0xff]
      %v2055 = vld [vmem:[%s3 + $0x10] sm:$0xff]
      %v2056 = vld [vmem:[%s3 + $0x18] sm:$0xff]
      %v2057 = vld [vmem:[%s3 + $0x20] sm:$0xff]
      %v2058 = vld [vmem:[%s3 + $0x28] sm:$0xff]
      %v2059 = vld [vmem:[%s3 + $0x30] sm:$0xff]
      %v2060 = vld [vmem:[%s3 + $0x38] sm:$0xff]
      %v2061 = vld [vmem:[%s3 + $0x40] sm:$0xff]
      %v2062 = vld [vmem:[%s3 + $0x48] sm:$0xff]
      %v2063 = vld [vmem:[%s3 + $0x50] sm:$0xff]
      %v2064 = vld [vmem:[%s3 + $0x58] sm:$0xff]
      %v2065 = vld [vmem:[%s3 + $0x60] sm:$0xff]
      %v2066 = vld [vmem:[%s3 + $0x68] sm:$0xff]
      %v2067 = vld [vmem:[%s3 + $0x70] sm:$0xff]
      %v2068 = vld [vmem:[%s3 + $0x78] sm:$0xff]
      %v2069 = vld [vmem:[%s3 + $0x80] sm:$0xff]
      %v2070 = vld [vmem:[%s3 + $0x88] sm:$0xff]
      %v2071 = vld [vmem:[%s3 + $0x90] sm:$0xff]
      %v2072 = vld [vmem:[%s3 + $0x98] sm:$0xff]
      %v2073 = vld [vmem:[%s3 + $0xa0] sm:$0xff]
      %v2074 = vld [vmem:[%s3 + $0xa8] sm:$0xff]
      %v2075 = vld [vmem:[%s3 + $0xb0] sm:$0xff]
      %v2076 = vld [vmem:[%s3 + $0xb8] sm:$0xff]
      %v2077 = vld [vmem:[%s3 + $0xc0] sm:$0xff]
      %v2078 = vld [vmem:[%s3 + $0xc8] sm:$0xff]
      %v2079 = vld [vmem:[%s3 + $0xd0] sm:$0xff]
      %v2080 = vld [vmem:[%s3 + $0xd8] sm:$0xff]
      %v2081 = vld [vmem:[%s3 + $0xe0] sm:$0xff]
      %v2082 = vld [vmem:[%s3 + $0xe8] sm:$0xff]
      %v2083 = vld [vmem:[%s3 + $0xf0] sm:$0xff]
      %v2084 = vld [vmem:[%s3 + $0xf8] sm:$0xff]
      %v2085 = vld [vmem:[%s3 + $0x100] sm:$0xff]
      %v2086 = vld [vmem:[%s3 + $0x108] sm:$0xff]
      %v2087 = vld [vmem:[%s3 + $0x110] sm:$0xff]
      %v2088 = vld [vmem:[%s3 + $0x118] sm:$0xff]
      %v2089 = vld [vmem:[%s3 + $0x120] sm:$0xff]
      %v2090 = vld [vmem:[%s3 + $0x128] sm:$0xff]
      %v2091 = vld [vmem:[%s3 + $0x130] sm:$0xff]
      %v2092 = vld [vmem:[%s3 + $0x138] sm:$0xff]
      %v2093 = vld [vmem:[%s3 + $0x140] sm:$0xff]
      %v2094 = vld [vmem:[%s3 + $0x148] sm:$0xff]
      %v2095 = vld [vmem:[%s3 + $0x150] sm:$0xff]
      %v2096 = vld [vmem:[%s3 + $0x158] sm:$0xff]
      %v2097 = vld [vmem:[%s3 + $0x160] sm:$0xff]
      %v2098 = vld [vmem:[%s3 + $0x168] sm:$0xff]
      %s2099 = scalar_lea.vmem %s3, 368
      %v2100 = vld [vmem:[%s2099] sm:$0xff]
      %v2101 = vld [vmem:[%s2099 + $0x8] sm:$0xff]
      %v2102 = vld [vmem:[%s2099 + $0x10] sm:$0xff]
      %v2103 = vld [vmem:[%s2099 + $0x18] sm:$0xff]
      %v2104 = vld [vmem:[%s2099 + $0x20] sm:$0xff]
      %v2105 = vld [vmem:[%s2099 + $0x28] sm:$0xff]
      %v2106 = vld [vmem:[%s2099 + $0x30] sm:$0xff]
      %v2107 = vld [vmem:[%s2099 + $0x38] sm:$0xff]
      %v2108 = vld [vmem:[%s2099 + $0x40] sm:$0xff]
      %v2109 = vld [vmem:[%s2099 + $0x48] sm:$0xff]
      %v2110 = vld [vmem:[%s2099 + $0x50] sm:$0xff]
      %v2111 = vld [vmem:[%s2099 + $0x58] sm:$0xff]
      %v2112 = vld [vmem:[%s2099 + $0x60] sm:$0xff]
      %v2113 = vld [vmem:[%s2099 + $0x68] sm:$0xff]
      %v2114 = vld [vmem:[%s2099 + $0x70] sm:$0xff]
      %v2115 = vld [vmem:[%s2099 + $0x78] sm:$0xff]
      %v2116 = vld [vmem:[%s2099 + $0x80] sm:$0xff]
      %v2117 = vld [vmem:[%s2099 + $0x88] sm:$0xff]
      %v2118 = vld [vmem:[%s2099 + $0x90] sm:$0xff]
      %v2119 = vld [vmem:[%s2099 + $0x98] sm:$0xff]
      %v2120 = vld [vmem:[%s2099 + $0xa0] sm:$0xff]
      %v2121 = vld [vmem:[%s2099 + $0xa8] sm:$0xff]
      %v2122 = vld [vmem:[%s2099 + $0xb0] sm:$0xff]
      %v2123 = vld [vmem:[%s2099 + $0xb8] sm:$0xff]
      %v2124 = vld [vmem:[%s2099 + $0xc0] sm:$0xff]
      %v2125 = vld [vmem:[%s2099 + $0xc8] sm:$0xff]
      %v2126 = vld [vmem:[%s2099 + $0xd0] sm:$0xff]
      %v2127 = vld [vmem:[%s2099 + $0xd8] sm:$0xff]
      %v2128 = vld [vmem:[%s2099 + $0xe0] sm:$0xff]
      %v2129 = vld [vmem:[%s2099 + $0xe8] sm:$0xff]
      %v2130 = vld [vmem:[%s2099 + $0xf0] sm:$0xff]
      %v2131 = vld [vmem:[%s2099 + $0xf8] sm:$0xff]
      %v2132 = vld [vmem:[%s2099 + $0x100] sm:$0xff]
      %v2133 = vld [vmem:[%s2099 + $0x108] sm:$0xff]
      %v2134 = vld [vmem:[%s2099 + $0x110] sm:$0xff]
      %v2135 = vld [vmem:[%s2099 + $0x118] sm:$0xff]
      %v2136 = vld [vmem:[%s2099 + $0x120] sm:$0xff]
      %v2137 = vld [vmem:[%s2099 + $0x128] sm:$0xff]
      %v2138 = vld [vmem:[%s2099 + $0x130] sm:$0xff]
      %v2139 = vld [vmem:[%s2099 + $0x138] sm:$0xff]
      %v2140 = vld [vmem:[%s2099 + $0x140] sm:$0xff]
      %v2141 = vld [vmem:[%s2099 + $0x148] sm:$0xff]
      %v2142 = vld [vmem:[%s2099 + $0x150] sm:$0xff]
      %v2143 = vld [vmem:[%s2099 + $0x158] sm:$0xff]
      %v2144 = vld [vmem:[%s2099 + $0x160] sm:$0xff]
      %v2145 = vld [vmem:[%s2099 + $0x168] sm:$0xff]
      %v2192 = vunpack.c.l.b16 %v2100
      %v2193 = vunpack.c.h.b16 %v2100
      %v2194 = vunpack.c.l.b16 %v2101
      %v2195 = vunpack.c.h.b16 %v2101
      %v2196 = vunpack.c.l.b16 %v2102
      %v2197 = vunpack.c.h.b16 %v2102
      %v2198 = vunpack.c.l.b16 %v2103
      %v2199 = vunpack.c.h.b16 %v2103
      %v2200 = vunpack.c.l.b16 %v2104
      %v2201 = vunpack.c.h.b16 %v2104
      %v2202 = vunpack.c.l.b16 %v2105
      %v2203 = vunpack.c.h.b16 %v2105
      %v2204 = vunpack.c.l.b16 %v2106
      %v2205 = vunpack.c.h.b16 %v2106
      %v2206 = vunpack.c.l.b16 %v2107
      %v2207 = vunpack.c.h.b16 %v2107
      %v2208 = vunpack.c.l.b16 %v2108
      %v2209 = vunpack.c.h.b16 %v2108
      %v2210 = vunpack.c.l.b16 %v2109
      %v2211 = vunpack.c.h.b16 %v2109
      %v2212 = vunpack.c.l.b16 %v2110
      %v2213 = vunpack.c.h.b16 %v2110
      %v2214 = vunpack.c.l.b16 %v2111
      %v2215 = vunpack.c.h.b16 %v2111
      %v2216 = vunpack.c.l.b16 %v2112
      %v2217 = vunpack.c.h.b16 %v2112
      %v2218 = vunpack.c.l.b16 %v2113
      %v2219 = vunpack.c.h.b16 %v2113
      %v2220 = vunpack.c.l.b16 %v2114
      %v2221 = vunpack.c.h.b16 %v2114
      %v2222 = vunpack.c.l.b16 %v2115
      %v2223 = vunpack.c.h.b16 %v2115
      %v2224 = vunpack.c.l.b16 %v2116
      %v2225 = vunpack.c.h.b16 %v2116
      %v2226 = vunpack.c.l.b16 %v2117
      %v2227 = vunpack.c.h.b16 %v2117
      %v2228 = vunpack.c.l.b16 %v2118
      %v2229 = vunpack.c.h.b16 %v2118
      %v2230 = vunpack.c.l.b16 %v2119
      %v2231 = vunpack.c.h.b16 %v2119
      %v2232 = vunpack.c.l.b16 %v2120
      %v2233 = vunpack.c.h.b16 %v2120
      %v2234 = vunpack.c.l.b16 %v2121
      %v2235 = vunpack.c.h.b16 %v2121
      %v2236 = vunpack.c.l.b16 %v2122
      %v2237 = vunpack.c.h.b16 %v2122
      %v2238 = vunpack.c.l.b16 %v2123
      %v2239 = vunpack.c.h.b16 %v2123
      %v2240 = vunpack.c.l.b16 %v2124
      %v2241 = vunpack.c.h.b16 %v2124
      %v2242 = vunpack.c.l.b16 %v2125
      %v2243 = vunpack.c.h.b16 %v2125
      %v2244 = vunpack.c.l.b16 %v2126
      %v2245 = vunpack.c.h.b16 %v2126
      %v2246 = vunpack.c.l.b16 %v2127
      %v2247 = vunpack.c.h.b16 %v2127
      %v2248 = vunpack.c.l.b16 %v2128
      %v2249 = vunpack.c.h.b16 %v2128
      %v2250 = vunpack.c.l.b16 %v2129
      %v2251 = vunpack.c.h.b16 %v2129
      %v2252 = vunpack.c.l.b16 %v2130
      %v2253 = vunpack.c.h.b16 %v2130
      %v2254 = vunpack.c.l.b16 %v2131
      %v2255 = vunpack.c.h.b16 %v2131
      %v2256 = vunpack.c.l.b16 %v2132
      %v2257 = vunpack.c.h.b16 %v2132
      %v2258 = vunpack.c.l.b16 %v2133
      %v2259 = vunpack.c.h.b16 %v2133
      %v2260 = vunpack.c.l.b16 %v2134
      %v2261 = vunpack.c.h.b16 %v2134
      %v2262 = vunpack.c.l.b16 %v2135
      %v2263 = vunpack.c.h.b16 %v2135
      %v2264 = vunpack.c.l.b16 %v2136
      %v2265 = vunpack.c.h.b16 %v2136
      %v2266 = vunpack.c.l.b16 %v2137
      %v2267 = vunpack.c.h.b16 %v2137
      %v2268 = vunpack.c.l.b16 %v2138
      %v2269 = vunpack.c.h.b16 %v2138
      %v2270 = vunpack.c.l.b16 %v2139
      %v2271 = vunpack.c.h.b16 %v2139
      %v2272 = vunpack.c.l.b16 %v2140
      %v2273 = vunpack.c.h.b16 %v2140
      %v2274 = vunpack.c.l.b16 %v2141
      %v2275 = vunpack.c.h.b16 %v2141
      %v2276 = vunpack.c.l.b16 %v2142
      %v2277 = vunpack.c.h.b16 %v2142
      %v2278 = vunpack.c.l.b16 %v2143
      %v2279 = vunpack.c.h.b16 %v2143
      %v2280 = vunpack.c.l.b16 %v2144
      %v2281 = vunpack.c.h.b16 %v2144
      %v2282 = vunpack.c.l.b16 %v2145
      %v2283 = vunpack.c.h.b16 %v2145
      %v2284 = vpack.c.b16 %v2194, %v2192
      %v2285 = vpack.c.b16 %v2195, %v2193
      %v2286 = vpack.c.b16 %v2198, %v2196
      %v2287 = vpack.c.b16 %v2199, %v2197
      %v2288 = vpack.c.b16 %v2202, %v2200
      %v2289 = vpack.c.b16 %v2203, %v2201
      %v2290 = vpack.c.b16 %v2206, %v2204
      %v2291 = vpack.c.b16 %v2207, %v2205
      %v2292 = vpack.c.b16 %v2210, %v2208
      %v2293 = vpack.c.b16 %v2211, %v2209
      %v2294 = vpack.c.b16 %v2214, %v2212
      %v2295 = vpack.c.b16 %v2215, %v2213
      %v2296 = vpack.c.b16 %v2218, %v2216
      %v2297 = vpack.c.b16 %v2219, %v2217
      %v2298 = vpack.c.b16 %v2222, %v2220
      %v2299 = vpack.c.b16 %v2223, %v2221
      %v2300 = vpack.c.b16 %v2226, %v2224
      %v2301 = vpack.c.b16 %v2227, %v2225
      %v2302 = vpack.c.b16 %v2230, %v2228
      %v2303 = vpack.c.b16 %v2231, %v2229
      %v2304 = vpack.c.b16 %v2234, %v2232
      %v2305 = vpack.c.b16 %v2235, %v2233
      %v2306 = vpack.c.b16 %v2238, %v2236
      %v2307 = vpack.c.b16 %v2239, %v2237
      %v2308 = vpack.c.b16 %v2242, %v2240
      %v2309 = vpack.c.b16 %v2243, %v2241
      %v2310 = vpack.c.b16 %v2246, %v2244
      %v2311 = vpack.c.b16 %v2247, %v2245
      %v2312 = vpack.c.b16 %v2250, %v2248
      %v2313 = vpack.c.b16 %v2251, %v2249
      %v2314 = vpack.c.b16 %v2254, %v2252
      %v2315 = vpack.c.b16 %v2255, %v2253
      %v2316 = vpack.c.b16 %v2258, %v2256
      %v2317 = vpack.c.b16 %v2259, %v2257
      %v2318 = vpack.c.b16 %v2262, %v2260
      %v2319 = vpack.c.b16 %v2263, %v2261
      %v2320 = vpack.c.b16 %v2266, %v2264
      %v2321 = vpack.c.b16 %v2267, %v2265
      %v2322 = vpack.c.b16 %v2270, %v2268
      %v2323 = vpack.c.b16 %v2271, %v2269
      %v2324 = vpack.c.b16 %v2274, %v2272
      %v2325 = vpack.c.b16 %v2275, %v2273
      %v2326 = vpack.c.b16 %v2278, %v2276
      %v2327 = vpack.c.b16 %v2279, %v2277
      %v2328 = vpack.c.b16 %v2282, %v2280
      %v2329 = vpack.c.b16 %v2283, %v2281
      %v2377 = vsel %vm1716, %v2037, 0
      %v2380 = vsel %vm1716, %v2040, 0
      %v2383 = vsel %vm1716, %v2043, 0
      %v2386 = vsel %vm1716, %v2046, 0
      %2388 = vmatprep.subr.bf16.mxu0 %v2299
      %2389 = vmatpush1.bf16.msra.mxu0 %v2298
      %2390 = vmatprep.subr.bf16.mxu0 %v2297
      %2391 = vmatpush1.bf16.msra.mxu0 %v2296
      %2392 = vmatprep.subr.bf16.mxu0 %v2295
      %2393 = vmatpush1.bf16.msra.mxu0 %v2294
      %2394 = vmatprep.subr.bf16.mxu0 %v2293
      %2395 = vmatpush1.bf16.msra.mxu0 %v2292
      %2396 = vmatprep.subr.bf16.mxu0 %v2291
      %2397 = vmatpush1.bf16.msra.mxu0 %v2290
      %2398 = vmatprep.subr.bf16.mxu0 %v2289
      %2399 = vmatpush1.bf16.msra.mxu0 %v2288
      %2400 = vmatprep.subr.bf16.mxu0 %v2287
      %2401 = vmatpush1.bf16.msra.mxu0 %v2286
      %2402 = vmatprep.subr.bf16.mxu0 %v2285
      %2403 = vmatpush1.bf16.msra.mxu0 %v2284
      %2404 = vmatprep.subr.bf16.mxu0 %v2315
      %2405 = vmatpush2.bf16.msra.mxu0 %v2314
      %2406 = vmatprep.subr.bf16.mxu0 %v2313
      %2407 = vmatpush2.bf16.msra.mxu0 %v2312
      %2408 = vmatprep.subr.bf16.mxu0 %v2311
      %2409 = vmatpush2.bf16.msra.mxu0 %v2310
      %2410 = vmatprep.subr.bf16.mxu0 %v2309
      %2411 = vmatpush2.bf16.msra.mxu0 %v2308
      %2412 = vmatprep.subr.bf16.mxu0 %v2307
      %2413 = vmatpush2.bf16.msra.mxu0 %v2306
      %2414 = vmatprep.subr.bf16.mxu0 %v2305
      %2415 = vmatpush2.bf16.msra.mxu0 %v2304
      %2416 = vmatprep.subr.bf16.mxu0 %v2303
      %2417 = vmatpush2.bf16.msra.mxu0 %v2302
      %2418 = vmatprep.subr.bf16.mxu0 %v2301
      %2419 = vmatpush2.bf16.msra.mxu0 %v2300
      %2420 = vmatprep.mubr.bf16.mxu0 %v2036
      %2421 = vmatmul.mubr.bf16.gmra.mxu0 %v2035
      %v2422 = vpop.f32.mrf.mxu0
      %v2423 = vadd.f32 0.0, %v2422
      %v2424 = vpop.f32.mrf.mxu0
      %v2425 = vadd.f32 0.0, %v2424
      %v2426 = vpop.f32.mrf.mxu0
      %v2427 = vadd.f32 0.0, %v2426
      %v2428 = vpop.f32.mrf.mxu0
      %v2429 = vadd.f32 0.0, %v2428
      %2430 = vmatprep.mubr.bf16.mxu0 %v2039
      %2431 = vmatmul.mubr.bf16.gmra.mxu0 %v2038
      %v2432 = vpop.f32.mrf.mxu0
      %v2433 = vadd.f32 0.0, %v2432
      %v2434 = vpop.f32.mrf.mxu0
      %v2435 = vadd.f32 0.0, %v2434
      %v2436 = vpop.f32.mrf.mxu0
      %v2437 = vadd.f32 0.0, %v2436
      %v2438 = vpop.f32.mrf.mxu0
      %v2439 = vadd.f32 0.0, %v2438
      %2440 = vmatprep.mubr.bf16.mxu0 %v2042
      %2441 = vmatmul.mubr.bf16.gmra.mxu0 %v2041
      %v2442 = vpop.f32.mrf.mxu0
      %v2443 = vadd.f32 0.0, %v2442
      %v2444 = vpop.f32.mrf.mxu0
      %v2445 = vadd.f32 0.0, %v2444
      %v2446 = vpop.f32.mrf.mxu0
      %v2447 = vadd.f32 0.0, %v2446
      %v2448 = vpop.f32.mrf.mxu0
      %v2449 = vadd.f32 0.0, %v2448
      %2450 = vmatprep.mubr.bf16.mxu0 %v2045
      %2451 = vmatmul.mubr.bf16.gmra.mxu0 %v2044
      %v2452 = vpop.f32.mrf.mxu0
      %v2453 = vadd.f32 0.0, %v2452
      %v2454 = vpop.f32.mrf.mxu0
      %v2455 = vadd.f32 0.0, %v2454
      %v2456 = vpop.f32.mrf.mxu0
      %v2457 = vadd.f32 0.0, %v2456
      %v2458 = vpop.f32.mrf.mxu0
      %v2459 = vadd.f32 0.0, %v2458
      %2460 = vdwg.mxu0
      %2461 = vmatprep.subr.bf16.mxu0 0
      %2462 = vmatpush1.bf16.msra.mxu0 0
      %2463 = vmatprep.subr.bf16.mxu0 %v2329
      %2464 = vmatpush1.bf16.msra.mxu0 %v2328
      %2465 = vmatprep.subr.bf16.mxu0 %v2327
      %2466 = vmatpush1.bf16.msra.mxu0 %v2326
      %2467 = vmatprep.subr.bf16.mxu0 %v2325
      %2468 = vmatpush1.bf16.msra.mxu0 %v2324
      %2469 = vmatprep.subr.bf16.mxu0 %v2323
      %2470 = vmatpush1.bf16.msra.mxu0 %v2322
      %2471 = vmatprep.subr.bf16.mxu0 %v2321
      %2472 = vmatpush1.bf16.msra.mxu0 %v2320
      %2473 = vmatprep.subr.bf16.mxu0 %v2319
      %2474 = vmatpush1.bf16.msra.mxu0 %v2318
      %2475 = vmatprep.subr.bf16.mxu0 %v2317
      %2476 = vmatpush1.bf16.msra.mxu0 %v2316
      %2477 = vmatprep.subr.bf16.mxu0 0
      %2478 = vmatpush2.bf16.msra.mxu0 0
      %2479 = vmatprep.subr.bf16.mxu0 0
      %2480 = vmatpush2.bf16.msra.mxu0 0
      %2481 = vmatprep.subr.bf16.mxu0 0
      %2482 = vmatpush2.bf16.msra.mxu0 0
      %2483 = vmatprep.subr.bf16.mxu0 0
      %2484 = vmatpush2.bf16.msra.mxu0 0
      %2485 = vmatprep.subr.bf16.mxu0 0
      %2486 = vmatpush2.bf16.msra.mxu0 0
      %2487 = vmatprep.subr.bf16.mxu0 0
      %2488 = vmatpush2.bf16.msra.mxu0 0
      %2489 = vmatprep.subr.bf16.mxu0 0
      %2490 = vmatpush2.bf16.msra.mxu0 0
      %2491 = vmatprep.subr.bf16.mxu0 0
      %2492 = vmatpush2.bf16.msra.mxu0 0
      %2493 = vmatprep.mubr.bf16.mxu0 0
      %2494 = vmatmul.mubr.bf16.gmra.mxu0 %v2377
      %v2495 = vpop.f32.mrf.mxu0
      %v2496 = vadd.f32 %v2423, %v2495
      %v2497 = vpop.f32.mrf.mxu0
      %v2498 = vadd.f32 %v2425, %v2497
      %v2499 = vpop.f32.mrf.mxu0
      %v2500 = vadd.f32 %v2427, %v2499
      %v2501 = vpop.f32.mrf.mxu0
      %v2502 = vadd.f32 %v2429, %v2501
      %2503 = vmatprep.mubr.bf16.mxu0 0
      %2504 = vmatmul.mubr.bf16.gmra.mxu0 %v2380
      %v2505 = vpop.f32.mrf.mxu0
      %v2506 = vadd.f32 %v2433, %v2505
      %v2507 = vpop.f32.mrf.mxu0
      %v2508 = vadd.f32 %v2435, %v2507
      %v2509 = vpop.f32.mrf.mxu0
      %v2510 = vadd.f32 %v2437, %v2509
      %v2511 = vpop.f32.mrf.mxu0
      %v2512 = vadd.f32 %v2439, %v2511
      %2513 = vmatprep.mubr.bf16.mxu0 0
      %2514 = vmatmul.mubr.bf16.gmra.mxu0 %v2383
      %v2515 = vpop.f32.mrf.mxu0
      %v2516 = vadd.f32 %v2443, %v2515
      %v2517 = vpop.f32.mrf.mxu0
      %v2518 = vadd.f32 %v2445, %v2517
      %v2519 = vpop.f32.mrf.mxu0
      %v2520 = vadd.f32 %v2447, %v2519
      %v2521 = vpop.f32.mrf.mxu0
      %v2522 = vadd.f32 %v2449, %v2521
      %2523 = vmatprep.mubr.bf16.mxu0 0
      %2524 = vmatmul.mubr.bf16.gmra.mxu0 %v2386
      %v2525 = vpop.f32.mrf.mxu0
      %v2526 = vadd.f32 %v2453, %v2525
      %v2527 = vpop.f32.mrf.mxu0
      %v2528 = vadd.f32 %v2455, %v2527
      %v2529 = vpop.f32.mrf.mxu0
      %v2530 = vadd.f32 %v2457, %v2529
      %v2531 = vpop.f32.mrf.mxu0
      %v2532 = vadd.f32 %v2459, %v2531
      %2533 = vdwg.mxu0
      %v2580 = vunpack.c.l.b16 %v2053
      %v2581 = vunpack.c.h.b16 %v2053
      %v2582 = vunpack.c.l.b16 %v2054
      %v2583 = vunpack.c.h.b16 %v2054
      %v2584 = vunpack.c.l.b16 %v2055
      %v2585 = vunpack.c.h.b16 %v2055
      %v2586 = vunpack.c.l.b16 %v2056
      %v2587 = vunpack.c.h.b16 %v2056
      %v2588 = vunpack.c.l.b16 %v2057
      %v2589 = vunpack.c.h.b16 %v2057
      %v2590 = vunpack.c.l.b16 %v2058
      %v2591 = vunpack.c.h.b16 %v2058
      %v2592 = vunpack.c.l.b16 %v2059
      %v2593 = vunpack.c.h.b16 %v2059
      %v2594 = vunpack.c.l.b16 %v2060
      %v2595 = vunpack.c.h.b16 %v2060
      %v2596 = vunpack.c.l.b16 %v2061
      %v2597 = vunpack.c.h.b16 %v2061
      %v2598 = vunpack.c.l.b16 %v2062
      %v2599 = vunpack.c.h.b16 %v2062
      %v2600 = vunpack.c.l.b16 %v2063
      %v2601 = vunpack.c.h.b16 %v2063
      %v2602 = vunpack.c.l.b16 %v2064
      %v2603 = vunpack.c.h.b16 %v2064
      %v2604 = vunpack.c.l.b16 %v2065
      %v2605 = vunpack.c.h.b16 %v2065
      %v2606 = vunpack.c.l.b16 %v2066
      %v2607 = vunpack.c.h.b16 %v2066
      %v2608 = vunpack.c.l.b16 %v2067
      %v2609 = vunpack.c.h.b16 %v2067
      %v2610 = vunpack.c.l.b16 %v2068
      %v2611 = vunpack.c.h.b16 %v2068
      %v2612 = vunpack.c.l.b16 %v2069
      %v2613 = vunpack.c.h.b16 %v2069
      %v2614 = vunpack.c.l.b16 %v2070
      %v2615 = vunpack.c.h.b16 %v2070
      %v2616 = vunpack.c.l.b16 %v2071
      %v2617 = vunpack.c.h.b16 %v2071
      %v2618 = vunpack.c.l.b16 %v2072
      %v2619 = vunpack.c.h.b16 %v2072
      %v2620 = vunpack.c.l.b16 %v2073
      %v2621 = vunpack.c.h.b16 %v2073
      %v2622 = vunpack.c.l.b16 %v2074
      %v2623 = vunpack.c.h.b16 %v2074
      %v2624 = vunpack.c.l.b16 %v2075
      %v2625 = vunpack.c.h.b16 %v2075
      %v2626 = vunpack.c.l.b16 %v2076
      %v2627 = vunpack.c.h.b16 %v2076
      %v2628 = vunpack.c.l.b16 %v2077
      %v2629 = vunpack.c.h.b16 %v2077
      %v2630 = vunpack.c.l.b16 %v2078
      %v2631 = vunpack.c.h.b16 %v2078
      %v2632 = vunpack.c.l.b16 %v2079
      %v2633 = vunpack.c.h.b16 %v2079
      %v2634 = vunpack.c.l.b16 %v2080
      %v2635 = vunpack.c.h.b16 %v2080
      %v2636 = vunpack.c.l.b16 %v2081
      %v2637 = vunpack.c.h.b16 %v2081
      %v2638 = vunpack.c.l.b16 %v2082
      %v2639 = vunpack.c.h.b16 %v2082
      %v2640 = vunpack.c.l.b16 %v2083
      %v2641 = vunpack.c.h.b16 %v2083
      %v2642 = vunpack.c.l.b16 %v2084
      %v2643 = vunpack.c.h.b16 %v2084
      %v2644 = vunpack.c.l.b16 %v2085
      %v2645 = vunpack.c.h.b16 %v2085
      %v2646 = vunpack.c.l.b16 %v2086
      %v2647 = vunpack.c.h.b16 %v2086
      %v2648 = vunpack.c.l.b16 %v2087
      %v2649 = vunpack.c.h.b16 %v2087
      %v2650 = vunpack.c.l.b16 %v2088
      %v2651 = vunpack.c.h.b16 %v2088
      %v2652 = vunpack.c.l.b16 %v2089
      %v2653 = vunpack.c.h.b16 %v2089
      %v2654 = vunpack.c.l.b16 %v2090
      %v2655 = vunpack.c.h.b16 %v2090
      %v2656 = vunpack.c.l.b16 %v2091
      %v2657 = vunpack.c.h.b16 %v2091
      %v2658 = vunpack.c.l.b16 %v2092
      %v2659 = vunpack.c.h.b16 %v2092
      %v2660 = vunpack.c.l.b16 %v2093
      %v2661 = vunpack.c.h.b16 %v2093
      %v2662 = vunpack.c.l.b16 %v2094
      %v2663 = vunpack.c.h.b16 %v2094
      %v2664 = vunpack.c.l.b16 %v2095
      %v2665 = vunpack.c.h.b16 %v2095
      %v2666 = vunpack.c.l.b16 %v2096
      %v2667 = vunpack.c.h.b16 %v2096
      %v2668 = vunpack.c.l.b16 %v2097
      %v2669 = vunpack.c.h.b16 %v2097
      %v2670 = vunpack.c.l.b16 %v2098
      %v2671 = vunpack.c.h.b16 %v2098
      %v2672 = vpack.c.b16 %v2582, %v2580
      %v2673 = vpack.c.b16 %v2583, %v2581
      %v2674 = vpack.c.b16 %v2586, %v2584
      %v2675 = vpack.c.b16 %v2587, %v2585
      %v2676 = vpack.c.b16 %v2590, %v2588
      %v2677 = vpack.c.b16 %v2591, %v2589
      %v2678 = vpack.c.b16 %v2594, %v2592
      %v2679 = vpack.c.b16 %v2595, %v2593
      %v2680 = vpack.c.b16 %v2598, %v2596
      %v2681 = vpack.c.b16 %v2599, %v2597
      %v2682 = vpack.c.b16 %v2602, %v2600
      %v2683 = vpack.c.b16 %v2603, %v2601
      %v2684 = vpack.c.b16 %v2606, %v2604
      %v2685 = vpack.c.b16 %v2607, %v2605
      %v2686 = vpack.c.b16 %v2610, %v2608
      %v2687 = vpack.c.b16 %v2611, %v2609
      %v2688 = vpack.c.b16 %v2614, %v2612
      %v2689 = vpack.c.b16 %v2615, %v2613
      %v2690 = vpack.c.b16 %v2618, %v2616
      %v2691 = vpack.c.b16 %v2619, %v2617
      %v2692 = vpack.c.b16 %v2622, %v2620
      %v2693 = vpack.c.b16 %v2623, %v2621
      %v2694 = vpack.c.b16 %v2626, %v2624
      %v2695 = vpack.c.b16 %v2627, %v2625
      %v2696 = vpack.c.b16 %v2630, %v2628
      %v2697 = vpack.c.b16 %v2631, %v2629
      %v2698 = vpack.c.b16 %v2634, %v2632
      %v2699 = vpack.c.b16 %v2635, %v2633
      %v2700 = vpack.c.b16 %v2638, %v2636
      %v2701 = vpack.c.b16 %v2639, %v2637
      %v2702 = vpack.c.b16 %v2642, %v2640
      %v2703 = vpack.c.b16 %v2643, %v2641
      %v2704 = vpack.c.b16 %v2646, %v2644
      %v2705 = vpack.c.b16 %v2647, %v2645
      %v2706 = vpack.c.b16 %v2650, %v2648
      %v2707 = vpack.c.b16 %v2651, %v2649
      %v2708 = vpack.c.b16 %v2654, %v2652
      %v2709 = vpack.c.b16 %v2655, %v2653
      %v2710 = vpack.c.b16 %v2658, %v2656
      %v2711 = vpack.c.b16 %v2659, %v2657
      %v2712 = vpack.c.b16 %v2662, %v2660
      %v2713 = vpack.c.b16 %v2663, %v2661
      %v2714 = vpack.c.b16 %v2666, %v2664
      %v2715 = vpack.c.b16 %v2667, %v2665
      %v2716 = vpack.c.b16 %v2670, %v2668
      %v2717 = vpack.c.b16 %v2671, %v2669
      %v2765 = vsel %vm1716, %v1815, 0
      %v2768 = vsel %vm1716, %v1818, 0
      %v2771 = vsel %vm1716, %v1821, 0
      %v2774 = vsel %vm1716, %v1824, 0
      %2776 = vmatprep.subr.bf16.mxu0 %v2687
      %2777 = vmatpush1.bf16.msra.mxu0 %v2686
      %2778 = vmatprep.subr.bf16.mxu0 %v2685
      %2779 = vmatpush1.bf16.msra.mxu0 %v2684
      %2780 = vmatprep.subr.bf16.mxu0 %v2683
      %2781 = vmatpush1.bf16.msra.mxu0 %v2682
      %2782 = vmatprep.subr.bf16.mxu0 %v2681
      %2783 = vmatpush1.bf16.msra.mxu0 %v2680
      %2784 = vmatprep.subr.bf16.mxu0 %v2679
      %2785 = vmatpush1.bf16.msra.mxu0 %v2678
      %2786 = vmatprep.subr.bf16.mxu0 %v2677
      %2787 = vmatpush1.bf16.msra.mxu0 %v2676
      %2788 = vmatprep.subr.bf16.mxu0 %v2675
      %2789 = vmatpush1.bf16.msra.mxu0 %v2674
      %2790 = vmatprep.subr.bf16.mxu0 %v2673
      %2791 = vmatpush1.bf16.msra.mxu0 %v2672
      %2792 = vmatprep.subr.bf16.mxu0 %v2703
      %2793 = vmatpush2.bf16.msra.mxu0 %v2702
      %2794 = vmatprep.subr.bf16.mxu0 %v2701
      %2795 = vmatpush2.bf16.msra.mxu0 %v2700
      %2796 = vmatprep.subr.bf16.mxu0 %v2699
      %2797 = vmatpush2.bf16.msra.mxu0 %v2698
      %2798 = vmatprep.subr.bf16.mxu0 %v2697
      %2799 = vmatpush2.bf16.msra.mxu0 %v2696
      %2800 = vmatprep.subr.bf16.mxu0 %v2695
      %2801 = vmatpush2.bf16.msra.mxu0 %v2694
      %2802 = vmatprep.subr.bf16.mxu0 %v2693
      %2803 = vmatpush2.bf16.msra.mxu0 %v2692
      %2804 = vmatprep.subr.bf16.mxu0 %v2691
      %2805 = vmatpush2.bf16.msra.mxu0 %v2690
      %2806 = vmatprep.subr.bf16.mxu0 %v2689
      %2807 = vmatpush2.bf16.msra.mxu0 %v2688
      %2808 = vmatprep.mubr.bf16.mxu0 %v1814
      %2809 = vmatmul.mubr.bf16.gmra.mxu0 %v1813
      %v2810 = vpop.f32.mrf.mxu0
      %v2811 = vadd.f32 %v2496, %v2810
      %v2812 = vpop.f32.mrf.mxu0
      %v2813 = vadd.f32 %v2498, %v2812
      %v2814 = vpop.f32.mrf.mxu0
      %v2815 = vadd.f32 %v2500, %v2814
      %v2816 = vpop.f32.mrf.mxu0
      %v2817 = vadd.f32 %v2502, %v2816
      %2818 = vmatprep.mubr.bf16.mxu0 %v1817
      %2819 = vmatmul.mubr.bf16.gmra.mxu0 %v1816
      %v2820 = vpop.f32.mrf.mxu0
      %v2821 = vadd.f32 %v2506, %v2820
      %v2822 = vpop.f32.mrf.mxu0
      %v2823 = vadd.f32 %v2508, %v2822
      %v2824 = vpop.f32.mrf.mxu0
      %v2825 = vadd.f32 %v2510, %v2824
      %v2826 = vpop.f32.mrf.mxu0
      %v2827 = vadd.f32 %v2512, %v2826
      %2828 = vmatprep.mubr.bf16.mxu0 %v1820
      %2829 = vmatmul.mubr.bf16.gmra.mxu0 %v1819
      %v2830 = vpop.f32.mrf.mxu0
      %v2831 = vadd.f32 %v2516, %v2830
      %v2832 = vpop.f32.mrf.mxu0
      %v2833 = vadd.f32 %v2518, %v2832
      %v2834 = vpop.f32.mrf.mxu0
      %v2835 = vadd.f32 %v2520, %v2834
      %v2836 = vpop.f32.mrf.mxu0
      %v2837 = vadd.f32 %v2522, %v2836
      %2838 = vmatprep.mubr.bf16.mxu0 %v1823
      %2839 = vmatmul.mubr.bf16.gmra.mxu0 %v1822
      %v2840 = vpop.f32.mrf.mxu0
      %v2841 = vadd.f32 %v2526, %v2840
      %v2842 = vpop.f32.mrf.mxu0
      %v2843 = vadd.f32 %v2528, %v2842
      %v2844 = vpop.f32.mrf.mxu0
      %v2845 = vadd.f32 %v2530, %v2844
      %v2846 = vpop.f32.mrf.mxu0
      %v2847 = vadd.f32 %v2532, %v2846
      %2848 = vdwg.mxu0
      %2849 = vmatprep.subr.bf16.mxu0 0
      %2850 = vmatpush1.bf16.msra.mxu0 0
      %2851 = vmatprep.subr.bf16.mxu0 %v2717
      %2852 = vmatpush1.bf16.msra.mxu0 %v2716
      %2853 = vmatprep.subr.bf16.mxu0 %v2715
      %2854 = vmatpush1.bf16.msra.mxu0 %v2714
      %2855 = vmatprep.subr.bf16.mxu0 %v2713
      %2856 = vmatpush1.bf16.msra.mxu0 %v2712
      %2857 = vmatprep.subr.bf16.mxu0 %v2711
      %2858 = vmatpush1.bf16.msra.mxu0 %v2710
      %2859 = vmatprep.subr.bf16.mxu0 %v2709
      %2860 = vmatpush1.bf16.msra.mxu0 %v2708
      %2861 = vmatprep.subr.bf16.mxu0 %v2707
      %2862 = vmatpush1.bf16.msra.mxu0 %v2706
      %2863 = vmatprep.subr.bf16.mxu0 %v2705
      %2864 = vmatpush1.bf16.msra.mxu0 %v2704
      %2865 = vmatprep.subr.bf16.mxu0 0
      %2866 = vmatpush2.bf16.msra.mxu0 0
      %2867 = vmatprep.subr.bf16.mxu0 0
      %2868 = vmatpush2.bf16.msra.mxu0 0
      %2869 = vmatprep.subr.bf16.mxu0 0
      %2870 = vmatpush2.bf16.msra.mxu0 0
      %2871 = vmatprep.subr.bf16.mxu0 0
      %2872 = vmatpush2.bf16.msra.mxu0 0
      %2873 = vmatprep.subr.bf16.mxu0 0
      %2874 = vmatpush2.bf16.msra.mxu0 0
      %2875 = vmatprep.subr.bf16.mxu0 0
      %2876 = vmatpush2.bf16.msra.mxu0 0
      %2877 = vmatprep.subr.bf16.mxu0 0
      %2878 = vmatpush2.bf16.msra.mxu0 0
      %2879 = vmatprep.subr.bf16.mxu0 0
      %2880 = vmatpush2.bf16.msra.mxu0 0
      %2881 = vmatprep.mubr.bf16.mxu0 0
      %2882 = vmatmul.mubr.bf16.gmra.mxu0 %v2765
      %v2883 = vpop.f32.mrf.mxu0
      %v2884 = vadd.f32 %v2811, %v2883
      %v2885 = vpop.f32.mrf.mxu0
      %v2886 = vadd.f32 %v2813, %v2885
      %v2887 = vpop.f32.mrf.mxu0
      %v2888 = vadd.f32 %v2815, %v2887
      %v2889 = vpop.f32.mrf.mxu0
      %v2890 = vadd.f32 %v2817, %v2889
      %2891 = vmatprep.mubr.bf16.mxu0 0
      %2892 = vmatmul.mubr.bf16.gmra.mxu0 %v2768
      %v2893 = vpop.f32.mrf.mxu0
      %v2894 = vadd.f32 %v2821, %v2893
      %v2895 = vpop.f32.mrf.mxu0
      %v2896 = vadd.f32 %v2823, %v2895
      %v2897 = vpop.f32.mrf.mxu0
      %v2898 = vadd.f32 %v2825, %v2897
      %v2899 = vpop.f32.mrf.mxu0
      %v2900 = vadd.f32 %v2827, %v2899
      %2901 = vmatprep.mubr.bf16.mxu0 0
      %2902 = vmatmul.mubr.bf16.gmra.mxu0 %v2771
      %v2903 = vpop.f32.mrf.mxu0
      %v2904 = vadd.f32 %v2831, %v2903
      %v2905 = vpop.f32.mrf.mxu0
      %v2906 = vadd.f32 %v2833, %v2905
      %v2907 = vpop.f32.mrf.mxu0
      %v2908 = vadd.f32 %v2835, %v2907
      %v2909 = vpop.f32.mrf.mxu0
      %v2910 = vadd.f32 %v2837, %v2909
      %2911 = vmatprep.mubr.bf16.mxu0 0
      %2912 = vmatmul.mubr.bf16.gmra.mxu0 %v2774
      %v2913 = vpop.f32.mrf.mxu0
      %v2914 = vadd.f32 %v2841, %v2913
      %v2915 = vpop.f32.mrf.mxu0
      %v2916 = vadd.f32 %v2843, %v2915
      %v2917 = vpop.f32.mrf.mxu0
      %v2918 = vadd.f32 %v2845, %v2917
      %v2919 = vpop.f32.mrf.mxu0
      %v2920 = vadd.f32 %v2847, %v2919
      %2921 = vdwg.mxu0
      %s2922 = scalar_lea.vmem %s3, 736
      %v2923 = vld [vmem:[%s2922] sm:$0xff]
      %v2924 = vld [vmem:[%s2922 + $0x8] sm:$0xff]
      %v2925 = vld [vmem:[%s2922 + $0x10] sm:$0xff]
      %v2926 = vld [vmem:[%s2922 + $0x18] sm:$0xff]
      %v2927 = vld [vmem:[%s2922 + $0x20] sm:$0xff]
      %v2928 = vld [vmem:[%s2922 + $0x28] sm:$0xff]
      %v2929 = vld [vmem:[%s2922 + $0x30] sm:$0xff]
      %v2930 = vld [vmem:[%s2922 + $0x38] sm:$0xff]
      %v2931 = vld [vmem:[%s2922 + $0x40] sm:$0xff]
      %v2932 = vld [vmem:[%s2922 + $0x48] sm:$0xff]
      %v2933 = vld [vmem:[%s2922 + $0x50] sm:$0xff]
      %v2934 = vld [vmem:[%s2922 + $0x58] sm:$0xff]
      %v2935 = vld [vmem:[%s2922 + $0x60] sm:$0xff]
      %v2936 = vld [vmem:[%s2922 + $0x68] sm:$0xff]
      %v2937 = vld [vmem:[%s2922 + $0x70] sm:$0xff]
      %v2938 = vld [vmem:[%s2922 + $0x78] sm:$0xff]
      %v2939 = vld [vmem:[%s2922 + $0x80] sm:$0xff]
      %v2940 = vld [vmem:[%s2922 + $0x88] sm:$0xff]
      %v2941 = vld [vmem:[%s2922 + $0x90] sm:$0xff]
      %v2942 = vld [vmem:[%s2922 + $0x98] sm:$0xff]
      %v2943 = vld [vmem:[%s2922 + $0xa0] sm:$0xff]
      %v2944 = vld [vmem:[%s2922 + $0xa8] sm:$0xff]
      %v2945 = vld [vmem:[%s2922 + $0xb0] sm:$0xff]
      %v2946 = vld [vmem:[%s2922 + $0xb8] sm:$0xff]
      %v2947 = vld [vmem:[%s2922 + $0xc0] sm:$0xff]
      %v2948 = vld [vmem:[%s2922 + $0xc8] sm:$0xff]
      %v2949 = vld [vmem:[%s2922 + $0xd0] sm:$0xff]
      %v2950 = vld [vmem:[%s2922 + $0xd8] sm:$0xff]
      %v2951 = vld [vmem:[%s2922 + $0xe0] sm:$0xff]
      %v2952 = vld [vmem:[%s2922 + $0xe8] sm:$0xff]
      %v2953 = vld [vmem:[%s2922 + $0xf0] sm:$0xff]
      %v2954 = vld [vmem:[%s2922 + $0xf8] sm:$0xff]
      %v2955 = vld [vmem:[%s2922 + $0x100] sm:$0xff]
      %v2956 = vld [vmem:[%s2922 + $0x108] sm:$0xff]
      %v2957 = vld [vmem:[%s2922 + $0x110] sm:$0xff]
      %v2958 = vld [vmem:[%s2922 + $0x118] sm:$0xff]
      %v2959 = vld [vmem:[%s2922 + $0x120] sm:$0xff]
      %v2960 = vld [vmem:[%s2922 + $0x128] sm:$0xff]
      %v2961 = vld [vmem:[%s2922 + $0x130] sm:$0xff]
      %v2962 = vld [vmem:[%s2922 + $0x138] sm:$0xff]
      %v2963 = vld [vmem:[%s2922 + $0x140] sm:$0xff]
      %v2964 = vld [vmem:[%s2922 + $0x148] sm:$0xff]
      %v2965 = vld [vmem:[%s2922 + $0x150] sm:$0xff]
      %v2966 = vld [vmem:[%s2922 + $0x158] sm:$0xff]
      %v2967 = vld [vmem:[%s2922 + $0x160] sm:$0xff]
      %v2968 = vld [vmem:[%s2922 + $0x168] sm:$0xff]
      %v3015 = vunpack.c.l.b16 %v2923
      %v3016 = vunpack.c.h.b16 %v2923
      %v3017 = vunpack.c.l.b16 %v2924
      %v3018 = vunpack.c.h.b16 %v2924
      %v3019 = vunpack.c.l.b16 %v2925
      %v3020 = vunpack.c.h.b16 %v2925
      %v3021 = vunpack.c.l.b16 %v2926
      %v3022 = vunpack.c.h.b16 %v2926
      %v3023 = vunpack.c.l.b16 %v2927
      %v3024 = vunpack.c.h.b16 %v2927
      %v3025 = vunpack.c.l.b16 %v2928
      %v3026 = vunpack.c.h.b16 %v2928
      %v3027 = vunpack.c.l.b16 %v2929
      %v3028 = vunpack.c.h.b16 %v2929
      %v3029 = vunpack.c.l.b16 %v2930
      %v3030 = vunpack.c.h.b16 %v2930
      %v3031 = vunpack.c.l.b16 %v2931
      %v3032 = vunpack.c.h.b16 %v2931
      %v3033 = vunpack.c.l.b16 %v2932
      %v3034 = vunpack.c.h.b16 %v2932
      %v3035 = vunpack.c.l.b16 %v2933
      %v3036 = vunpack.c.h.b16 %v2933
      %v3037 = vunpack.c.l.b16 %v2934
      %v3038 = vunpack.c.h.b16 %v2934
      %v3039 = vunpack.c.l.b16 %v2935
      %v3040 = vunpack.c.h.b16 %v2935
      %v3041 = vunpack.c.l.b16 %v2936
      %v3042 = vunpack.c.h.b16 %v2936
      %v3043 = vunpack.c.l.b16 %v2937
      %v3044 = vunpack.c.h.b16 %v2937
      %v3045 = vunpack.c.l.b16 %v2938
      %v3046 = vunpack.c.h.b16 %v2938
      %v3047 = vunpack.c.l.b16 %v2939
      %v3048 = vunpack.c.h.b16 %v2939
      %v3049 = vunpack.c.l.b16 %v2940
      %v3050 = vunpack.c.h.b16 %v2940
      %v3051 = vunpack.c.l.b16 %v2941
      %v3052 = vunpack.c.h.b16 %v2941
      %v3053 = vunpack.c.l.b16 %v2942
      %v3054 = vunpack.c.h.b16 %v2942
      %v3055 = vunpack.c.l.b16 %v2943
      %v3056 = vunpack.c.h.b16 %v2943
      %v3057 = vunpack.c.l.b16 %v2944
      %v3058 = vunpack.c.h.b16 %v2944
      %v3059 = vunpack.c.l.b16 %v2945
      %v3060 = vunpack.c.h.b16 %v2945
      %v3061 = vunpack.c.l.b16 %v2946
      %v3062 = vunpack.c.h.b16 %v2946
      %v3063 = vunpack.c.l.b16 %v2947
      %v3064 = vunpack.c.h.b16 %v2947
      %v3065 = vunpack.c.l.b16 %v2948
      %v3066 = vunpack.c.h.b16 %v2948
      %v3067 = vunpack.c.l.b16 %v2949
      %v3068 = vunpack.c.h.b16 %v2949
      %v3069 = vunpack.c.l.b16 %v2950
      %v3070 = vunpack.c.h.b16 %v2950
      %v3071 = vunpack.c.l.b16 %v2951
      %v3072 = vunpack.c.h.b16 %v2951
      %v3073 = vunpack.c.l.b16 %v2952
      %v3074 = vunpack.c.h.b16 %v2952
      %v3075 = vunpack.c.l.b16 %v2953
      %v3076 = vunpack.c.h.b16 %v2953
      %v3077 = vunpack.c.l.b16 %v2954
      %v3078 = vunpack.c.h.b16 %v2954
      %v3079 = vunpack.c.l.b16 %v2955
      %v3080 = vunpack.c.h.b16 %v2955
      %v3081 = vunpack.c.l.b16 %v2956
      %v3082 = vunpack.c.h.b16 %v2956
      %v3083 = vunpack.c.l.b16 %v2957
      %v3084 = vunpack.c.h.b16 %v2957
      %v3085 = vunpack.c.l.b16 %v2958
      %v3086 = vunpack.c.h.b16 %v2958
      %v3087 = vunpack.c.l.b16 %v2959
      %v3088 = vunpack.c.h.b16 %v2959
      %v3089 = vunpack.c.l.b16 %v2960
      %v3090 = vunpack.c.h.b16 %v2960
      %v3091 = vunpack.c.l.b16 %v2961
      %v3092 = vunpack.c.h.b16 %v2961
      %v3093 = vunpack.c.l.b16 %v2962
      %v3094 = vunpack.c.h.b16 %v2962
      %v3095 = vunpack.c.l.b16 %v2963
      %v3096 = vunpack.c.h.b16 %v2963
      %v3097 = vunpack.c.l.b16 %v2964
      %v3098 = vunpack.c.h.b16 %v2964
      %v3099 = vunpack.c.l.b16 %v2965
      %v3100 = vunpack.c.h.b16 %v2965
      %v3101 = vunpack.c.l.b16 %v2966
      %v3102 = vunpack.c.h.b16 %v2966
      %v3103 = vunpack.c.l.b16 %v2967
      %v3104 = vunpack.c.h.b16 %v2967
      %v3105 = vunpack.c.l.b16 %v2968
      %v3106 = vunpack.c.h.b16 %v2968
      %v3107 = vpack.c.b16 %v3017, %v3015
      %v3108 = vpack.c.b16 %v3018, %v3016
      %v3109 = vpack.c.b16 %v3021, %v3019
      %v3110 = vpack.c.b16 %v3022, %v3020
      %v3111 = vpack.c.b16 %v3025, %v3023
      %v3112 = vpack.c.b16 %v3026, %v3024
      %v3113 = vpack.c.b16 %v3029, %v3027
      %v3114 = vpack.c.b16 %v3030, %v3028
      %v3115 = vpack.c.b16 %v3033, %v3031
      %v3116 = vpack.c.b16 %v3034, %v3032
      %v3117 = vpack.c.b16 %v3037, %v3035
      %v3118 = vpack.c.b16 %v3038, %v3036
      %v3119 = vpack.c.b16 %v3041, %v3039
      %v3120 = vpack.c.b16 %v3042, %v3040
      %v3121 = vpack.c.b16 %v3045, %v3043
      %v3122 = vpack.c.b16 %v3046, %v3044
      %v3123 = vpack.c.b16 %v3049, %v3047
      %v3124 = vpack.c.b16 %v3050, %v3048
      %v3125 = vpack.c.b16 %v3053, %v3051
      %v3126 = vpack.c.b16 %v3054, %v3052
      %v3127 = vpack.c.b16 %v3057, %v3055
      %v3128 = vpack.c.b16 %v3058, %v3056
      %v3129 = vpack.c.b16 %v3061, %v3059
      %v3130 = vpack.c.b16 %v3062, %v3060
      %v3131 = vpack.c.b16 %v3065, %v3063
      %v3132 = vpack.c.b16 %v3066, %v3064
      %v3133 = vpack.c.b16 %v3069, %v3067
      %v3134 = vpack.c.b16 %v3070, %v3068
      %v3135 = vpack.c.b16 %v3073, %v3071
      %v3136 = vpack.c.b16 %v3074, %v3072
      %v3137 = vpack.c.b16 %v3077, %v3075
      %v3138 = vpack.c.b16 %v3078, %v3076
      %v3139 = vpack.c.b16 %v3081, %v3079
      %v3140 = vpack.c.b16 %v3082, %v3080
      %v3141 = vpack.c.b16 %v3085, %v3083
      %v3142 = vpack.c.b16 %v3086, %v3084
      %v3143 = vpack.c.b16 %v3089, %v3087
      %v3144 = vpack.c.b16 %v3090, %v3088
      %v3145 = vpack.c.b16 %v3093, %v3091
      %v3146 = vpack.c.b16 %v3094, %v3092
      %v3147 = vpack.c.b16 %v3097, %v3095
      %v3148 = vpack.c.b16 %v3098, %v3096
      %v3149 = vpack.c.b16 %v3101, %v3099
      %v3150 = vpack.c.b16 %v3102, %v3100
      %v3151 = vpack.c.b16 %v3105, %v3103
      %v3152 = vpack.c.b16 %v3106, %v3104
      %v3200 = vsel %vm1716, %v1827, 0
      %3202 = vmatprep.subr.bf16.mxu0 %v3122
      %3203 = vmatpush1.bf16.msra.mxu0 %v3121
      %3204 = vmatprep.subr.bf16.mxu0 %v3120
      %3205 = vmatpush1.bf16.msra.mxu0 %v3119
      %3206 = vmatprep.subr.bf16.mxu0 %v3118
      %3207 = vmatpush1.bf16.msra.mxu0 %v3117
      %3208 = vmatprep.subr.bf16.mxu0 %v3116
      %3209 = vmatpush1.bf16.msra.mxu0 %v3115
      %3210 = vmatprep.subr.bf16.mxu0 %v3114
      %3211 = vmatpush1.bf16.msra.mxu0 %v3113
      %3212 = vmatprep.subr.bf16.mxu0 %v3112
      %3213 = vmatpush1.bf16.msra.mxu0 %v3111
      %3214 = vmatprep.subr.bf16.mxu0 %v3110
      %3215 = vmatpush1.bf16.msra.mxu0 %v3109
      %3216 = vmatprep.subr.bf16.mxu0 %v3108
      %3217 = vmatpush1.bf16.msra.mxu0 %v3107
      %3218 = vmatprep.subr.bf16.mxu0 %v3138
      %3219 = vmatpush2.bf16.msra.mxu0 %v3137
      %3220 = vmatprep.subr.bf16.mxu0 %v3136
      %3221 = vmatpush2.bf16.msra.mxu0 %v3135
      %3222 = vmatprep.subr.bf16.mxu0 %v3134
      %3223 = vmatpush2.bf16.msra.mxu0 %v3133
      %3224 = vmatprep.subr.bf16.mxu0 %v3132
      %3225 = vmatpush2.bf16.msra.mxu0 %v3131
      %3226 = vmatprep.subr.bf16.mxu0 %v3130
      %3227 = vmatpush2.bf16.msra.mxu0 %v3129
      %3228 = vmatprep.subr.bf16.mxu0 %v3128
      %3229 = vmatpush2.bf16.msra.mxu0 %v3127
      %3230 = vmatprep.subr.bf16.mxu0 %v3126
      %3231 = vmatpush2.bf16.msra.mxu0 %v3125
      %3232 = vmatprep.subr.bf16.mxu0 %v3124
      %3233 = vmatpush2.bf16.msra.mxu0 %v3123
      %3234 = vmatprep.mubr.bf16.mxu0 %v1817
      %3235 = vmatmul.mubr.bf16.gmra.mxu0 %v1816
      %v3236 = vpop.f32.mrf.mxu0
      %v3237 = vadd.f32 0.0, %v3236
      %v3238 = vpop.f32.mrf.mxu0
      %v3239 = vadd.f32 0.0, %v3238
      %v3240 = vpop.f32.mrf.mxu0
      %v3241 = vadd.f32 0.0, %v3240
      %v3242 = vpop.f32.mrf.mxu0
      %v3243 = vadd.f32 0.0, %v3242
      %3244 = vmatprep.mubr.bf16.mxu0 %v1820
      %3245 = vmatmul.mubr.bf16.gmra.mxu0 %v1819
      %v3246 = vpop.f32.mrf.mxu0
      %v3247 = vadd.f32 0.0, %v3246
      %v3248 = vpop.f32.mrf.mxu0
      %v3249 = vadd.f32 0.0, %v3248
      %v3250 = vpop.f32.mrf.mxu0
      %v3251 = vadd.f32 0.0, %v3250
      %v3252 = vpop.f32.mrf.mxu0
      %v3253 = vadd.f32 0.0, %v3252
      %3254 = vmatprep.mubr.bf16.mxu0 %v1823
      %3255 = vmatmul.mubr.bf16.gmra.mxu0 %v1822
      %v3256 = vpop.f32.mrf.mxu0
      %v3257 = vadd.f32 0.0, %v3256
      %v3258 = vpop.f32.mrf.mxu0
      %v3259 = vadd.f32 0.0, %v3258
      %v3260 = vpop.f32.mrf.mxu0
      %v3261 = vadd.f32 0.0, %v3260
      %v3262 = vpop.f32.mrf.mxu0
      %v3263 = vadd.f32 0.0, %v3262
      %3264 = vmatprep.mubr.bf16.mxu0 %v1826
      %3265 = vmatmul.mubr.bf16.gmra.mxu0 %v1825
      %v3266 = vpop.f32.mrf.mxu0
      %v3267 = vadd.f32 0.0, %v3266
      %v3268 = vpop.f32.mrf.mxu0
      %v3269 = vadd.f32 0.0, %v3268
      %v3270 = vpop.f32.mrf.mxu0
      %v3271 = vadd.f32 0.0, %v3270
      %v3272 = vpop.f32.mrf.mxu0
      %v3273 = vadd.f32 0.0, %v3272
      %3274 = vdwg.mxu0
      %3275 = vmatprep.subr.bf16.mxu0 0
      %3276 = vmatpush1.bf16.msra.mxu0 0
      %3277 = vmatprep.subr.bf16.mxu0 %v3152
      %3278 = vmatpush1.bf16.msra.mxu0 %v3151
      %3279 = vmatprep.subr.bf16.mxu0 %v3150
      %3280 = vmatpush1.bf16.msra.mxu0 %v3149
      %3281 = vmatprep.subr.bf16.mxu0 %v3148
      %3282 = vmatpush1.bf16.msra.mxu0 %v3147
      %3283 = vmatprep.subr.bf16.mxu0 %v3146
      %3284 = vmatpush1.bf16.msra.mxu0 %v3145
      %3285 = vmatprep.subr.bf16.mxu0 %v3144
      %3286 = vmatpush1.bf16.msra.mxu0 %v3143
      %3287 = vmatprep.subr.bf16.mxu0 %v3142
      %3288 = vmatpush1.bf16.msra.mxu0 %v3141
      %3289 = vmatprep.subr.bf16.mxu0 %v3140
      %3290 = vmatpush1.bf16.msra.mxu0 %v3139
      %3291 = vmatprep.subr.bf16.mxu0 0
      %3292 = vmatpush2.bf16.msra.mxu0 0
      %3293 = vmatprep.subr.bf16.mxu0 0
      %3294 = vmatpush2.bf16.msra.mxu0 0
      %3295 = vmatprep.subr.bf16.mxu0 0
      %3296 = vmatpush2.bf16.msra.mxu0 0
      %3297 = vmatprep.subr.bf16.mxu0 0
      %3298 = vmatpush2.bf16.msra.mxu0 0
      %3299 = vmatprep.subr.bf16.mxu0 0
      %3300 = vmatpush2.bf16.msra.mxu0 0
      %3301 = vmatprep.subr.bf16.mxu0 0
      %3302 = vmatpush2.bf16.msra.mxu0 0
      %3303 = vmatprep.subr.bf16.mxu0 0
      %3304 = vmatpush2.bf16.msra.mxu0 0
      %3305 = vmatprep.subr.bf16.mxu0 0
      %3306 = vmatpush2.bf16.msra.mxu0 0
      %3307 = vmatprep.mubr.bf16.mxu0 0
      %3308 = vmatmul.mubr.bf16.gmra.mxu0 %v2768
      %v3309 = vpop.f32.mrf.mxu0
      %v3310 = vadd.f32 %v3237, %v3309
      %v3311 = vpop.f32.mrf.mxu0
      %v3312 = vadd.f32 %v3239, %v3311
      %v3313 = vpop.f32.mrf.mxu0
      %v3314 = vadd.f32 %v3241, %v3313
      %v3315 = vpop.f32.mrf.mxu0
      %v3316 = vadd.f32 %v3243, %v3315
      %3317 = vmatprep.mubr.bf16.mxu0 0
      %3318 = vmatmul.mubr.bf16.gmra.mxu0 %v2771
      %v3319 = vpop.f32.mrf.mxu0
      %v3320 = vadd.f32 %v3247, %v3319
      %v3321 = vpop.f32.mrf.mxu0
      %v3322 = vadd.f32 %v3249, %v3321
      %v3323 = vpop.f32.mrf.mxu0
      %v3324 = vadd.f32 %v3251, %v3323
      %v3325 = vpop.f32.mrf.mxu0
      %v3326 = vadd.f32 %v3253, %v3325
      %3327 = vmatprep.mubr.bf16.mxu0 0
      %3328 = vmatmul.mubr.bf16.gmra.mxu0 %v2774
      %v3329 = vpop.f32.mrf.mxu0
      %v3330 = vadd.f32 %v3257, %v3329
      %v3331 = vpop.f32.mrf.mxu0
      %v3332 = vadd.f32 %v3259, %v3331
      %v3333 = vpop.f32.mrf.mxu0
      %v3334 = vadd.f32 %v3261, %v3333
      %v3335 = vpop.f32.mrf.mxu0
      %v3336 = vadd.f32 %v3263, %v3335
      %3337 = vmatprep.mubr.bf16.mxu0 0
      %3338 = vmatmul.mubr.bf16.gmra.mxu0 %v3200
      %v3339 = vpop.f32.mrf.mxu0
      %v3340 = vadd.f32 %v3267, %v3339
      %v3341 = vpop.f32.mrf.mxu0
      %v3342 = vadd.f32 %v3269, %v3341
      %v3343 = vpop.f32.mrf.mxu0
      %v3344 = vadd.f32 %v3271, %v3343
      %v3345 = vpop.f32.mrf.mxu0
      %v3346 = vadd.f32 %v3273, %v3345
      %3347 = vdwg.mxu0
      %v3348 = vadd.f32 %v2884, %v3310
      %v3349 = vadd.f32 %v2886, %v3312
      %v3350 = vadd.f32 %v2888, %v3314
      %v3351 = vadd.f32 %v2890, %v3316
      %v3352 = vadd.f32 %v2894, %v3320
      %v3353 = vadd.f32 %v2896, %v3322
      %v3354 = vadd.f32 %v2898, %v3324
      %v3355 = vadd.f32 %v2900, %v3326
      %v3356 = vadd.f32 %v2904, %v3330
      %v3357 = vadd.f32 %v2906, %v3332
      %v3358 = vadd.f32 %v2908, %v3334
      %v3359 = vadd.f32 %v2910, %v3336
      %v3360 = vadd.f32 %v2914, %v3340
      %v3361 = vadd.f32 %v2916, %v3342
      %v3362 = vadd.f32 %v2918, %v3344
      %v3363 = vadd.f32 %v2920, %v3346
      %s3364 = scalar_lea.vmem %s3, 1104
      %v3365 = vld [vmem:[%s3364] sm:$0xff]
      %v3366 = vld [vmem:[%s3364 + $0x8] sm:$0xff]
      %v3367 = vld [vmem:[%s3364 + $0x10] sm:$0xff]
      %v3368 = vld [vmem:[%s3364 + $0x18] sm:$0xff]
      %v3369 = vld [vmem:[%s3364 + $0x20] sm:$0xff]
      %v3370 = vld [vmem:[%s3364 + $0x28] sm:$0xff]
      %v3371 = vld [vmem:[%s3364 + $0x30] sm:$0xff]
      %v3372 = vld [vmem:[%s3364 + $0x38] sm:$0xff]
      %v3373 = vld [vmem:[%s3364 + $0x40] sm:$0xff]
      %v3374 = vld [vmem:[%s3364 + $0x48] sm:$0xff]
      %v3375 = vld [vmem:[%s3364 + $0x50] sm:$0xff]
      %v3376 = vld [vmem:[%s3364 + $0x58] sm:$0xff]
      %v3377 = vld [vmem:[%s3364 + $0x60] sm:$0xff]
      %v3378 = vld [vmem:[%s3364 + $0x68] sm:$0xff]
      %v3379 = vld [vmem:[%s3364 + $0x70] sm:$0xff]
      %v3380 = vld [vmem:[%s3364 + $0x78] sm:$0xff]
      %v3381 = vld [vmem:[%s3364 + $0x80] sm:$0xff]
      %v3382 = vld [vmem:[%s3364 + $0x88] sm:$0xff]
      %v3383 = vld [vmem:[%s3364 + $0x90] sm:$0xff]
      %v3384 = vld [vmem:[%s3364 + $0x98] sm:$0xff]
      %v3385 = vld [vmem:[%s3364 + $0xa0] sm:$0xff]
      %v3386 = vld [vmem:[%s3364 + $0xa8] sm:$0xff]
      %v3387 = vld [vmem:[%s3364 + $0xb0] sm:$0xff]
      %v3388 = vld [vmem:[%s3364 + $0xb8] sm:$0xff]
      %v3389 = vld [vmem:[%s3364 + $0xc0] sm:$0xff]
      %v3390 = vld [vmem:[%s3364 + $0xc8] sm:$0xff]
      %v3391 = vld [vmem:[%s3364 + $0xd0] sm:$0xff]
      %v3392 = vld [vmem:[%s3364 + $0xd8] sm:$0xff]
      %v3393 = vld [vmem:[%s3364 + $0xe0] sm:$0xff]
      %v3394 = vld [vmem:[%s3364 + $0xe8] sm:$0xff]
      %v3395 = vld [vmem:[%s3364 + $0xf0] sm:$0xff]
      %v3396 = vld [vmem:[%s3364 + $0xf8] sm:$0xff]
      %v3397 = vld [vmem:[%s3364 + $0x100] sm:$0xff]
      %v3398 = vld [vmem:[%s3364 + $0x108] sm:$0xff]
      %v3399 = vld [vmem:[%s3364 + $0x110] sm:$0xff]
      %v3400 = vld [vmem:[%s3364 + $0x118] sm:$0xff]
      %v3401 = vld [vmem:[%s3364 + $0x120] sm:$0xff]
      %v3402 = vld [vmem:[%s3364 + $0x128] sm:$0xff]
      %v3403 = vld [vmem:[%s3364 + $0x130] sm:$0xff]
      %v3404 = vld [vmem:[%s3364 + $0x138] sm:$0xff]
      %v3405 = vld [vmem:[%s3364 + $0x140] sm:$0xff]
      %v3406 = vld [vmem:[%s3364 + $0x148] sm:$0xff]
      %v3407 = vld [vmem:[%s3364 + $0x150] sm:$0xff]
      %v3408 = vld [vmem:[%s3364 + $0x158] sm:$0xff]
      %v3409 = vld [vmem:[%s3364 + $0x160] sm:$0xff]
      %v3410 = vld [vmem:[%s3364 + $0x168] sm:$0xff]
      %v3457 = vunpack.c.l.b16 %v3365
      %v3458 = vunpack.c.h.b16 %v3365
      %v3459 = vunpack.c.l.b16 %v3366
      %v3460 = vunpack.c.h.b16 %v3366
      %v3461 = vunpack.c.l.b16 %v3367
      %v3462 = vunpack.c.h.b16 %v3367
      %v3463 = vunpack.c.l.b16 %v3368
      %v3464 = vunpack.c.h.b16 %v3368
      %v3465 = vunpack.c.l.b16 %v3369
      %v3466 = vunpack.c.h.b16 %v3369
      %v3467 = vunpack.c.l.b16 %v3370
      %v3468 = vunpack.c.h.b16 %v3370
      %v3469 = vunpack.c.l.b16 %v3371
      %v3470 = vunpack.c.h.b16 %v3371
      %v3471 = vunpack.c.l.b16 %v3372
      %v3472 = vunpack.c.h.b16 %v3372
      %v3473 = vunpack.c.l.b16 %v3373
      %v3474 = vunpack.c.h.b16 %v3373
      %v3475 = vunpack.c.l.b16 %v3374
      %v3476 = vunpack.c.h.b16 %v3374
      %v3477 = vunpack.c.l.b16 %v3375
      %v3478 = vunpack.c.h.b16 %v3375
      %v3479 = vunpack.c.l.b16 %v3376
      %v3480 = vunpack.c.h.b16 %v3376
      %v3481 = vunpack.c.l.b16 %v3377
      %v3482 = vunpack.c.h.b16 %v3377
      %v3483 = vunpack.c.l.b16 %v3378
      %v3484 = vunpack.c.h.b16 %v3378
      %v3485 = vunpack.c.l.b16 %v3379
      %v3486 = vunpack.c.h.b16 %v3379
      %v3487 = vunpack.c.l.b16 %v3380
      %v3488 = vunpack.c.h.b16 %v3380
      %v3489 = vunpack.c.l.b16 %v3381
      %v3490 = vunpack.c.h.b16 %v3381
      %v3491 = vunpack.c.l.b16 %v3382
      %v3492 = vunpack.c.h.b16 %v3382
      %v3493 = vunpack.c.l.b16 %v3383
      %v3494 = vunpack.c.h.b16 %v3383
      %v3495 = vunpack.c.l.b16 %v3384
      %v3496 = vunpack.c.h.b16 %v3384
      %v3497 = vunpack.c.l.b16 %v3385
      %v3498 = vunpack.c.h.b16 %v3385
      %v3499 = vunpack.c.l.b16 %v3386
      %v3500 = vunpack.c.h.b16 %v3386
      %v3501 = vunpack.c.l.b16 %v3387
      %v3502 = vunpack.c.h.b16 %v3387
      %v3503 = vunpack.c.l.b16 %v3388
      %v3504 = vunpack.c.h.b16 %v3388
      %v3505 = vunpack.c.l.b16 %v3389
      %v3506 = vunpack.c.h.b16 %v3389
      %v3507 = vunpack.c.l.b16 %v3390
      %v3508 = vunpack.c.h.b16 %v3390
      %v3509 = vunpack.c.l.b16 %v3391
      %v3510 = vunpack.c.h.b16 %v3391
      %v3511 = vunpack.c.l.b16 %v3392
      %v3512 = vunpack.c.h.b16 %v3392
      %v3513 = vunpack.c.l.b16 %v3393
      %v3514 = vunpack.c.h.b16 %v3393
      %v3515 = vunpack.c.l.b16 %v3394
      %v3516 = vunpack.c.h.b16 %v3394
      %v3517 = vunpack.c.l.b16 %v3395
      %v3518 = vunpack.c.h.b16 %v3395
      %v3519 = vunpack.c.l.b16 %v3396
      %v3520 = vunpack.c.h.b16 %v3396
      %v3521 = vunpack.c.l.b16 %v3397
      %v3522 = vunpack.c.h.b16 %v3397
      %v3523 = vunpack.c.l.b16 %v3398
      %v3524 = vunpack.c.h.b16 %v3398
      %v3525 = vunpack.c.l.b16 %v3399
      %v3526 = vunpack.c.h.b16 %v3399
      %v3527 = vunpack.c.l.b16 %v3400
      %v3528 = vunpack.c.h.b16 %v3400
      %v3529 = vunpack.c.l.b16 %v3401
      %v3530 = vunpack.c.h.b16 %v3401
      %v3531 = vunpack.c.l.b16 %v3402
      %v3532 = vunpack.c.h.b16 %v3402
      %v3533 = vunpack.c.l.b16 %v3403
      %v3534 = vunpack.c.h.b16 %v3403
      %v3535 = vunpack.c.l.b16 %v3404
      %v3536 = vunpack.c.h.b16 %v3404
      %v3537 = vunpack.c.l.b16 %v3405
      %v3538 = vunpack.c.h.b16 %v3405
      %v3539 = vunpack.c.l.b16 %v3406
      %v3540 = vunpack.c.h.b16 %v3406
      %v3541 = vunpack.c.l.b16 %v3407
      %v3542 = vunpack.c.h.b16 %v3407
      %v3543 = vunpack.c.l.b16 %v3408
      %v3544 = vunpack.c.h.b16 %v3408
      %v3545 = vunpack.c.l.b16 %v3409
      %v3546 = vunpack.c.h.b16 %v3409
      %v3547 = vunpack.c.l.b16 %v3410
      %v3548 = vunpack.c.h.b16 %v3410
      %v3549 = vpack.c.b16 %v3459, %v3457
      %v3550 = vpack.c.b16 %v3460, %v3458
      %v3551 = vpack.c.b16 %v3463, %v3461
      %v3552 = vpack.c.b16 %v3464, %v3462
      %v3553 = vpack.c.b16 %v3467, %v3465
      %v3554 = vpack.c.b16 %v3468, %v3466
      %v3555 = vpack.c.b16 %v3471, %v3469
      %v3556 = vpack.c.b16 %v3472, %v3470
      %v3557 = vpack.c.b16 %v3475, %v3473
      %v3558 = vpack.c.b16 %v3476, %v3474
      %v3559 = vpack.c.b16 %v3479, %v3477
      %v3560 = vpack.c.b16 %v3480, %v3478
      %v3561 = vpack.c.b16 %v3483, %v3481
      %v3562 = vpack.c.b16 %v3484, %v3482
      %v3563 = vpack.c.b16 %v3487, %v3485
      %v3564 = vpack.c.b16 %v3488, %v3486
      %v3565 = vpack.c.b16 %v3491, %v3489
      %v3566 = vpack.c.b16 %v3492, %v3490
      %v3567 = vpack.c.b16 %v3495, %v3493
      %v3568 = vpack.c.b16 %v3496, %v3494
      %v3569 = vpack.c.b16 %v3499, %v3497
      %v3570 = vpack.c.b16 %v3500, %v3498
      %v3571 = vpack.c.b16 %v3503, %v3501
      %v3572 = vpack.c.b16 %v3504, %v3502
      %v3573 = vpack.c.b16 %v3507, %v3505
      %v3574 = vpack.c.b16 %v3508, %v3506
      %v3575 = vpack.c.b16 %v3511, %v3509
      %v3576 = vpack.c.b16 %v3512, %v3510
      %v3577 = vpack.c.b16 %v3515, %v3513
      %v3578 = vpack.c.b16 %v3516, %v3514
      %v3579 = vpack.c.b16 %v3519, %v3517
      %v3580 = vpack.c.b16 %v3520, %v3518
      %v3581 = vpack.c.b16 %v3523, %v3521
      %v3582 = vpack.c.b16 %v3524, %v3522
      %v3583 = vpack.c.b16 %v3527, %v3525
      %v3584 = vpack.c.b16 %v3528, %v3526
      %v3585 = vpack.c.b16 %v3531, %v3529
      %v3586 = vpack.c.b16 %v3532, %v3530
      %v3587 = vpack.c.b16 %v3535, %v3533
      %v3588 = vpack.c.b16 %v3536, %v3534
      %v3589 = vpack.c.b16 %v3539, %v3537
      %v3590 = vpack.c.b16 %v3540, %v3538
      %v3591 = vpack.c.b16 %v3543, %v3541
      %v3592 = vpack.c.b16 %v3544, %v3542
      %v3593 = vpack.c.b16 %v3547, %v3545
      %v3594 = vpack.c.b16 %v3548, %v3546
      %v3642 = vsel %vm1716, %v2049, 0
      %3644 = vmatprep.subr.bf16.mxu0 %v3564
      %3645 = vmatpush1.bf16.msra.mxu0 %v3563
      %3646 = vmatprep.subr.bf16.mxu0 %v3562
      %3647 = vmatpush1.bf16.msra.mxu0 %v3561
      %3648 = vmatprep.subr.bf16.mxu0 %v3560
      %3649 = vmatpush1.bf16.msra.mxu0 %v3559
      %3650 = vmatprep.subr.bf16.mxu0 %v3558
      %3651 = vmatpush1.bf16.msra.mxu0 %v3557
      %3652 = vmatprep.subr.bf16.mxu0 %v3556
      %3653 = vmatpush1.bf16.msra.mxu0 %v3555
      %3654 = vmatprep.subr.bf16.mxu0 %v3554
      %3655 = vmatpush1.bf16.msra.mxu0 %v3553
      %3656 = vmatprep.subr.bf16.mxu0 %v3552
      %3657 = vmatpush1.bf16.msra.mxu0 %v3551
      %3658 = vmatprep.subr.bf16.mxu0 %v3550
      %3659 = vmatpush1.bf16.msra.mxu0 %v3549
      %3660 = vmatprep.subr.bf16.mxu0 %v3580
      %3661 = vmatpush2.bf16.msra.mxu0 %v3579
      %3662 = vmatprep.subr.bf16.mxu0 %v3578
      %3663 = vmatpush2.bf16.msra.mxu0 %v3577
      %3664 = vmatprep.subr.bf16.mxu0 %v3576
      %3665 = vmatpush2.bf16.msra.mxu0 %v3575
      %3666 = vmatprep.subr.bf16.mxu0 %v3574
      %3667 = vmatpush2.bf16.msra.mxu0 %v3573
      %3668 = vmatprep.subr.bf16.mxu0 %v3572
      %3669 = vmatpush2.bf16.msra.mxu0 %v3571
      %3670 = vmatprep.subr.bf16.mxu0 %v3570
      %3671 = vmatpush2.bf16.msra.mxu0 %v3569
      %3672 = vmatprep.subr.bf16.mxu0 %v3568
      %3673 = vmatpush2.bf16.msra.mxu0 %v3567
      %3674 = vmatprep.subr.bf16.mxu0 %v3566
      %3675 = vmatpush2.bf16.msra.mxu0 %v3565
      %3676 = vmatprep.mubr.bf16.mxu0 %v2039
      %3677 = vmatmul.mubr.bf16.gmra.mxu0 %v2038
      %v3678 = vpop.f32.mrf.mxu0
      %v3679 = vadd.f32 0.0, %v3678
      %v3680 = vpop.f32.mrf.mxu0
      %v3681 = vadd.f32 0.0, %v3680
      %v3682 = vpop.f32.mrf.mxu0
      %v3683 = vadd.f32 0.0, %v3682
      %v3684 = vpop.f32.mrf.mxu0
      %v3685 = vadd.f32 0.0, %v3684
      %3686 = vmatprep.mubr.bf16.mxu0 %v2042
      %3687 = vmatmul.mubr.bf16.gmra.mxu0 %v2041
      %v3688 = vpop.f32.mrf.mxu0
      %v3689 = vadd.f32 0.0, %v3688
      %v3690 = vpop.f32.mrf.mxu0
      %v3691 = vadd.f32 0.0, %v3690
      %v3692 = vpop.f32.mrf.mxu0
      %v3693 = vadd.f32 0.0, %v3692
      %v3694 = vpop.f32.mrf.mxu0
      %v3695 = vadd.f32 0.0, %v3694
      %3696 = vmatprep.mubr.bf16.mxu0 %v2045
      %3697 = vmatmul.mubr.bf16.gmra.mxu0 %v2044
      %v3698 = vpop.f32.mrf.mxu0
      %v3699 = vadd.f32 0.0, %v3698
      %v3700 = vpop.f32.mrf.mxu0
      %v3701 = vadd.f32 0.0, %v3700
      %v3702 = vpop.f32.mrf.mxu0
      %v3703 = vadd.f32 0.0, %v3702
      %v3704 = vpop.f32.mrf.mxu0
      %v3705 = vadd.f32 0.0, %v3704
      %3706 = vmatprep.mubr.bf16.mxu0 %v2048
      %3707 = vmatmul.mubr.bf16.gmra.mxu0 %v2047
      %v3708 = vpop.f32.mrf.mxu0
      %v3709 = vadd.f32 0.0, %v3708
      %v3710 = vpop.f32.mrf.mxu0
      %v3711 = vadd.f32 0.0, %v3710
      %v3712 = vpop.f32.mrf.mxu0
      %v3713 = vadd.f32 0.0, %v3712
      %v3714 = vpop.f32.mrf.mxu0
      %v3715 = vadd.f32 0.0, %v3714
      %3716 = vdwg.mxu0
      %3717 = vmatprep.subr.bf16.mxu0 0
      %3718 = vmatpush1.bf16.msra.mxu0 0
      %3719 = vmatprep.subr.bf16.mxu0 %v3594
      %3720 = vmatpush1.bf16.msra.mxu0 %v3593
      %3721 = vmatprep.subr.bf16.mxu0 %v3592
      %3722 = vmatpush1.bf16.msra.mxu0 %v3591
      %3723 = vmatprep.subr.bf16.mxu0 %v3590
      %3724 = vmatpush1.bf16.msra.mxu0 %v3589
      %3725 = vmatprep.subr.bf16.mxu0 %v3588
      %3726 = vmatpush1.bf16.msra.mxu0 %v3587
      %3727 = vmatprep.subr.bf16.mxu0 %v3586
      %3728 = vmatpush1.bf16.msra.mxu0 %v3585
      %3729 = vmatprep.subr.bf16.mxu0 %v3584
      %3730 = vmatpush1.bf16.msra.mxu0 %v3583
      %3731 = vmatprep.subr.bf16.mxu0 %v3582
      %3732 = vmatpush1.bf16.msra.mxu0 %v3581
      %3733 = vmatprep.subr.bf16.mxu0 0
      %3734 = vmatpush2.bf16.msra.mxu0 0
      %3735 = vmatprep.subr.bf16.mxu0 0
      %3736 = vmatpush2.bf16.msra.mxu0 0
      %3737 = vmatprep.subr.bf16.mxu0 0
      %3738 = vmatpush2.bf16.msra.mxu0 0
      %3739 = vmatprep.subr.bf16.mxu0 0
      %3740 = vmatpush2.bf16.msra.mxu0 0
      %3741 = vmatprep.subr.bf16.mxu0 0
      %3742 = vmatpush2.bf16.msra.mxu0 0
      %3743 = vmatprep.subr.bf16.mxu0 0
      %3744 = vmatpush2.bf16.msra.mxu0 0
      %3745 = vmatprep.subr.bf16.mxu0 0
      %3746 = vmatpush2.bf16.msra.mxu0 0
      %3747 = vmatprep.subr.bf16.mxu0 0
      %3748 = vmatpush2.bf16.msra.mxu0 0
      %3749 = vmatprep.mubr.bf16.mxu0 0
      %3750 = vmatmul.mubr.bf16.gmra.mxu0 %v2380
      %v3751 = vpop.f32.mrf.mxu0
      %v3752 = vadd.f32 %v3679, %v3751
      %v3753 = vpop.f32.mrf.mxu0
      %v3754 = vadd.f32 %v3681, %v3753
      %v3755 = vpop.f32.mrf.mxu0
      %v3756 = vadd.f32 %v3683, %v3755
      %v3757 = vpop.f32.mrf.mxu0
      %v3758 = vadd.f32 %v3685, %v3757
      %3759 = vmatprep.mubr.bf16.mxu0 0
      %3760 = vmatmul.mubr.bf16.gmra.mxu0 %v2383
      %v3761 = vpop.f32.mrf.mxu0
      %v3762 = vadd.f32 %v3689, %v3761
      %v3763 = vpop.f32.mrf.mxu0
      %v3764 = vadd.f32 %v3691, %v3763
      %v3765 = vpop.f32.mrf.mxu0
      %v3766 = vadd.f32 %v3693, %v3765
      %v3767 = vpop.f32.mrf.mxu0
      %v3768 = vadd.f32 %v3695, %v3767
      %3769 = vmatprep.mubr.bf16.mxu0 0
      %3770 = vmatmul.mubr.bf16.gmra.mxu0 %v2386
      %v3771 = vpop.f32.mrf.mxu0
      %v3772 = vadd.f32 %v3699, %v3771
      %v3773 = vpop.f32.mrf.mxu0
      %v3774 = vadd.f32 %v3701, %v3773
      %v3775 = vpop.f32.mrf.mxu0
      %v3776 = vadd.f32 %v3703, %v3775
      %v3777 = vpop.f32.mrf.mxu0
      %v3778 = vadd.f32 %v3705, %v3777
      %3779 = vmatprep.mubr.bf16.mxu0 0
      %3780 = vmatmul.mubr.bf16.gmra.mxu0 %v3642
      %v3781 = vpop.f32.mrf.mxu0
      %v3782 = vadd.f32 %v3709, %v3781
      %v3783 = vpop.f32.mrf.mxu0
      %v3784 = vadd.f32 %v3711, %v3783
      %v3785 = vpop.f32.mrf.mxu0
      %v3786 = vadd.f32 %v3713, %v3785
      %v3787 = vpop.f32.mrf.mxu0
      %v3788 = vadd.f32 %v3715, %v3787
      %3789 = vdwg.mxu0
      %v3790 = vadd.f32 %v3348, %v3752
      %v3791 = vadd.f32 %v3349, %v3754
      %v3792 = vadd.f32 %v3350, %v3756
      %v3793 = vadd.f32 %v3351, %v3758
      %v3794 = vadd.f32 %v3352, %v3762
      %v3795 = vadd.f32 %v3353, %v3764
      %v3796 = vadd.f32 %v3354, %v3766
      %v3797 = vadd.f32 %v3355, %v3768
      %v3798 = vadd.f32 %v3356, %v3772
      %v3799 = vadd.f32 %v3357, %v3774
      %v3800 = vadd.f32 %v3358, %v3776
      %v3801 = vadd.f32 %v3359, %v3778
      %v3802 = vadd.f32 %v3360, %v3782
      %v3803 = vadd.f32 %v3361, %v3784
      %v3804 = vadd.f32 %v3362, %v3786
      %v3805 = vadd.f32 %v3363, %v3788
      %s3806 = scalar_lea.vmem %s3, 1472
      %v3807 = vld [vmem:[%s3806] sm:$0xff]
      %v3808 = vld [vmem:[%s3806 + $0x8] sm:$0xff]
      %v3809 = vld [vmem:[%s3806 + $0x10] sm:$0xff]
      %v3810 = vld [vmem:[%s3806 + $0x18] sm:$0xff]
      %v3811 = vld [vmem:[%s3806 + $0x20] sm:$0xff]
      %v3812 = vld [vmem:[%s3806 + $0x28] sm:$0xff]
      %v3813 = vld [vmem:[%s3806 + $0x30] sm:$0xff]
      %v3814 = vld [vmem:[%s3806 + $0x38] sm:$0xff]
      %v3815 = vld [vmem:[%s3806 + $0x40] sm:$0xff]
      %v3816 = vld [vmem:[%s3806 + $0x48] sm:$0xff]
      %v3817 = vld [vmem:[%s3806 + $0x50] sm:$0xff]
      %v3818 = vld [vmem:[%s3806 + $0x58] sm:$0xff]
      %v3819 = vld [vmem:[%s3806 + $0x60] sm:$0xff]
      %v3820 = vld [vmem:[%s3806 + $0x68] sm:$0xff]
      %v3821 = vld [vmem:[%s3806 + $0x70] sm:$0xff]
      %v3822 = vld [vmem:[%s3806 + $0x78] sm:$0xff]
      %v3823 = vld [vmem:[%s3806 + $0x80] sm:$0xff]
      %v3824 = vld [vmem:[%s3806 + $0x88] sm:$0xff]
      %v3825 = vld [vmem:[%s3806 + $0x90] sm:$0xff]
      %v3826 = vld [vmem:[%s3806 + $0x98] sm:$0xff]
      %v3827 = vld [vmem:[%s3806 + $0xa0] sm:$0xff]
      %v3828 = vld [vmem:[%s3806 + $0xa8] sm:$0xff]
      %v3829 = vld [vmem:[%s3806 + $0xb0] sm:$0xff]
      %v3830 = vld [vmem:[%s3806 + $0xb8] sm:$0xff]
      %v3831 = vld [vmem:[%s3806 + $0xc0] sm:$0xff]
      %v3832 = vld [vmem:[%s3806 + $0xc8] sm:$0xff]
      %v3833 = vld [vmem:[%s3806 + $0xd0] sm:$0xff]
      %v3834 = vld [vmem:[%s3806 + $0xd8] sm:$0xff]
      %v3835 = vld [vmem:[%s3806 + $0xe0] sm:$0xff]
      %v3836 = vld [vmem:[%s3806 + $0xe8] sm:$0xff]
      %v3837 = vld [vmem:[%s3806 + $0xf0] sm:$0xff]
      %v3838 = vld [vmem:[%s3806 + $0xf8] sm:$0xff]
      %v3839 = vld [vmem:[%s3806 + $0x100] sm:$0xff]
      %v3840 = vld [vmem:[%s3806 + $0x108] sm:$0xff]
      %v3841 = vld [vmem:[%s3806 + $0x110] sm:$0xff]
      %v3842 = vld [vmem:[%s3806 + $0x118] sm:$0xff]
      %v3843 = vld [vmem:[%s3806 + $0x120] sm:$0xff]
      %v3844 = vld [vmem:[%s3806 + $0x128] sm:$0xff]
      %v3845 = vld [vmem:[%s3806 + $0x130] sm:$0xff]
      %v3846 = vld [vmem:[%s3806 + $0x138] sm:$0xff]
      %v3847 = vld [vmem:[%s3806 + $0x140] sm:$0xff]
      %v3848 = vld [vmem:[%s3806 + $0x148] sm:$0xff]
      %v3849 = vld [vmem:[%s3806 + $0x150] sm:$0xff]
      %v3850 = vld [vmem:[%s3806 + $0x158] sm:$0xff]
      %v3851 = vld [vmem:[%s3806 + $0x160] sm:$0xff]
      %v3852 = vld [vmem:[%s3806 + $0x168] sm:$0xff]
      %v3899 = vunpack.c.l.b16 %v3807
      %v3900 = vunpack.c.h.b16 %v3807
      %v3901 = vunpack.c.l.b16 %v3808
      %v3902 = vunpack.c.h.b16 %v3808
      %v3903 = vunpack.c.l.b16 %v3809
      %v3904 = vunpack.c.h.b16 %v3809
      %v3905 = vunpack.c.l.b16 %v3810
      %v3906 = vunpack.c.h.b16 %v3810
      %v3907 = vunpack.c.l.b16 %v3811
      %v3908 = vunpack.c.h.b16 %v3811
      %v3909 = vunpack.c.l.b16 %v3812
      %v3910 = vunpack.c.h.b16 %v3812
      %v3911 = vunpack.c.l.b16 %v3813
      %v3912 = vunpack.c.h.b16 %v3813
      %v3913 = vunpack.c.l.b16 %v3814
      %v3914 = vunpack.c.h.b16 %v3814
      %v3915 = vunpack.c.l.b16 %v3815
      %v3916 = vunpack.c.h.b16 %v3815
      %v3917 = vunpack.c.l.b16 %v3816
      %v3918 = vunpack.c.h.b16 %v3816
      %v3919 = vunpack.c.l.b16 %v3817
      %v3920 = vunpack.c.h.b16 %v3817
      %v3921 = vunpack.c.l.b16 %v3818
      %v3922 = vunpack.c.h.b16 %v3818
      %v3923 = vunpack.c.l.b16 %v3819
      %v3924 = vunpack.c.h.b16 %v3819
      %v3925 = vunpack.c.l.b16 %v3820
      %v3926 = vunpack.c.h.b16 %v3820
      %v3927 = vunpack.c.l.b16 %v3821
      %v3928 = vunpack.c.h.b16 %v3821
      %v3929 = vunpack.c.l.b16 %v3822
      %v3930 = vunpack.c.h.b16 %v3822
      %v3931 = vunpack.c.l.b16 %v3823
      %v3932 = vunpack.c.h.b16 %v3823
      %v3933 = vunpack.c.l.b16 %v3824
      %v3934 = vunpack.c.h.b16 %v3824
      %v3935 = vunpack.c.l.b16 %v3825
      %v3936 = vunpack.c.h.b16 %v3825
      %v3937 = vunpack.c.l.b16 %v3826
      %v3938 = vunpack.c.h.b16 %v3826
      %v3939 = vunpack.c.l.b16 %v3827
      %v3940 = vunpack.c.h.b16 %v3827
      %v3941 = vunpack.c.l.b16 %v3828
      %v3942 = vunpack.c.h.b16 %v3828
      %v3943 = vunpack.c.l.b16 %v3829
      %v3944 = vunpack.c.h.b16 %v3829
      %v3945 = vunpack.c.l.b16 %v3830
      %v3946 = vunpack.c.h.b16 %v3830
      %v3947 = vunpack.c.l.b16 %v3831
      %v3948 = vunpack.c.h.b16 %v3831
      %v3949 = vunpack.c.l.b16 %v3832
      %v3950 = vunpack.c.h.b16 %v3832
      %v3951 = vunpack.c.l.b16 %v3833
      %v3952 = vunpack.c.h.b16 %v3833
      %v3953 = vunpack.c.l.b16 %v3834
      %v3954 = vunpack.c.h.b16 %v3834
      %v3955 = vunpack.c.l.b16 %v3835
      %v3956 = vunpack.c.h.b16 %v3835
      %v3957 = vunpack.c.l.b16 %v3836
      %v3958 = vunpack.c.h.b16 %v3836
      %v3959 = vunpack.c.l.b16 %v3837
      %v3960 = vunpack.c.h.b16 %v3837
      %v3961 = vunpack.c.l.b16 %v3838
      %v3962 = vunpack.c.h.b16 %v3838
      %v3963 = vunpack.c.l.b16 %v3839
      %v3964 = vunpack.c.h.b16 %v3839
      %v3965 = vunpack.c.l.b16 %v3840
      %v3966 = vunpack.c.h.b16 %v3840
      %v3967 = vunpack.c.l.b16 %v3841
      %v3968 = vunpack.c.h.b16 %v3841
      %v3969 = vunpack.c.l.b16 %v3842
      %v3970 = vunpack.c.h.b16 %v3842
      %v3971 = vunpack.c.l.b16 %v3843
      %v3972 = vunpack.c.h.b16 %v3843
      %v3973 = vunpack.c.l.b16 %v3844
      %v3974 = vunpack.c.h.b16 %v3844
      %v3975 = vunpack.c.l.b16 %v3845
      %v3976 = vunpack.c.h.b16 %v3845
      %v3977 = vunpack.c.l.b16 %v3846
      %v3978 = vunpack.c.h.b16 %v3846
      %v3979 = vunpack.c.l.b16 %v3847
      %v3980 = vunpack.c.h.b16 %v3847
      %v3981 = vunpack.c.l.b16 %v3848
      %v3982 = vunpack.c.h.b16 %v3848
      %v3983 = vunpack.c.l.b16 %v3849
      %v3984 = vunpack.c.h.b16 %v3849
      %v3985 = vunpack.c.l.b16 %v3850
      %v3986 = vunpack.c.h.b16 %v3850
      %v3987 = vunpack.c.l.b16 %v3851
      %v3988 = vunpack.c.h.b16 %v3851
      %v3989 = vunpack.c.l.b16 %v3852
      %v3990 = vunpack.c.h.b16 %v3852
      %v3991 = vpack.c.b16 %v3901, %v3899
      %v3992 = vpack.c.b16 %v3902, %v3900
      %v3993 = vpack.c.b16 %v3905, %v3903
      %v3994 = vpack.c.b16 %v3906, %v3904
      %v3995 = vpack.c.b16 %v3909, %v3907
      %v3996 = vpack.c.b16 %v3910, %v3908
      %v3997 = vpack.c.b16 %v3913, %v3911
      %v3998 = vpack.c.b16 %v3914, %v3912
      %v3999 = vpack.c.b16 %v3917, %v3915
      %v4000 = vpack.c.b16 %v3918, %v3916
      %v4001 = vpack.c.b16 %v3921, %v3919
      %v4002 = vpack.c.b16 %v3922, %v3920
      %v4003 = vpack.c.b16 %v3925, %v3923
      %v4004 = vpack.c.b16 %v3926, %v3924
      %v4005 = vpack.c.b16 %v3929, %v3927
      %v4006 = vpack.c.b16 %v3930, %v3928
      %v4007 = vpack.c.b16 %v3933, %v3931
      %v4008 = vpack.c.b16 %v3934, %v3932
      %v4009 = vpack.c.b16 %v3937, %v3935
      %v4010 = vpack.c.b16 %v3938, %v3936
      %v4011 = vpack.c.b16 %v3941, %v3939
      %v4012 = vpack.c.b16 %v3942, %v3940
      %v4013 = vpack.c.b16 %v3945, %v3943
      %v4014 = vpack.c.b16 %v3946, %v3944
      %v4015 = vpack.c.b16 %v3949, %v3947
      %v4016 = vpack.c.b16 %v3950, %v3948
      %v4017 = vpack.c.b16 %v3953, %v3951
      %v4018 = vpack.c.b16 %v3954, %v3952
      %v4019 = vpack.c.b16 %v3957, %v3955
      %v4020 = vpack.c.b16 %v3958, %v3956
      %v4021 = vpack.c.b16 %v3961, %v3959
      %v4022 = vpack.c.b16 %v3962, %v3960
      %v4023 = vpack.c.b16 %v3965, %v3963
      %v4024 = vpack.c.b16 %v3966, %v3964
      %v4025 = vpack.c.b16 %v3969, %v3967
      %v4026 = vpack.c.b16 %v3970, %v3968
      %v4027 = vpack.c.b16 %v3973, %v3971
      %v4028 = vpack.c.b16 %v3974, %v3972
      %v4029 = vpack.c.b16 %v3977, %v3975
      %v4030 = vpack.c.b16 %v3978, %v3976
      %v4031 = vpack.c.b16 %v3981, %v3979
      %v4032 = vpack.c.b16 %v3982, %v3980
      %v4033 = vpack.c.b16 %v3985, %v3983
      %v4034 = vpack.c.b16 %v3986, %v3984
      %v4035 = vpack.c.b16 %v3989, %v3987
      %v4036 = vpack.c.b16 %v3990, %v3988
      %v4084 = vsel %vm1716, %v1830, 0
      %4086 = vmatprep.subr.bf16.mxu0 %v4006
      %4087 = vmatpush1.bf16.msra.mxu0 %v4005
      %4088 = vmatprep.subr.bf16.mxu0 %v4004
      %4089 = vmatpush1.bf16.msra.mxu0 %v4003
      %4090 = vmatprep.subr.bf16.mxu0 %v4002
      %4091 = vmatpush1.bf16.msra.mxu0 %v4001
      %4092 = vmatprep.subr.bf16.mxu0 %v4000
      %4093 = vmatpush1.bf16.msra.mxu0 %v3999
      %4094 = vmatprep.subr.bf16.mxu0 %v3998
      %4095 = vmatpush1.bf16.msra.mxu0 %v3997
      %4096 = vmatprep.subr.bf16.mxu0 %v3996
      %4097 = vmatpush1.bf16.msra.mxu0 %v3995
      %4098 = vmatprep.subr.bf16.mxu0 %v3994
      %4099 = vmatpush1.bf16.msra.mxu0 %v3993
      %4100 = vmatprep.subr.bf16.mxu0 %v3992
      %4101 = vmatpush1.bf16.msra.mxu0 %v3991
      %4102 = vmatprep.subr.bf16.mxu0 %v4022
      %4103 = vmatpush2.bf16.msra.mxu0 %v4021
      %4104 = vmatprep.subr.bf16.mxu0 %v4020
      %4105 = vmatpush2.bf16.msra.mxu0 %v4019
      %4106 = vmatprep.subr.bf16.mxu0 %v4018
      %4107 = vmatpush2.bf16.msra.mxu0 %v4017
      %4108 = vmatprep.subr.bf16.mxu0 %v4016
      %4109 = vmatpush2.bf16.msra.mxu0 %v4015
      %4110 = vmatprep.subr.bf16.mxu0 %v4014
      %4111 = vmatpush2.bf16.msra.mxu0 %v4013
      %4112 = vmatprep.subr.bf16.mxu0 %v4012
      %4113 = vmatpush2.bf16.msra.mxu0 %v4011
      %4114 = vmatprep.subr.bf16.mxu0 %v4010
      %4115 = vmatpush2.bf16.msra.mxu0 %v4009
      %4116 = vmatprep.subr.bf16.mxu0 %v4008
      %4117 = vmatpush2.bf16.msra.mxu0 %v4007
      %4118 = vmatprep.mubr.bf16.mxu0 %v1820
      %4119 = vmatmul.mubr.bf16.gmra.mxu0 %v1819
      %v4120 = vpop.f32.mrf.mxu0
      %v4121 = vadd.f32 0.0, %v4120
      %v4122 = vpop.f32.mrf.mxu0
      %v4123 = vadd.f32 0.0, %v4122
      %v4124 = vpop.f32.mrf.mxu0
      %v4125 = vadd.f32 0.0, %v4124
      %v4126 = vpop.f32.mrf.mxu0
      %v4127 = vadd.f32 0.0, %v4126
      %4128 = vmatprep.mubr.bf16.mxu0 %v1823
      %4129 = vmatmul.mubr.bf16.gmra.mxu0 %v1822
      %v4130 = vpop.f32.mrf.mxu0
      %v4131 = vadd.f32 0.0, %v4130
      %v4132 = vpop.f32.mrf.mxu0
      %v4133 = vadd.f32 0.0, %v4132
      %v4134 = vpop.f32.mrf.mxu0
      %v4135 = vadd.f32 0.0, %v4134
      %v4136 = vpop.f32.mrf.mxu0
      %v4137 = vadd.f32 0.0, %v4136
      %4138 = vmatprep.mubr.bf16.mxu0 %v1826
      %4139 = vmatmul.mubr.bf16.gmra.mxu0 %v1825
      %v4140 = vpop.f32.mrf.mxu0
      %v4141 = vadd.f32 0.0, %v4140
      %v4142 = vpop.f32.mrf.mxu0
      %v4143 = vadd.f32 0.0, %v4142
      %v4144 = vpop.f32.mrf.mxu0
      %v4145 = vadd.f32 0.0, %v4144
      %v4146 = vpop.f32.mrf.mxu0
      %v4147 = vadd.f32 0.0, %v4146
      %4148 = vmatprep.mubr.bf16.mxu0 %v1829
      %4149 = vmatmul.mubr.bf16.gmra.mxu0 %v1828
      %v4150 = vpop.f32.mrf.mxu0
      %v4151 = vadd.f32 0.0, %v4150
      %v4152 = vpop.f32.mrf.mxu0
      %v4153 = vadd.f32 0.0, %v4152
      %v4154 = vpop.f32.mrf.mxu0
      %v4155 = vadd.f32 0.0, %v4154
      %v4156 = vpop.f32.mrf.mxu0
      %v4157 = vadd.f32 0.0, %v4156
      %4158 = vdwg.mxu0
      %4159 = vmatprep.subr.bf16.mxu0 0
      %4160 = vmatpush1.bf16.msra.mxu0 0
      %4161 = vmatprep.subr.bf16.mxu0 %v4036
      %4162 = vmatpush1.bf16.msra.mxu0 %v4035
      %4163 = vmatprep.subr.bf16.mxu0 %v4034
      %4164 = vmatpush1.bf16.msra.mxu0 %v4033
      %4165 = vmatprep.subr.bf16.mxu0 %v4032
      %4166 = vmatpush1.bf16.msra.mxu0 %v4031
      %4167 = vmatprep.subr.bf16.mxu0 %v4030
      %4168 = vmatpush1.bf16.msra.mxu0 %v4029
      %4169 = vmatprep.subr.bf16.mxu0 %v4028
      %4170 = vmatpush1.bf16.msra.mxu0 %v4027
      %4171 = vmatprep.subr.bf16.mxu0 %v4026
      %4172 = vmatpush1.bf16.msra.mxu0 %v4025
      %4173 = vmatprep.subr.bf16.mxu0 %v4024
      %4174 = vmatpush1.bf16.msra.mxu0 %v4023
      %4175 = vmatprep.subr.bf16.mxu0 0
      %4176 = vmatpush2.bf16.msra.mxu0 0
      %4177 = vmatprep.subr.bf16.mxu0 0
      %4178 = vmatpush2.bf16.msra.mxu0 0
      %4179 = vmatprep.subr.bf16.mxu0 0
      %4180 = vmatpush2.bf16.msra.mxu0 0
      %4181 = vmatprep.subr.bf16.mxu0 0
      %4182 = vmatpush2.bf16.msra.mxu0 0
      %4183 = vmatprep.subr.bf16.mxu0 0
      %4184 = vmatpush2.bf16.msra.mxu0 0
      %4185 = vmatprep.subr.bf16.mxu0 0
      %4186 = vmatpush2.bf16.msra.mxu0 0
      %4187 = vmatprep.subr.bf16.mxu0 0
      %4188 = vmatpush2.bf16.msra.mxu0 0
      %4189 = vmatprep.subr.bf16.mxu0 0
      %4190 = vmatpush2.bf16.msra.mxu0 0
      %4191 = vmatprep.mubr.bf16.mxu0 0
      %4192 = vmatmul.mubr.bf16.gmra.mxu0 %v2771
      %v4193 = vpop.f32.mrf.mxu0
      %v4194 = vadd.f32 %v4121, %v4193
      %v4195 = vpop.f32.mrf.mxu0
      %v4196 = vadd.f32 %v4123, %v4195
      %v4197 = vpop.f32.mrf.mxu0
      %v4198 = vadd.f32 %v4125, %v4197
      %v4199 = vpop.f32.mrf.mxu0
      %v4200 = vadd.f32 %v4127, %v4199
      %4201 = vmatprep.mubr.bf16.mxu0 0
      %4202 = vmatmul.mubr.bf16.gmra.mxu0 %v2774
      %v4203 = vpop.f32.mrf.mxu0
      %v4204 = vadd.f32 %v4131, %v4203
      %v4205 = vpop.f32.mrf.mxu0
      %v4206 = vadd.f32 %v4133, %v4205
      %v4207 = vpop.f32.mrf.mxu0
      %v4208 = vadd.f32 %v4135, %v4207
      %v4209 = vpop.f32.mrf.mxu0
      %v4210 = vadd.f32 %v4137, %v4209
      %4211 = vmatprep.mubr.bf16.mxu0 0
      %4212 = vmatmul.mubr.bf16.gmra.mxu0 %v3200
      %v4213 = vpop.f32.mrf.mxu0
      %v4214 = vadd.f32 %v4141, %v4213
      %v4215 = vpop.f32.mrf.mxu0
      %v4216 = vadd.f32 %v4143, %v4215
      %v4217 = vpop.f32.mrf.mxu0
      %v4218 = vadd.f32 %v4145, %v4217
      %v4219 = vpop.f32.mrf.mxu0
      %v4220 = vadd.f32 %v4147, %v4219
      %4221 = vmatprep.mubr.bf16.mxu0 0
      %4222 = vmatmul.mubr.bf16.gmra.mxu0 %v4084
      %v4223 = vpop.f32.mrf.mxu0
      %v4224 = vadd.f32 %v4151, %v4223
      %v4225 = vpop.f32.mrf.mxu0
      %v4226 = vadd.f32 %v4153, %v4225
      %v4227 = vpop.f32.mrf.mxu0
      %v4228 = vadd.f32 %v4155, %v4227
      %v4229 = vpop.f32.mrf.mxu0
      %v4230 = vadd.f32 %v4157, %v4229
      %4231 = vdwg.mxu0
      %v4232 = vadd.f32 %v3790, %v4194
      %v4233 = vadd.f32 %v3791, %v4196
      %v4234 = vadd.f32 %v3792, %v4198
      %v4235 = vadd.f32 %v3793, %v4200
      %v4236 = vadd.f32 %v3794, %v4204
      %v4237 = vadd.f32 %v3795, %v4206
      %v4238 = vadd.f32 %v3796, %v4208
      %v4239 = vadd.f32 %v3797, %v4210
      %v4240 = vadd.f32 %v3798, %v4214
      %v4241 = vadd.f32 %v3799, %v4216
      %v4242 = vadd.f32 %v3800, %v4218
      %v4243 = vadd.f32 %v3801, %v4220
      %v4244 = vadd.f32 %v3802, %v4224
      %v4245 = vadd.f32 %v3803, %v4226
      %v4246 = vadd.f32 %v3804, %v4228
      %v4247 = vadd.f32 %v3805, %v4230
      %v4248 = vld [vmem:[%s4] sm:$0x3]
      %v4250 = vlaneseq
      %v4251 = vshrl.u32 %v4250, 7
      %v4252 = vsub.s32 0, %v4251
      %v4253 = vrot.slane %v4248, %v4252
      %v4254 = vlaneseq
      %v4255 = vshrl.u32 %v4254, 7
      %v4256 = vsub.s32 1, %v4255
      %v4257 = vrot.slane %v4248, %v4256
      %v4260 = vadd.f32 %v4232, %v4253
      %v4261 = vadd.f32 %v4233, %v4257
      %v4262 = vadd.f32 %v4234, %v4253
      %v4263 = vadd.f32 %v4235, %v4257
      %v4264 = vadd.f32 %v4236, %v4253
      %v4265 = vadd.f32 %v4237, %v4257
      %v4266 = vadd.f32 %v4238, %v4253
      %v4267 = vadd.f32 %v4239, %v4257
      %v4268 = vadd.f32 %v4240, %v4253
      %v4269 = vadd.f32 %v4241, %v4257
      %v4270 = vadd.f32 %v4242, %v4253
      %v4271 = vadd.f32 %v4243, %v4257
      %v4272 = vadd.f32 %v4244, %v4253
      %v4273 = vadd.f32 %v4245, %v4257
      %v4274 = vadd.f32 %v4246, %v4253
      %v4275 = vadd.f32 %v4247, %v4257
      %v4276 = vmax.f32 %v4260, 0.0
      %v4277 = vmax.f32 %v4261, 0.0
      %v4278 = vmax.f32 %v4262, 0.0
      %v4279 = vmax.f32 %v4263, 0.0
      %v4280 = vmax.f32 %v4264, 0.0
      %v4281 = vmax.f32 %v4265, 0.0
      %v4282 = vmax.f32 %v4266, 0.0
      %v4283 = vmax.f32 %v4267, 0.0
      %v4284 = vmax.f32 %v4268, 0.0
      %v4285 = vmax.f32 %v4269, 0.0
      %v4286 = vmax.f32 %v4270, 0.0
      %v4287 = vmax.f32 %v4271, 0.0
      %v4288 = vmax.f32 %v4272, 0.0
      %v4289 = vmax.f32 %v4273, 0.0
      %v4290 = vmax.f32 %v4274, 0.0
      %v4291 = vmax.f32 %v4275, 0.0
      %4292 = vmatprep.subr.bf16.mxu0 %v2299
      %4293 = vmatpush1.bf16.msra.mxu0 %v2298
      %4294 = vmatprep.subr.bf16.mxu0 %v2297
      %4295 = vmatpush1.bf16.msra.mxu0 %v2296
      %4296 = vmatprep.subr.bf16.mxu0 %v2295
      %4297 = vmatpush1.bf16.msra.mxu0 %v2294
      %4298 = vmatprep.subr.bf16.mxu0 %v2293
      %4299 = vmatpush1.bf16.msra.mxu0 %v2292
      %4300 = vmatprep.subr.bf16.mxu0 %v2291
      %4301 = vmatpush1.bf16.msra.mxu0 %v2290
      %4302 = vmatprep.subr.bf16.mxu0 %v2289
      %4303 = vmatpush1.bf16.msra.mxu0 %v2288
      %4304 = vmatprep.subr.bf16.mxu0 %v2287
      %4305 = vmatpush1.bf16.msra.mxu0 %v2286
      %4306 = vmatprep.subr.bf16.mxu0 %v2285
      %4307 = vmatpush1.bf16.msra.mxu0 %v2284
      %4308 = vmatprep.subr.bf16.mxu0 %v2315
      %4309 = vmatpush2.bf16.msra.mxu0 %v2314
      %4310 = vmatprep.subr.bf16.mxu0 %v2313
      %4311 = vmatpush2.bf16.msra.mxu0 %v2312
      %4312 = vmatprep.subr.bf16.mxu0 %v2311
      %4313 = vmatpush2.bf16.msra.mxu0 %v2310
      %4314 = vmatprep.subr.bf16.mxu0 %v2309
      %4315 = vmatpush2.bf16.msra.mxu0 %v2308
      %4316 = vmatprep.subr.bf16.mxu0 %v2307
      %4317 = vmatpush2.bf16.msra.mxu0 %v2306
      %4318 = vmatprep.subr.bf16.mxu0 %v2305
      %4319 = vmatpush2.bf16.msra.mxu0 %v2304
      %4320 = vmatprep.subr.bf16.mxu0 %v2303
      %4321 = vmatpush2.bf16.msra.mxu0 %v2302
      %4322 = vmatprep.subr.bf16.mxu0 %v2301
      %4323 = vmatpush2.bf16.msra.mxu0 %v2300
      %4324 = vmatprep.mubr.bf16.mxu0 %v1817
      %4325 = vmatmul.mubr.bf16.gmra.mxu0 %v1816
      %v4326 = vpop.f32.mrf.mxu0
      %v4327 = vadd.f32 0.0, %v4326
      %v4328 = vpop.f32.mrf.mxu0
      %v4329 = vadd.f32 0.0, %v4328
      %v4330 = vpop.f32.mrf.mxu0
      %v4331 = vadd.f32 0.0, %v4330
      %v4332 = vpop.f32.mrf.mxu0
      %v4333 = vadd.f32 0.0, %v4332
      %4334 = vmatprep.mubr.bf16.mxu0 %v1820
      %4335 = vmatmul.mubr.bf16.gmra.mxu0 %v1819
      %v4336 = vpop.f32.mrf.mxu0
      %v4337 = vadd.f32 0.0, %v4336
      %v4338 = vpop.f32.mrf.mxu0
      %v4339 = vadd.f32 0.0, %v4338
      %v4340 = vpop.f32.mrf.mxu0
      %v4341 = vadd.f32 0.0, %v4340
      %v4342 = vpop.f32.mrf.mxu0
      %v4343 = vadd.f32 0.0, %v4342
      %4344 = vmatprep.mubr.bf16.mxu0 %v1823
      %4345 = vmatmul.mubr.bf16.gmra.mxu0 %v1822
      %v4346 = vpop.f32.mrf.mxu0
      %v4347 = vadd.f32 0.0, %v4346
      %v4348 = vpop.f32.mrf.mxu0
      %v4349 = vadd.f32 0.0, %v4348
      %v4350 = vpop.f32.mrf.mxu0
      %v4351 = vadd.f32 0.0, %v4350
      %v4352 = vpop.f32.mrf.mxu0
      %v4353 = vadd.f32 0.0, %v4352
      %4354 = vmatprep.mubr.bf16.mxu0 %v1826
      %4355 = vmatmul.mubr.bf16.gmra.mxu0 %v1825
      %v4356 = vpop.f32.mrf.mxu0
      %v4357 = vadd.f32 0.0, %v4356
      %v4358 = vpop.f32.mrf.mxu0
      %v4359 = vadd.f32 0.0, %v4358
      %v4360 = vpop.f32.mrf.mxu0
      %v4361 = vadd.f32 0.0, %v4360
      %v4362 = vpop.f32.mrf.mxu0
      %v4363 = vadd.f32 0.0, %v4362
      %4364 = vdwg.mxu0
      %4365 = vmatprep.subr.bf16.mxu0 0
      %4366 = vmatpush1.bf16.msra.mxu0 0
      %4367 = vmatprep.subr.bf16.mxu0 %v2329
      %4368 = vmatpush1.bf16.msra.mxu0 %v2328
      %4369 = vmatprep.subr.bf16.mxu0 %v2327
      %4370 = vmatpush1.bf16.msra.mxu0 %v2326
      %4371 = vmatprep.subr.bf16.mxu0 %v2325
      %4372 = vmatpush1.bf16.msra.mxu0 %v2324
      %4373 = vmatprep.subr.bf16.mxu0 %v2323
      %4374 = vmatpush1.bf16.msra.mxu0 %v2322
      %4375 = vmatprep.subr.bf16.mxu0 %v2321
      %4376 = vmatpush1.bf16.msra.mxu0 %v2320
      %4377 = vmatprep.subr.bf16.mxu0 %v2319
      %4378 = vmatpush1.bf16.msra.mxu0 %v2318
      %4379 = vmatprep.subr.bf16.mxu0 %v2317
      %4380 = vmatpush1.bf16.msra.mxu0 %v2316
      %4381 = vmatprep.subr.bf16.mxu0 0
      %4382 = vmatpush2.bf16.msra.mxu0 0
      %4383 = vmatprep.subr.bf16.mxu0 0
      %4384 = vmatpush2.bf16.msra.mxu0 0
      %4385 = vmatprep.subr.bf16.mxu0 0
      %4386 = vmatpush2.bf16.msra.mxu0 0
      %4387 = vmatprep.subr.bf16.mxu0 0
      %4388 = vmatpush2.bf16.msra.mxu0 0
      %4389 = vmatprep.subr.bf16.mxu0 0
      %4390 = vmatpush2.bf16.msra.mxu0 0
      %4391 = vmatprep.subr.bf16.mxu0 0
      %4392 = vmatpush2.bf16.msra.mxu0 0
      %4393 = vmatprep.subr.bf16.mxu0 0
      %4394 = vmatpush2.bf16.msra.mxu0 0
      %4395 = vmatprep.subr.bf16.mxu0 0
      %4396 = vmatpush2.bf16.msra.mxu0 0
      %4397 = vmatprep.mubr.bf16.mxu0 0
      %4398 = vmatmul.mubr.bf16.gmra.mxu0 %v2768
      %v4399 = vpop.f32.mrf.mxu0
      %v4400 = vadd.f32 %v4327, %v4399
      %v4401 = vpop.f32.mrf.mxu0
      %v4402 = vadd.f32 %v4329, %v4401
      %v4403 = vpop.f32.mrf.mxu0
      %v4404 = vadd.f32 %v4331, %v4403
      %v4405 = vpop.f32.mrf.mxu0
      %v4406 = vadd.f32 %v4333, %v4405
      %4407 = vmatprep.mubr.bf16.mxu0 0
      %4408 = vmatmul.mubr.bf16.gmra.mxu0 %v2771
      %v4409 = vpop.f32.mrf.mxu0
      %v4410 = vadd.f32 %v4337, %v4409
      %v4411 = vpop.f32.mrf.mxu0
      %v4412 = vadd.f32 %v4339, %v4411
      %v4413 = vpop.f32.mrf.mxu0
      %v4414 = vadd.f32 %v4341, %v4413
      %v4415 = vpop.f32.mrf.mxu0
      %v4416 = vadd.f32 %v4343, %v4415
      %4417 = vmatprep.mubr.bf16.mxu0 0
      %4418 = vmatmul.mubr.bf16.gmra.mxu0 %v2774
      %v4419 = vpop.f32.mrf.mxu0
      %v4420 = vadd.f32 %v4347, %v4419
      %v4421 = vpop.f32.mrf.mxu0
      %v4422 = vadd.f32 %v4349, %v4421
      %v4423 = vpop.f32.mrf.mxu0
      %v4424 = vadd.f32 %v4351, %v4423
      %v4425 = vpop.f32.mrf.mxu0
      %v4426 = vadd.f32 %v4353, %v4425
      %4427 = vmatprep.mubr.bf16.mxu0 0
      %4428 = vmatmul.mubr.bf16.gmra.mxu0 %v3200
      %v4429 = vpop.f32.mrf.mxu0
      %v4430 = vadd.f32 %v4357, %v4429
      %v4431 = vpop.f32.mrf.mxu0
      %v4432 = vadd.f32 %v4359, %v4431
      %v4433 = vpop.f32.mrf.mxu0
      %v4434 = vadd.f32 %v4361, %v4433
      %v4435 = vpop.f32.mrf.mxu0
      %v4436 = vadd.f32 %v4363, %v4435
      %4437 = vdwg.mxu0
      %4438 = vmatprep.subr.bf16.mxu0 %v2687
      %4439 = vmatpush1.bf16.msra.mxu0 %v2686
      %4440 = vmatprep.subr.bf16.mxu0 %v2685
      %4441 = vmatpush1.bf16.msra.mxu0 %v2684
      %4442 = vmatprep.subr.bf16.mxu0 %v2683
      %4443 = vmatpush1.bf16.msra.mxu0 %v2682
      %4444 = vmatprep.subr.bf16.mxu0 %v2681
      %4445 = vmatpush1.bf16.msra.mxu0 %v2680
      %4446 = vmatprep.subr.bf16.mxu0 %v2679
      %4447 = vmatpush1.bf16.msra.mxu0 %v2678
      %4448 = vmatprep.subr.bf16.mxu0 %v2677
      %4449 = vmatpush1.bf16.msra.mxu0 %v2676
      %4450 = vmatprep.subr.bf16.mxu0 %v2675
      %4451 = vmatpush1.bf16.msra.mxu0 %v2674
      %4452 = vmatprep.subr.bf16.mxu0 %v2673
      %4453 = vmatpush1.bf16.msra.mxu0 %v2672
      %4454 = vmatprep.subr.bf16.mxu0 %v2703
      %4455 = vmatpush2.bf16.msra.mxu0 %v2702
      %4456 = vmatprep.subr.bf16.mxu0 %v2701
      %4457 = vmatpush2.bf16.msra.mxu0 %v2700
      %4458 = vmatprep.subr.bf16.mxu0 %v2699
      %4459 = vmatpush2.bf16.msra.mxu0 %v2698
      %4460 = vmatprep.subr.bf16.mxu0 %v2697
      %4461 = vmatpush2.bf16.msra.mxu0 %v2696
      %4462 = vmatprep.subr.bf16.mxu0 %v2695
      %4463 = vmatpush2.bf16.msra.mxu0 %v2694
      %4464 = vmatprep.subr.bf16.mxu0 %v2693
      %4465 = vmatpush2.bf16.msra.mxu0 %v2692
      %4466 = vmatprep.subr.bf16.mxu0 %v2691
      %4467 = vmatpush2.bf16.msra.mxu0 %v2690
      %4468 = vmatprep.subr.bf16.mxu0 %v2689
      %4469 = vmatpush2.bf16.msra.mxu0 %v2688
      %4470 = vmatprep.mubr.bf16.mxu0 %v2036
      %4471 = vmatmul.mubr.bf16.gmra.mxu0 %v2035
      %v4472 = vpop.f32.mrf.mxu0
      %v4473 = vadd.f32 %v4400, %v4472
      %v4474 = vpop.f32.mrf.mxu0
      %v4475 = vadd.f32 %v4402, %v4474
      %v4476 = vpop.f32.mrf.mxu0
      %v4477 = vadd.f32 %v4404, %v4476
      %v4478 = vpop.f32.mrf.mxu0
      %v4479 = vadd.f32 %v4406, %v4478
      %4480 = vmatprep.mubr.bf16.mxu0 %v2039
      %4481 = vmatmul.mubr.bf16.gmra.mxu0 %v2038
      %v4482 = vpop.f32.mrf.mxu0
      %v4483 = vadd.f32 %v4410, %v4482
      %v4484 = vpop.f32.mrf.mxu0
      %v4485 = vadd.f32 %v4412, %v4484
      %v4486 = vpop.f32.mrf.mxu0
      %v4487 = vadd.f32 %v4414, %v4486
      %v4488 = vpop.f32.mrf.mxu0
      %v4489 = vadd.f32 %v4416, %v4488
      %4490 = vmatprep.mubr.bf16.mxu0 %v2042
      %4491 = vmatmul.mubr.bf16.gmra.mxu0 %v2041
      %v4492 = vpop.f32.mrf.mxu0
      %v4493 = vadd.f32 %v4420, %v4492
      %v4494 = vpop.f32.mrf.mxu0
      %v4495 = vadd.f32 %v4422, %v4494
      %v4496 = vpop.f32.mrf.mxu0
      %v4497 = vadd.f32 %v4424, %v4496
      %v4498 = vpop.f32.mrf.mxu0
      %v4499 = vadd.f32 %v4426, %v4498
      %4500 = vmatprep.mubr.bf16.mxu0 %v2045
      %4501 = vmatmul.mubr.bf16.gmra.mxu0 %v2044
      %v4502 = vpop.f32.mrf.mxu0
      %v4503 = vadd.f32 %v4430, %v4502
      %v4504 = vpop.f32.mrf.mxu0
      %v4505 = vadd.f32 %v4432, %v4504
      %v4506 = vpop.f32.mrf.mxu0
      %v4507 = vadd.f32 %v4434, %v4506
      %v4508 = vpop.f32.mrf.mxu0
      %v4509 = vadd.f32 %v4436, %v4508
      %4510 = vdwg.mxu0
      %4511 = vmatprep.subr.bf16.mxu0 0
      %4512 = vmatpush1.bf16.msra.mxu0 0
      %4513 = vmatprep.subr.bf16.mxu0 %v2717
      %4514 = vmatpush1.bf16.msra.mxu0 %v2716
      %4515 = vmatprep.subr.bf16.mxu0 %v2715
      %4516 = vmatpush1.bf16.msra.mxu0 %v2714
      %4517 = vmatprep.subr.bf16.mxu0 %v2713
      %4518 = vmatpush1.bf16.msra.mxu0 %v2712
      %4519 = vmatprep.subr.bf16.mxu0 %v2711
      %4520 = vmatpush1.bf16.msra.mxu0 %v2710
      %4521 = vmatprep.subr.bf16.mxu0 %v2709
      %4522 = vmatpush1.bf16.msra.mxu0 %v2708
      %4523 = vmatprep.subr.bf16.mxu0 %v2707
      %4524 = vmatpush1.bf16.msra.mxu0 %v2706
      %4525 = vmatprep.subr.bf16.mxu0 %v2705
      %4526 = vmatpush1.bf16.msra.mxu0 %v2704
      %4527 = vmatprep.subr.bf16.mxu0 0
      %4528 = vmatpush2.bf16.msra.mxu0 0
      %4529 = vmatprep.subr.bf16.mxu0 0
      %4530 = vmatpush2.bf16.msra.mxu0 0
      %4531 = vmatprep.subr.bf16.mxu0 0
      %4532 = vmatpush2.bf16.msra.mxu0 0
      %4533 = vmatprep.subr.bf16.mxu0 0
      %4534 = vmatpush2.bf16.msra.mxu0 0
      %4535 = vmatprep.subr.bf16.mxu0 0
      %4536 = vmatpush2.bf16.msra.mxu0 0
      %4537 = vmatprep.subr.bf16.mxu0 0
      %4538 = vmatpush2.bf16.msra.mxu0 0
      %4539 = vmatprep.subr.bf16.mxu0 0
      %4540 = vmatpush2.bf16.msra.mxu0 0
      %4541 = vmatprep.subr.bf16.mxu0 0
      %4542 = vmatpush2.bf16.msra.mxu0 0
      %4543 = vmatprep.mubr.bf16.mxu0 0
      %4544 = vmatmul.mubr.bf16.gmra.mxu0 %v2377
      %v4545 = vpop.f32.mrf.mxu0
      %v4546 = vadd.f32 %v4473, %v4545
      %v4547 = vpop.f32.mrf.mxu0
      %v4548 = vadd.f32 %v4475, %v4547
      %v4549 = vpop.f32.mrf.mxu0
      %v4550 = vadd.f32 %v4477, %v4549
      %v4551 = vpop.f32.mrf.mxu0
      %v4552 = vadd.f32 %v4479, %v4551
      %4553 = vmatprep.mubr.bf16.mxu0 0
      %4554 = vmatmul.mubr.bf16.gmra.mxu0 %v2380
      %v4555 = vpop.f32.mrf.mxu0
      %v4556 = vadd.f32 %v4483, %v4555
      %v4557 = vpop.f32.mrf.mxu0
      %v4558 = vadd.f32 %v4485, %v4557
      %v4559 = vpop.f32.mrf.mxu0
      %v4560 = vadd.f32 %v4487, %v4559
      %v4561 = vpop.f32.mrf.mxu0
      %v4562 = vadd.f32 %v4489, %v4561
      %4563 = vmatprep.mubr.bf16.mxu0 0
      %4564 = vmatmul.mubr.bf16.gmra.mxu0 %v2383
      %v4565 = vpop.f32.mrf.mxu0
      %v4566 = vadd.f32 %v4493, %v4565
      %v4567 = vpop.f32.mrf.mxu0
      %v4568 = vadd.f32 %v4495, %v4567
      %v4569 = vpop.f32.mrf.mxu0
      %v4570 = vadd.f32 %v4497, %v4569
      %v4571 = vpop.f32.mrf.mxu0
      %v4572 = vadd.f32 %v4499, %v4571
      %4573 = vmatprep.mubr.bf16.mxu0 0
      %4574 = vmatmul.mubr.bf16.gmra.mxu0 %v2386
      %v4575 = vpop.f32.mrf.mxu0
      %v4576 = vadd.f32 %v4503, %v4575
      %v4577 = vpop.f32.mrf.mxu0
      %v4578 = vadd.f32 %v4505, %v4577
      %v4579 = vpop.f32.mrf.mxu0
      %v4580 = vadd.f32 %v4507, %v4579
      %v4581 = vpop.f32.mrf.mxu0
      %v4582 = vadd.f32 %v4509, %v4581
      %4583 = vdwg.mxu0
      %4584 = vmatprep.subr.bf16.mxu0 %v3122
      %4585 = vmatpush1.bf16.msra.mxu0 %v3121
      %4586 = vmatprep.subr.bf16.mxu0 %v3120
      %4587 = vmatpush1.bf16.msra.mxu0 %v3119
      %4588 = vmatprep.subr.bf16.mxu0 %v3118
      %4589 = vmatpush1.bf16.msra.mxu0 %v3117
      %4590 = vmatprep.subr.bf16.mxu0 %v3116
      %4591 = vmatpush1.bf16.msra.mxu0 %v3115
      %4592 = vmatprep.subr.bf16.mxu0 %v3114
      %4593 = vmatpush1.bf16.msra.mxu0 %v3113
      %4594 = vmatprep.subr.bf16.mxu0 %v3112
      %4595 = vmatpush1.bf16.msra.mxu0 %v3111
      %4596 = vmatprep.subr.bf16.mxu0 %v3110
      %4597 = vmatpush1.bf16.msra.mxu0 %v3109
      %4598 = vmatprep.subr.bf16.mxu0 %v3108
      %4599 = vmatpush1.bf16.msra.mxu0 %v3107
      %4600 = vmatprep.subr.bf16.mxu0 %v3138
      %4601 = vmatpush2.bf16.msra.mxu0 %v3137
      %4602 = vmatprep.subr.bf16.mxu0 %v3136
      %4603 = vmatpush2.bf16.msra.mxu0 %v3135
      %4604 = vmatprep.subr.bf16.mxu0 %v3134
      %4605 = vmatpush2.bf16.msra.mxu0 %v3133
      %4606 = vmatprep.subr.bf16.mxu0 %v3132
      %4607 = vmatpush2.bf16.msra.mxu0 %v3131
      %4608 = vmatprep.subr.bf16.mxu0 %v3130
      %4609 = vmatpush2.bf16.msra.mxu0 %v3129
      %4610 = vmatprep.subr.bf16.mxu0 %v3128
      %4611 = vmatpush2.bf16.msra.mxu0 %v3127
      %4612 = vmatprep.subr.bf16.mxu0 %v3126
      %4613 = vmatpush2.bf16.msra.mxu0 %v3125
      %4614 = vmatprep.subr.bf16.mxu0 %v3124
      %4615 = vmatpush2.bf16.msra.mxu0 %v3123
      %4616 = vmatprep.mubr.bf16.mxu0 %v2039
      %4617 = vmatmul.mubr.bf16.gmra.mxu0 %v2038
      %v4618 = vpop.f32.mrf.mxu0
      %v4619 = vadd.f32 0.0, %v4618
      %v4620 = vpop.f32.mrf.mxu0
      %v4621 = vadd.f32 0.0, %v4620
      %v4622 = vpop.f32.mrf.mxu0
      %v4623 = vadd.f32 0.0, %v4622
      %v4624 = vpop.f32.mrf.mxu0
      %v4625 = vadd.f32 0.0, %v4624
      %4626 = vmatprep.mubr.bf16.mxu0 %v2042
      %4627 = vmatmul.mubr.bf16.gmra.mxu0 %v2041
      %v4628 = vpop.f32.mrf.mxu0
      %v4629 = vadd.f32 0.0, %v4628
      %v4630 = vpop.f32.mrf.mxu0
      %v4631 = vadd.f32 0.0, %v4630
      %v4632 = vpop.f32.mrf.mxu0
      %v4633 = vadd.f32 0.0, %v4632
      %v4634 = vpop.f32.mrf.mxu0
      %v4635 = vadd.f32 0.0, %v4634
      %4636 = vmatprep.mubr.bf16.mxu0 %v2045
      %4637 = vmatmul.mubr.bf16.gmra.mxu0 %v2044
      %v4638 = vpop.f32.mrf.mxu0
      %v4639 = vadd.f32 0.0, %v4638
      %v4640 = vpop.f32.mrf.mxu0
      %v4641 = vadd.f32 0.0, %v4640
      %v4642 = vpop.f32.mrf.mxu0
      %v4643 = vadd.f32 0.0, %v4642
      %v4644 = vpop.f32.mrf.mxu0
      %v4645 = vadd.f32 0.0, %v4644
      %4646 = vmatprep.mubr.bf16.mxu0 %v2048
      %4647 = vmatmul.mubr.bf16.gmra.mxu0 %v2047
      %v4648 = vpop.f32.mrf.mxu0
      %v4649 = vadd.f32 0.0, %v4648
      %v4650 = vpop.f32.mrf.mxu0
      %v4651 = vadd.f32 0.0, %v4650
      %v4652 = vpop.f32.mrf.mxu0
      %v4653 = vadd.f32 0.0, %v4652
      %v4654 = vpop.f32.mrf.mxu0
      %v4655 = vadd.f32 0.0, %v4654
      %4656 = vdwg.mxu0
      %4657 = vmatprep.subr.bf16.mxu0 0
      %4658 = vmatpush1.bf16.msra.mxu0 0
      %4659 = vmatprep.subr.bf16.mxu0 %v3152
      %4660 = vmatpush1.bf16.msra.mxu0 %v3151
      %4661 = vmatprep.subr.bf16.mxu0 %v3150
      %4662 = vmatpush1.bf16.msra.mxu0 %v3149
      %4663 = vmatprep.subr.bf16.mxu0 %v3148
      %4664 = vmatpush1.bf16.msra.mxu0 %v3147
      %4665 = vmatprep.subr.bf16.mxu0 %v3146
      %4666 = vmatpush1.bf16.msra.mxu0 %v3145
      %4667 = vmatprep.subr.bf16.mxu0 %v3144
      %4668 = vmatpush1.bf16.msra.mxu0 %v3143
      %4669 = vmatprep.subr.bf16.mxu0 %v3142
      %4670 = vmatpush1.bf16.msra.mxu0 %v3141
      %4671 = vmatprep.subr.bf16.mxu0 %v3140
      %4672 = vmatpush1.bf16.msra.mxu0 %v3139
      %4673 = vmatprep.subr.bf16.mxu0 0
      %4674 = vmatpush2.bf16.msra.mxu0 0
      %4675 = vmatprep.subr.bf16.mxu0 0
      %4676 = vmatpush2.bf16.msra.mxu0 0
      %4677 = vmatprep.subr.bf16.mxu0 0
      %4678 = vmatpush2.bf16.msra.mxu0 0
      %4679 = vmatprep.subr.bf16.mxu0 0
      %4680 = vmatpush2.bf16.msra.mxu0 0
      %4681 = vmatprep.subr.bf16.mxu0 0
      %4682 = vmatpush2.bf16.msra.mxu0 0
      %4683 = vmatprep.subr.bf16.mxu0 0
      %4684 = vmatpush2.bf16.msra.mxu0 0
      %4685 = vmatprep.subr.bf16.mxu0 0
      %4686 = vmatpush2.bf16.msra.mxu0 0
      %4687 = vmatprep.subr.bf16.mxu0 0
      %4688 = vmatpush2.bf16.msra.mxu0 0
      %4689 = vmatprep.mubr.bf16.mxu0 0
      %4690 = vmatmul.mubr.bf16.gmra.mxu0 %v2380
      %v4691 = vpop.f32.mrf.mxu0
      %v4692 = vadd.f32 %v4619, %v4691
      %v4693 = vpop.f32.mrf.mxu0
      %v4694 = vadd.f32 %v4621, %v4693
      %v4695 = vpop.f32.mrf.mxu0
      %v4696 = vadd.f32 %v4623, %v4695
      %v4697 = vpop.f32.mrf.mxu0
      %v4698 = vadd.f32 %v4625, %v4697
      %4699 = vmatprep.mubr.bf16.mxu0 0
      %4700 = vmatmul.mubr.bf16.gmra.mxu0 %v2383
      %v4701 = vpop.f32.mrf.mxu0
      %v4702 = vadd.f32 %v4629, %v4701
      %v4703 = vpop.f32.mrf.mxu0
      %v4704 = vadd.f32 %v4631, %v4703
      %v4705 = vpop.f32.mrf.mxu0
      %v4706 = vadd.f32 %v4633, %v4705
      %v4707 = vpop.f32.mrf.mxu0
      %v4708 = vadd.f32 %v4635, %v4707
      %4709 = vmatprep.mubr.bf16.mxu0 0
      %4710 = vmatmul.mubr.bf16.gmra.mxu0 %v2386
      %v4711 = vpop.f32.mrf.mxu0
      %v4712 = vadd.f32 %v4639, %v4711
      %v4713 = vpop.f32.mrf.mxu0
      %v4714 = vadd.f32 %v4641, %v4713
      %v4715 = vpop.f32.mrf.mxu0
      %v4716 = vadd.f32 %v4643, %v4715
      %v4717 = vpop.f32.mrf.mxu0
      %v4718 = vadd.f32 %v4645, %v4717
      %4719 = vmatprep.mubr.bf16.mxu0 0
      %4720 = vmatmul.mubr.bf16.gmra.mxu0 %v3642
      %v4721 = vpop.f32.mrf.mxu0
      %v4722 = vadd.f32 %v4649, %v4721
      %v4723 = vpop.f32.mrf.mxu0
      %v4724 = vadd.f32 %v4651, %v4723
      %v4725 = vpop.f32.mrf.mxu0
      %v4726 = vadd.f32 %v4653, %v4725
      %v4727 = vpop.f32.mrf.mxu0
      %v4728 = vadd.f32 %v4655, %v4727
      %4729 = vdwg.mxu0
      %v4730 = vadd.f32 %v4546, %v4692
      %v4731 = vadd.f32 %v4548, %v4694
      %v4732 = vadd.f32 %v4550, %v4696
      %v4733 = vadd.f32 %v4552, %v4698
      %v4734 = vadd.f32 %v4556, %v4702
      %v4735 = vadd.f32 %v4558, %v4704
      %v4736 = vadd.f32 %v4560, %v4706
      %v4737 = vadd.f32 %v4562, %v4708
      %v4738 = vadd.f32 %v4566, %v4712
      %v4739 = vadd.f32 %v4568, %v4714
      %v4740 = vadd.f32 %v4570, %v4716
      %v4741 = vadd.f32 %v4572, %v4718
      %v4742 = vadd.f32 %v4576, %v4722
      %v4743 = vadd.f32 %v4578, %v4724
      %v4744 = vadd.f32 %v4580, %v4726
      %v4745 = vadd.f32 %v4582, %v4728
      %4746 = vmatprep.subr.bf16.mxu0 %v3564
      %4747 = vmatpush1.bf16.msra.mxu0 %v3563
      %4748 = vmatprep.subr.bf16.mxu0 %v3562
      %4749 = vmatpush1.bf16.msra.mxu0 %v3561
      %4750 = vmatprep.subr.bf16.mxu0 %v3560
      %4751 = vmatpush1.bf16.msra.mxu0 %v3559
      %4752 = vmatprep.subr.bf16.mxu0 %v3558
      %4753 = vmatpush1.bf16.msra.mxu0 %v3557
      %4754 = vmatprep.subr.bf16.mxu0 %v3556
      %4755 = vmatpush1.bf16.msra.mxu0 %v3555
      %4756 = vmatprep.subr.bf16.mxu0 %v3554
      %4757 = vmatpush1.bf16.msra.mxu0 %v3553
      %4758 = vmatprep.subr.bf16.mxu0 %v3552
      %4759 = vmatpush1.bf16.msra.mxu0 %v3551
      %4760 = vmatprep.subr.bf16.mxu0 %v3550
      %4761 = vmatpush1.bf16.msra.mxu0 %v3549
      %4762 = vmatprep.subr.bf16.mxu0 %v3580
      %4763 = vmatpush2.bf16.msra.mxu0 %v3579
      %4764 = vmatprep.subr.bf16.mxu0 %v3578
      %4765 = vmatpush2.bf16.msra.mxu0 %v3577
      %4766 = vmatprep.subr.bf16.mxu0 %v3576
      %4767 = vmatpush2.bf16.msra.mxu0 %v3575
      %4768 = vmatprep.subr.bf16.mxu0 %v3574
      %4769 = vmatpush2.bf16.msra.mxu0 %v3573
      %4770 = vmatprep.subr.bf16.mxu0 %v3572
      %4771 = vmatpush2.bf16.msra.mxu0 %v3571
      %4772 = vmatprep.subr.bf16.mxu0 %v3570
      %4773 = vmatpush2.bf16.msra.mxu0 %v3569
      %4774 = vmatprep.subr.bf16.mxu0 %v3568
      %4775 = vmatpush2.bf16.msra.mxu0 %v3567
      %4776 = vmatprep.subr.bf16.mxu0 %v3566
      %4777 = vmatpush2.bf16.msra.mxu0 %v3565
      %4778 = vmatprep.mubr.bf16.mxu0 %v1820
      %4779 = vmatmul.mubr.bf16.gmra.mxu0 %v1819
      %v4780 = vpop.f32.mrf.mxu0
      %v4781 = vadd.f32 0.0, %v4780
      %v4782 = vpop.f32.mrf.mxu0
      %v4783 = vadd.f32 0.0, %v4782
      %v4784 = vpop.f32.mrf.mxu0
      %v4785 = vadd.f32 0.0, %v4784
      %v4786 = vpop.f32.mrf.mxu0
      %v4787 = vadd.f32 0.0, %v4786
      %4788 = vmatprep.mubr.bf16.mxu0 %v1823
      %4789 = vmatmul.mubr.bf16.gmra.mxu0 %v1822
      %v4790 = vpop.f32.mrf.mxu0
      %v4791 = vadd.f32 0.0, %v4790
      %v4792 = vpop.f32.mrf.mxu0
      %v4793 = vadd.f32 0.0, %v4792
      %v4794 = vpop.f32.mrf.mxu0
      %v4795 = vadd.f32 0.0, %v4794
      %v4796 = vpop.f32.mrf.mxu0
      %v4797 = vadd.f32 0.0, %v4796
      %4798 = vmatprep.mubr.bf16.mxu0 %v1826
      %4799 = vmatmul.mubr.bf16.gmra.mxu0 %v1825
      %v4800 = vpop.f32.mrf.mxu0
      %v4801 = vadd.f32 0.0, %v4800
      %v4802 = vpop.f32.mrf.mxu0
      %v4803 = vadd.f32 0.0, %v4802
      %v4804 = vpop.f32.mrf.mxu0
      %v4805 = vadd.f32 0.0, %v4804
      %v4806 = vpop.f32.mrf.mxu0
      %v4807 = vadd.f32 0.0, %v4806
      %4808 = vmatprep.mubr.bf16.mxu0 %v1829
      %4809 = vmatmul.mubr.bf16.gmra.mxu0 %v1828
      %v4810 = vpop.f32.mrf.mxu0
      %v4811 = vadd.f32 0.0, %v4810
      %v4812 = vpop.f32.mrf.mxu0
      %v4813 = vadd.f32 0.0, %v4812
      %v4814 = vpop.f32.mrf.mxu0
      %v4815 = vadd.f32 0.0, %v4814
      %v4816 = vpop.f32.mrf.mxu0
      %v4817 = vadd.f32 0.0, %v4816
      %4818 = vdwg.mxu0
      %4819 = vmatprep.subr.bf16.mxu0 0
      %4820 = vmatpush1.bf16.msra.mxu0 0
      %4821 = vmatprep.subr.bf16.mxu0 %v3594
      %4822 = vmatpush1.bf16.msra.mxu0 %v3593
      %4823 = vmatprep.subr.bf16.mxu0 %v3592
      %4824 = vmatpush1.bf16.msra.mxu0 %v3591
      %4825 = vmatprep.subr.bf16.mxu0 %v3590
      %4826 = vmatpush1.bf16.msra.mxu0 %v3589
      %4827 = vmatprep.subr.bf16.mxu0 %v3588
      %4828 = vmatpush1.bf16.msra.mxu0 %v3587
      %4829 = vmatprep.subr.bf16.mxu0 %v3586
      %4830 = vmatpush1.bf16.msra.mxu0 %v3585
      %4831 = vmatprep.subr.bf16.mxu0 %v3584
      %4832 = vmatpush1.bf16.msra.mxu0 %v3583
      %4833 = vmatprep.subr.bf16.mxu0 %v3582
      %4834 = vmatpush1.bf16.msra.mxu0 %v3581
      %4835 = vmatprep.subr.bf16.mxu0 0
      %4836 = vmatpush2.bf16.msra.mxu0 0
      %4837 = vmatprep.subr.bf16.mxu0 0
      %4838 = vmatpush2.bf16.msra.mxu0 0
      %4839 = vmatprep.subr.bf16.mxu0 0
      %4840 = vmatpush2.bf16.msra.mxu0 0
      %4841 = vmatprep.subr.bf16.mxu0 0
      %4842 = vmatpush2.bf16.msra.mxu0 0
      %4843 = vmatprep.subr.bf16.mxu0 0
      %4844 = vmatpush2.bf16.msra.mxu0 0
      %4845 = vmatprep.subr.bf16.mxu0 0
      %4846 = vmatpush2.bf16.msra.mxu0 0
      %4847 = vmatprep.subr.bf16.mxu0 0
      %4848 = vmatpush2.bf16.msra.mxu0 0
      %4849 = vmatprep.subr.bf16.mxu0 0
      %4850 = vmatpush2.bf16.msra.mxu0 0
      %4851 = vmatprep.mubr.bf16.mxu0 0
      %4852 = vmatmul.mubr.bf16.gmra.mxu0 %v2771
      %v4853 = vpop.f32.mrf.mxu0
      %v4854 = vadd.f32 %v4781, %v4853
      %v4855 = vpop.f32.mrf.mxu0
      %v4856 = vadd.f32 %v4783, %v4855
      %v4857 = vpop.f32.mrf.mxu0
      %v4858 = vadd.f32 %v4785, %v4857
      %v4859 = vpop.f32.mrf.mxu0
      %v4860 = vadd.f32 %v4787, %v4859
      %4861 = vmatprep.mubr.bf16.mxu0 0
      %4862 = vmatmul.mubr.bf16.gmra.mxu0 %v2774
      %v4863 = vpop.f32.mrf.mxu0
      %v4864 = vadd.f32 %v4791, %v4863
      %v4865 = vpop.f32.mrf.mxu0
      %v4866 = vadd.f32 %v4793, %v4865
      %v4867 = vpop.f32.mrf.mxu0
      %v4868 = vadd.f32 %v4795, %v4867
      %v4869 = vpop.f32.mrf.mxu0
      %v4870 = vadd.f32 %v4797, %v4869
      %4871 = vmatprep.mubr.bf16.mxu0 0
      %4872 = vmatmul.mubr.bf16.gmra.mxu0 %v3200
      %v4873 = vpop.f32.mrf.mxu0
      %v4874 = vadd.f32 %v4801, %v4873
      %v4875 = vpop.f32.mrf.mxu0
      %v4876 = vadd.f32 %v4803, %v4875
      %v4877 = vpop.f32.mrf.mxu0
      %v4878 = vadd.f32 %v4805, %v4877
      %v4879 = vpop.f32.mrf.mxu0
      %v4880 = vadd.f32 %v4807, %v4879
      %4881 = vmatprep.mubr.bf16.mxu0 0
      %4882 = vmatmul.mubr.bf16.gmra.mxu0 %v4084
      %v4883 = vpop.f32.mrf.mxu0
      %v4884 = vadd.f32 %v4811, %v4883
      %v4885 = vpop.f32.mrf.mxu0
      %v4886 = vadd.f32 %v4813, %v4885
      %v4887 = vpop.f32.mrf.mxu0
      %v4888 = vadd.f32 %v4815, %v4887
      %v4889 = vpop.f32.mrf.mxu0
      %v4890 = vadd.f32 %v4817, %v4889
      %4891 = vdwg.mxu0
      %v4892 = vadd.f32 %v4730, %v4854
      %v4893 = vadd.f32 %v4731, %v4856
      %v4894 = vadd.f32 %v4732, %v4858
      %v4895 = vadd.f32 %v4733, %v4860
      %v4896 = vadd.f32 %v4734, %v4864
      %v4897 = vadd.f32 %v4735, %v4866
      %v4898 = vadd.f32 %v4736, %v4868
      %v4899 = vadd.f32 %v4737, %v4870
      %v4900 = vadd.f32 %v4738, %v4874
      %v4901 = vadd.f32 %v4739, %v4876
      %v4902 = vadd.f32 %v4740, %v4878
      %v4903 = vadd.f32 %v4741, %v4880
      %v4904 = vadd.f32 %v4742, %v4884
      %v4905 = vadd.f32 %v4743, %v4886
      %v4906 = vadd.f32 %v4744, %v4888
      %v4907 = vadd.f32 %v4745, %v4890
      %v4909 = vsel %vm1716, %v2052, 0
      %4911 = vmatprep.subr.bf16.mxu0 %v4006
      %4912 = vmatpush1.bf16.msra.mxu0 %v4005
      %4913 = vmatprep.subr.bf16.mxu0 %v4004
      %4914 = vmatpush1.bf16.msra.mxu0 %v4003
      %4915 = vmatprep.subr.bf16.mxu0 %v4002
      %4916 = vmatpush1.bf16.msra.mxu0 %v4001
      %4917 = vmatprep.subr.bf16.mxu0 %v4000
      %4918 = vmatpush1.bf16.msra.mxu0 %v3999
      %4919 = vmatprep.subr.bf16.mxu0 %v3998
      %4920 = vmatpush1.bf16.msra.mxu0 %v3997
      %4921 = vmatprep.subr.bf16.mxu0 %v3996
      %4922 = vmatpush1.bf16.msra.mxu0 %v3995
      %4923 = vmatprep.subr.bf16.mxu0 %v3994
      %4924 = vmatpush1.bf16.msra.mxu0 %v3993
      %4925 = vmatprep.subr.bf16.mxu0 %v3992
      %4926 = vmatpush1.bf16.msra.mxu0 %v3991
      %4927 = vmatprep.subr.bf16.mxu0 %v4022
      %4928 = vmatpush2.bf16.msra.mxu0 %v4021
      %4929 = vmatprep.subr.bf16.mxu0 %v4020
      %4930 = vmatpush2.bf16.msra.mxu0 %v4019
      %4931 = vmatprep.subr.bf16.mxu0 %v4018
      %4932 = vmatpush2.bf16.msra.mxu0 %v4017
      %4933 = vmatprep.subr.bf16.mxu0 %v4016
      %4934 = vmatpush2.bf16.msra.mxu0 %v4015
      %4935 = vmatprep.subr.bf16.mxu0 %v4014
      %4936 = vmatpush2.bf16.msra.mxu0 %v4013
      %4937 = vmatprep.subr.bf16.mxu0 %v4012
      %4938 = vmatpush2.bf16.msra.mxu0 %v4011
      %4939 = vmatprep.subr.bf16.mxu0 %v4010
      %4940 = vmatpush2.bf16.msra.mxu0 %v4009
      %4941 = vmatprep.subr.bf16.mxu0 %v4008
      %4942 = vmatpush2.bf16.msra.mxu0 %v4007
      %4943 = vmatprep.mubr.bf16.mxu0 %v2042
      %4944 = vmatmul.mubr.bf16.gmra.mxu0 %v2041
      %v4945 = vpop.f32.mrf.mxu0
      %v4946 = vadd.f32 0.0, %v4945
      %v4947 = vpop.f32.mrf.mxu0
      %v4948 = vadd.f32 0.0, %v4947
      %v4949 = vpop.f32.mrf.mxu0
      %v4950 = vadd.f32 0.0, %v4949
      %v4951 = vpop.f32.mrf.mxu0
      %v4952 = vadd.f32 0.0, %v4951
      %4953 = vmatprep.mubr.bf16.mxu0 %v2045
      %4954 = vmatmul.mubr.bf16.gmra.mxu0 %v2044
      %v4955 = vpop.f32.mrf.mxu0
      %v4956 = vadd.f32 0.0, %v4955
      %v4957 = vpop.f32.mrf.mxu0
      %v4958 = vadd.f32 0.0, %v4957
      %v4959 = vpop.f32.mrf.mxu0
      %v4960 = vadd.f32 0.0, %v4959
      %v4961 = vpop.f32.mrf.mxu0
      %v4962 = vadd.f32 0.0, %v4961
      %4963 = vmatprep.mubr.bf16.mxu0 %v2048
      %4964 = vmatmul.mubr.bf16.gmra.mxu0 %v2047
      %v4965 = vpop.f32.mrf.mxu0
      %v4966 = vadd.f32 0.0, %v4965
      %v4967 = vpop.f32.mrf.mxu0
      %v4968 = vadd.f32 0.0, %v4967
      %v4969 = vpop.f32.mrf.mxu0
      %v4970 = vadd.f32 0.0, %v4969
      %v4971 = vpop.f32.mrf.mxu0
      %v4972 = vadd.f32 0.0, %v4971
      %4973 = vmatprep.mubr.bf16.mxu0 %v2051
      %4974 = vmatmul.mubr.bf16.gmra.mxu0 %v2050
      %v4975 = vpop.f32.mrf.mxu0
      %v4976 = vadd.f32 0.0, %v4975
      %v4977 = vpop.f32.mrf.mxu0
      %v4978 = vadd.f32 0.0, %v4977
      %v4979 = vpop.f32.mrf.mxu0
      %v4980 = vadd.f32 0.0, %v4979
      %v4981 = vpop.f32.mrf.mxu0
      %v4982 = vadd.f32 0.0, %v4981
      %4983 = vdwg.mxu0
      %4984 = vmatprep.subr.bf16.mxu0 0
      %4985 = vmatpush1.bf16.msra.mxu0 0
      %4986 = vmatprep.subr.bf16.mxu0 %v4036
      %4987 = vmatpush1.bf16.msra.mxu0 %v4035
      %4988 = vmatprep.subr.bf16.mxu0 %v4034
      %4989 = vmatpush1.bf16.msra.mxu0 %v4033
      %4990 = vmatprep.subr.bf16.mxu0 %v4032
      %4991 = vmatpush1.bf16.msra.mxu0 %v4031
      %4992 = vmatprep.subr.bf16.mxu0 %v4030
      %4993 = vmatpush1.bf16.msra.mxu0 %v4029
      %4994 = vmatprep.subr.bf16.mxu0 %v4028
      %4995 = vmatpush1.bf16.msra.mxu0 %v4027
      %4996 = vmatprep.subr.bf16.mxu0 %v4026
      %4997 = vmatpush1.bf16.msra.mxu0 %v4025
      %4998 = vmatprep.subr.bf16.mxu0 %v4024
      %4999 = vmatpush1.bf16.msra.mxu0 %v4023
      %5000 = vmatprep.subr.bf16.mxu0 0
      %5001 = vmatpush2.bf16.msra.mxu0 0
      %5002 = vmatprep.subr.bf16.mxu0 0
      %5003 = vmatpush2.bf16.msra.mxu0 0
      %5004 = vmatprep.subr.bf16.mxu0 0
      %5005 = vmatpush2.bf16.msra.mxu0 0
      %5006 = vmatprep.subr.bf16.mxu0 0
      %5007 = vmatpush2.bf16.msra.mxu0 0
      %5008 = vmatprep.subr.bf16.mxu0 0
      %5009 = vmatpush2.bf16.msra.mxu0 0
      %5010 = vmatprep.subr.bf16.mxu0 0
      %5011 = vmatpush2.bf16.msra.mxu0 0
      %5012 = vmatprep.subr.bf16.mxu0 0
      %5013 = vmatpush2.bf16.msra.mxu0 0
      %5014 = vmatprep.subr.bf16.mxu0 0
      %5015 = vmatpush2.bf16.msra.mxu0 0
      %5016 = vmatprep.mubr.bf16.mxu0 0
      %5017 = vmatmul.mubr.bf16.gmra.mxu0 %v2383
      %v5018 = vpop.f32.mrf.mxu0
      %v5019 = vadd.f32 %v4946, %v5018
      %v5020 = vpop.f32.mrf.mxu0
      %v5021 = vadd.f32 %v4948, %v5020
      %v5022 = vpop.f32.mrf.mxu0
      %v5023 = vadd.f32 %v4950, %v5022
      %v5024 = vpop.f32.mrf.mxu0
      %v5025 = vadd.f32 %v4952, %v5024
      %5026 = vmatprep.mubr.bf16.mxu0 0
      %5027 = vmatmul.mubr.bf16.gmra.mxu0 %v2386
      %v5028 = vpop.f32.mrf.mxu0
      %v5029 = vadd.f32 %v4956, %v5028
      %v5030 = vpop.f32.mrf.mxu0
      %v5031 = vadd.f32 %v4958, %v5030
      %v5032 = vpop.f32.mrf.mxu0
      %v5033 = vadd.f32 %v4960, %v5032
      %v5034 = vpop.f32.mrf.mxu0
      %v5035 = vadd.f32 %v4962, %v5034
      %5036 = vmatprep.mubr.bf16.mxu0 0
      %5037 = vmatmul.mubr.bf16.gmra.mxu0 %v3642
      %v5038 = vpop.f32.mrf.mxu0
      %v5039 = vadd.f32 %v4966, %v5038
      %v5040 = vpop.f32.mrf.mxu0
      %v5041 = vadd.f32 %v4968, %v5040
      %v5042 = vpop.f32.mrf.mxu0
      %v5043 = vadd.f32 %v4970, %v5042
      %v5044 = vpop.f32.mrf.mxu0
      %v5045 = vadd.f32 %v4972, %v5044
      %5046 = vmatprep.mubr.bf16.mxu0 0
      %5047 = vmatmul.mubr.bf16.gmra.mxu0 %v4909
      %v5048 = vpop.f32.mrf.mxu0
      %v5049 = vadd.f32 %v4976, %v5048
      %v5050 = vpop.f32.mrf.mxu0
      %v5051 = vadd.f32 %v4978, %v5050
      %v5052 = vpop.f32.mrf.mxu0
      %v5053 = vadd.f32 %v4980, %v5052
      %v5054 = vpop.f32.mrf.mxu0
      %v5055 = vadd.f32 %v4982, %v5054
      %5056 = vdwg.mxu0
      %v5057 = vadd.f32 %v4892, %v5019
      %v5058 = vadd.f32 %v4893, %v5021
      %v5059 = vadd.f32 %v4894, %v5023
      %v5060 = vadd.f32 %v4895, %v5025
      %v5061 = vadd.f32 %v4896, %v5029
      %v5062 = vadd.f32 %v4897, %v5031
      %v5063 = vadd.f32 %v4898, %v5033
      %v5064 = vadd.f32 %v4899, %v5035
      %v5065 = vadd.f32 %v4900, %v5039
      %v5066 = vadd.f32 %v4901, %v5041
      %v5067 = vadd.f32 %v4902, %v5043
      %v5068 = vadd.f32 %v4903, %v5045
      %v5069 = vadd.f32 %v4904, %v5049
      %v5070 = vadd.f32 %v4905, %v5051
      %v5071 = vadd.f32 %v4906, %v5053
      %v5072 = vadd.f32 %v4907, %v5055
      %v5073 = vadd.f32 %v5057, %v4253
      %v5074 = vadd.f32 %v5058, %v4257
      %v5075 = vadd.f32 %v5059, %v4253
      %v5076 = vadd.f32 %v5060, %v4257
      %v5077 = vadd.f32 %v5061, %v4253
      %v5078 = vadd.f32 %v5062, %v4257
      %v5079 = vadd.f32 %v5063, %v4253
      %v5080 = vadd.f32 %v5064, %v4257
      %v5081 = vadd.f32 %v5065, %v4253
      %v5082 = vadd.f32 %v5066, %v4257
      %v5083 = vadd.f32 %v5067, %v4253
      %v5084 = vadd.f32 %v5068, %v4257
      %v5085 = vadd.f32 %v5069, %v4253
      %v5086 = vadd.f32 %v5070, %v4257
      %v5087 = vadd.f32 %v5071, %v4253
      %v5088 = vadd.f32 %v5072, %v4257
      %v5089 = vmax.f32 %v5073, 0.0
      %v5090 = vmax.f32 %v5074, 0.0
      %v5091 = vmax.f32 %v5075, 0.0
      %v5092 = vmax.f32 %v5076, 0.0
      %v5093 = vmax.f32 %v5077, 0.0
      %v5094 = vmax.f32 %v5078, 0.0
      %v5095 = vmax.f32 %v5079, 0.0
      %v5096 = vmax.f32 %v5080, 0.0
      %v5097 = vmax.f32 %v5081, 0.0
      %v5098 = vmax.f32 %v5082, 0.0
      %v5099 = vmax.f32 %v5083, 0.0
      %v5100 = vmax.f32 %v5084, 0.0
      %v5101 = vmax.f32 %v5085, 0.0
      %v5102 = vmax.f32 %v5086, 0.0
      %v5103 = vmax.f32 %v5087, 0.0
      %v5104 = vmax.f32 %v5088, 0.0
      %v5105 = vmax.f32 %v4276, %v5089
      %v5106 = vmax.f32 %v4277, %v5090
      %v5107 = vmax.f32 %v4278, %v5091
      %v5108 = vmax.f32 %v4279, %v5092
      %v5109 = vmax.f32 %v4280, %v5093
      %v5110 = vmax.f32 %v4281, %v5094
      %v5111 = vmax.f32 %v4282, %v5095
      %v5112 = vmax.f32 %v4283, %v5096
      %v5113 = vmax.f32 %v4284, %v5097
      %v5114 = vmax.f32 %v4285, %v5098
      %v5115 = vmax.f32 %v4286, %v5099
      %v5116 = vmax.f32 %v4287, %v5100
      %v5117 = vmax.f32 %v4288, %v5101
      %v5118 = vmax.f32 %v4289, %v5102
      %v5119 = vmax.f32 %v4290, %v5103
      %v5120 = vmax.f32 %v4291, %v5104
      %5137 = vrot.lane.b32.xlu0 %v5105, 96
      %v5138 = vpop.permute.xlu0 %5137
      %5139 = vrot.lane.b32.xlu0 %v5106, 96
      %v5140 = vpop.permute.xlu0 %5139
      %5141 = vrot.lane.b32.xlu0 %v5107, 96
      %v5142 = vpop.permute.xlu0 %5141
      %5143 = vrot.lane.b32.xlu0 %v5108, 96
      %v5144 = vpop.permute.xlu0 %5143
      %5145 = vrot.lane.b32.xlu0 %v5109, 96
      %v5146 = vpop.permute.xlu0 %5145
      %5147 = vrot.lane.b32.xlu0 %v5110, 96
      %v5148 = vpop.permute.xlu0 %5147
      %5149 = vrot.lane.b32.xlu0 %v5111, 96
      %v5150 = vpop.permute.xlu0 %5149
      %5151 = vrot.lane.b32.xlu0 %v5112, 96
      %v5152 = vpop.permute.xlu0 %5151
      %5153 = vrot.lane.b32.xlu0 %v5113, 96
      %v5154 = vpop.permute.xlu0 %5153
      %5155 = vrot.lane.b32.xlu0 %v5114, 96
      %v5156 = vpop.permute.xlu0 %5155
      %5157 = vrot.lane.b32.xlu0 %v5115, 96
      %v5158 = vpop.permute.xlu0 %5157
      %5159 = vrot.lane.b32.xlu0 %v5116, 96
      %v5160 = vpop.permute.xlu0 %5159
      %5161 = vrot.lane.b32.xlu0 %v5117, 96
      %v5162 = vpop.permute.xlu0 %5161
      %5163 = vrot.lane.b32.xlu0 %v5118, 96
      %v5164 = vpop.permute.xlu0 %5163
      %5165 = vrot.lane.b32.xlu0 %v5119, 96
      %v5166 = vpop.permute.xlu0 %5165
      %5167 = vrot.lane.b32.xlu0 %v5120, 96
      %v5168 = vpop.permute.xlu0 %5167
      %vm5169 = vcmask 785408
      %v5170 = vsel %vm5169, %v5138, %v5140
      %v5171 = vsel %vm5169, %v5142, %v5144
      %v5172 = vsel %vm5169, %v5146, %v5148
      %v5173 = vsel %vm5169, %v5150, %v5152
      %v5174 = vsel %vm5169, %v5154, %v5156
      %v5175 = vsel %vm5169, %v5158, %v5160
      %v5176 = vsel %vm5169, %v5162, %v5164
      %v5177 = vsel %vm5169, %v5166, %v5168
      %v5194 = vmax.f32 %v5105, %v5170
      %v5195 = vmax.f32 %v5106, %v5140
      %v5196 = vmax.f32 %v5107, %v5171
      %v5197 = vmax.f32 %v5108, %v5144
      %v5198 = vmax.f32 %v5109, %v5172
      %v5199 = vmax.f32 %v5110, %v5148
      %v5200 = vmax.f32 %v5111, %v5173
      %v5201 = vmax.f32 %v5112, %v5152
      %v5202 = vmax.f32 %v5113, %v5174
      %v5203 = vmax.f32 %v5114, %v5156
      %v5204 = vmax.f32 %v5115, %v5175
      %v5205 = vmax.f32 %v5116, %v5160
      %v5206 = vmax.f32 %v5117, %v5176
      %v5207 = vmax.f32 %v5118, %v5164
      %v5208 = vmax.f32 %v5119, %v5177
      %v5209 = vmax.f32 %v5120, %v5168
      %v5210 = vpack.c.bf16 %v5196, %v5194
      %v5211 = vpack.c.bf16 %v5197, %v5195
      %v5212 = vpack.c.bf16 %v5200, %v5198
      %v5213 = vpack.c.bf16 %v5201, %v5199
      %v5214 = vpack.c.bf16 %v5204, %v5202
      %v5215 = vpack.c.bf16 %v5205, %v5203
      %v5216 = vpack.c.bf16 %v5208, %v5206
      %v5217 = vpack.c.bf16 %v5209, %v5207
      %v5218 = vld [vmem:[%s5] sm:$0xf]
      %v5219 = vld [vmem:[%s5 + $0x4] sm:$0xf]
      %v5220 = vld [vmem:[%s5 + $0x8] sm:$0xf]
      %v5221 = vld [vmem:[%s5 + $0xc] sm:$0xf]
      %v5222 = vld [vmem:[%s5 + $0x10] sm:$0xf]
      %v5223 = vld [vmem:[%s5 + $0x14] sm:$0xf]
      %v5224 = vld [vmem:[%s5 + $0x18] sm:$0xf]
      %v5225 = vld [vmem:[%s5 + $0x1c] sm:$0xf]
      %v5226 = vld [vmem:[%s5 + $0x20] sm:$0xf]
      %v5227 = vld [vmem:[%s5 + $0x24] sm:$0xf]
      %v5228 = vld [vmem:[%s5 + $0x28] sm:$0xf]
      %v5229 = vld [vmem:[%s5 + $0x2c] sm:$0xf]
      %v5230 = vld [vmem:[%s5 + $0x30] sm:$0xf]
      %v5231 = vld [vmem:[%s5 + $0x34] sm:$0xf]
      %v5232 = vld [vmem:[%s5 + $0x38] sm:$0xf]
      %v5233 = vld [vmem:[%s5 + $0x3c] sm:$0xf]
      %v5234 = vld [vmem:[%s5 + $0x40] sm:$0xf]
      %v5235 = vld [vmem:[%s5 + $0x44] sm:$0xf]
      %v5236 = vld [vmem:[%s5 + $0x48] sm:$0xf]
      %v5237 = vld [vmem:[%s5 + $0x4c] sm:$0xf]
      %v5238 = vld [vmem:[%s5 + $0x50] sm:$0xf]
      %v5239 = vld [vmem:[%s5 + $0x54] sm:$0xf]
      %v5240 = vld [vmem:[%s5 + $0x58] sm:$0xf]
      %v5241 = vld [vmem:[%s5 + $0x5c] sm:$0xf]
      %v5242 = vld [vmem:[%s5 + $0x60] sm:$0xf]
      %v5243 = vld [vmem:[%s5 + $0x64] sm:$0xf]
      %v5244 = vld [vmem:[%s5 + $0x68] sm:$0xf]
      %v5245 = vld [vmem:[%s5 + $0x6c] sm:$0xf]
      %s5246 = scalar_lea.vmem %s5, 112
      %v5247 = vld [vmem:[%s5246] sm:$0xf]
      %v5248 = vld [vmem:[%s5246 + $0x4] sm:$0xf]
      %v5249 = vld [vmem:[%s5246 + $0x8] sm:$0xf]
      %v5250 = vld [vmem:[%s5246 + $0xc] sm:$0xf]
      %v5251 = vld [vmem:[%s5246 + $0x10] sm:$0xf]
      %v5252 = vld [vmem:[%s5246 + $0x14] sm:$0xf]
      %v5253 = vld [vmem:[%s5246 + $0x18] sm:$0xf]
      %v5254 = vld [vmem:[%s5246 + $0x1c] sm:$0xf]
      %v5255 = vld [vmem:[%s5246 + $0x20] sm:$0xf]
      %v5256 = vld [vmem:[%s5246 + $0x24] sm:$0xf]
      %v5257 = vld [vmem:[%s5246 + $0x28] sm:$0xf]
      %v5258 = vld [vmem:[%s5246 + $0x2c] sm:$0xf]
      %v5259 = vld [vmem:[%s5246 + $0x30] sm:$0xf]
      %v5260 = vld [vmem:[%s5246 + $0x34] sm:$0xf]
      %v5261 = vld [vmem:[%s5246 + $0x38] sm:$0xf]
      %v5262 = vld [vmem:[%s5246 + $0x3c] sm:$0xf]
      %v5263 = vld [vmem:[%s5246 + $0x40] sm:$0xf]
      %v5264 = vld [vmem:[%s5246 + $0x44] sm:$0xf]
      %v5265 = vld [vmem:[%s5246 + $0x48] sm:$0xf]
      %v5266 = vld [vmem:[%s5246 + $0x4c] sm:$0xf]
      %v5267 = vld [vmem:[%s5246 + $0x50] sm:$0xf]
      %v5268 = vld [vmem:[%s5246 + $0x54] sm:$0xf]
      %v5269 = vld [vmem:[%s5246 + $0x58] sm:$0xf]
      %v5270 = vld [vmem:[%s5246 + $0x5c] sm:$0xf]
      %v5271 = vld [vmem:[%s5246 + $0x60] sm:$0xf]
      %v5272 = vld [vmem:[%s5246 + $0x64] sm:$0xf]
      %v5273 = vld [vmem:[%s5246 + $0x68] sm:$0xf]
      %v5274 = vld [vmem:[%s5246 + $0x6c] sm:$0xf]
      %v5303 = vunpack.c.l.b16 %v5247
      %v5304 = vunpack.c.l.b16 %v5248
      %v5305 = vunpack.c.l.b16 %v5249
      %v5306 = vunpack.c.l.b16 %v5250
      %v5307 = vunpack.c.l.b16 %v5251
      %v5308 = vunpack.c.l.b16 %v5252
      %v5309 = vunpack.c.l.b16 %v5253
      %v5310 = vunpack.c.l.b16 %v5254
      %v5311 = vunpack.c.l.b16 %v5255
      %v5312 = vunpack.c.l.b16 %v5256
      %v5313 = vunpack.c.l.b16 %v5257
      %v5314 = vunpack.c.l.b16 %v5258
      %v5315 = vunpack.c.l.b16 %v5259
      %v5316 = vunpack.c.l.b16 %v5260
      %v5317 = vunpack.c.l.b16 %v5261
      %v5318 = vunpack.c.l.b16 %v5262
      %v5319 = vunpack.c.l.b16 %v5263
      %v5320 = vunpack.c.l.b16 %v5264
      %v5321 = vunpack.c.l.b16 %v5265
      %v5322 = vunpack.c.l.b16 %v5266
      %v5323 = vunpack.c.l.b16 %v5267
      %v5324 = vunpack.c.l.b16 %v5268
      %v5325 = vunpack.c.l.b16 %v5269
      %v5326 = vunpack.c.l.b16 %v5270
      %v5327 = vunpack.c.l.b16 %v5271
      %v5328 = vunpack.c.l.b16 %v5272
      %v5329 = vunpack.c.l.b16 %v5273
      %v5330 = vunpack.c.l.b16 %v5274
      %v5331 = vpack.c.b16 %v5304, %v5303
      %v5332 = vpack.c.b16 %v5306, %v5305
      %v5333 = vpack.c.b16 %v5308, %v5307
      %v5334 = vpack.c.b16 %v5310, %v5309
      %v5335 = vpack.c.b16 %v5312, %v5311
      %v5336 = vpack.c.b16 %v5314, %v5313
      %v5337 = vpack.c.b16 %v5316, %v5315
      %v5338 = vpack.c.b16 %v5318, %v5317
      %v5339 = vpack.c.b16 %v5320, %v5319
      %v5340 = vpack.c.b16 %v5322, %v5321
      %v5341 = vpack.c.b16 %v5324, %v5323
      %v5342 = vpack.c.b16 %v5326, %v5325
      %v5343 = vpack.c.b16 %v5328, %v5327
      %v5344 = vpack.c.b16 %v5330, %v5329
      %v5360 = vsel %vm5169, %v5213, 0
      %5362 = vmatprep.subr.bf16.mxu0 0
      %5363 = vmatpush1.bf16.msra.mxu0 %v5338
      %5364 = vmatprep.subr.bf16.mxu0 0
      %5365 = vmatpush1.bf16.msra.mxu0 %v5337
      %5366 = vmatprep.subr.bf16.mxu0 0
      %5367 = vmatpush1.bf16.msra.mxu0 %v5336
      %5368 = vmatprep.subr.bf16.mxu0 0
      %5369 = vmatpush1.bf16.msra.mxu0 %v5335
      %5370 = vmatprep.subr.bf16.mxu0 0
      %5371 = vmatpush1.bf16.msra.mxu0 %v5334
      %5372 = vmatprep.subr.bf16.mxu0 0
      %5373 = vmatpush1.bf16.msra.mxu0 %v5333
      %5374 = vmatprep.subr.bf16.mxu0 0
      %5375 = vmatpush1.bf16.msra.mxu0 %v5332
      %5376 = vmatprep.subr.bf16.mxu0 0
      %5377 = vmatpush1.bf16.msra.mxu0 %v5331
      %5378 = vmatprep.subr.bf16.mxu0 0
      %5379 = vmatpush2.bf16.msra.mxu0 0
      %5380 = vmatprep.subr.bf16.mxu0 0
      %5381 = vmatpush2.bf16.msra.mxu0 0
      %5382 = vmatprep.subr.bf16.mxu0 0
      %5383 = vmatpush2.bf16.msra.mxu0 %v5344
      %5384 = vmatprep.subr.bf16.mxu0 0
      %5385 = vmatpush2.bf16.msra.mxu0 %v5343
      %5386 = vmatprep.subr.bf16.mxu0 0
      %5387 = vmatpush2.bf16.msra.mxu0 %v5342
      %5388 = vmatprep.subr.bf16.mxu0 0
      %5389 = vmatpush2.bf16.msra.mxu0 %v5341
      %5390 = vmatprep.subr.bf16.mxu0 0
      %5391 = vmatpush2.bf16.msra.mxu0 %v5340
      %5392 = vmatprep.subr.bf16.mxu0 0
      %5393 = vmatpush2.bf16.msra.mxu0 %v5339
      %5394 = vmatprep.mubr.bf16.mxu0 %v5360
      %5395 = vmatmul.mubr.bf16.gmra.mxu0 %v5212
      %v5396 = vpop.f32.mrf.mxu0
      %v5397 = vadd.f32 0.0, %v5396
      %v5398 = vpop.f32.mrf.mxu0
      %v5399 = vpop.f32.mrf.mxu0
      %v5400 = vadd.f32 0.0, %v5399
      %v5401 = vpop.f32.mrf.mxu0
      %5402 = vdwg.mxu0
      %v5431 = vunpack.c.l.b16 %v5218
      %v5432 = vunpack.c.l.b16 %v5219
      %v5433 = vunpack.c.l.b16 %v5220
      %v5434 = vunpack.c.l.b16 %v5221
      %v5435 = vunpack.c.l.b16 %v5222
      %v5436 = vunpack.c.l.b16 %v5223
      %v5437 = vunpack.c.l.b16 %v5224
      %v5438 = vunpack.c.l.b16 %v5225
      %v5439 = vunpack.c.l.b16 %v5226
      %v5440 = vunpack.c.l.b16 %v5227
      %v5441 = vunpack.c.l.b16 %v5228
      %v5442 = vunpack.c.l.b16 %v5229
      %v5443 = vunpack.c.l.b16 %v5230
      %v5444 = vunpack.c.l.b16 %v5231
      %v5445 = vunpack.c.l.b16 %v5232
      %v5446 = vunpack.c.l.b16 %v5233
      %v5447 = vunpack.c.l.b16 %v5234
      %v5448 = vunpack.c.l.b16 %v5235
      %v5449 = vunpack.c.l.b16 %v5236
      %v5450 = vunpack.c.l.b16 %v5237
      %v5451 = vunpack.c.l.b16 %v5238
      %v5452 = vunpack.c.l.b16 %v5239
      %v5453 = vunpack.c.l.b16 %v5240
      %v5454 = vunpack.c.l.b16 %v5241
      %v5455 = vunpack.c.l.b16 %v5242
      %v5456 = vunpack.c.l.b16 %v5243
      %v5457 = vunpack.c.l.b16 %v5244
      %v5458 = vunpack.c.l.b16 %v5245
      %v5459 = vpack.c.b16 %v5432, %v5431
      %v5460 = vpack.c.b16 %v5434, %v5433
      %v5461 = vpack.c.b16 %v5436, %v5435
      %v5462 = vpack.c.b16 %v5438, %v5437
      %v5463 = vpack.c.b16 %v5440, %v5439
      %v5464 = vpack.c.b16 %v5442, %v5441
      %v5465 = vpack.c.b16 %v5444, %v5443
      %v5466 = vpack.c.b16 %v5446, %v5445
      %v5467 = vpack.c.b16 %v5448, %v5447
      %v5468 = vpack.c.b16 %v5450, %v5449
      %v5469 = vpack.c.b16 %v5452, %v5451
      %v5470 = vpack.c.b16 %v5454, %v5453
      %v5471 = vpack.c.b16 %v5456, %v5455
      %v5472 = vpack.c.b16 %v5458, %v5457
      %v5488 = vsel %vm5169, %v5211, 0
      %5490 = vmatprep.subr.bf16.mxu0 0
      %5491 = vmatpush1.bf16.msra.mxu0 %v5466
      %5492 = vmatprep.subr.bf16.mxu0 0
      %5493 = vmatpush1.bf16.msra.mxu0 %v5465
      %5494 = vmatprep.subr.bf16.mxu0 0
      %5495 = vmatpush1.bf16.msra.mxu0 %v5464
      %5496 = vmatprep.subr.bf16.mxu0 0
      %5497 = vmatpush1.bf16.msra.mxu0 %v5463
      %5498 = vmatprep.subr.bf16.mxu0 0
      %5499 = vmatpush1.bf16.msra.mxu0 %v5462
      %5500 = vmatprep.subr.bf16.mxu0 0
      %5501 = vmatpush1.bf16.msra.mxu0 %v5461
      %5502 = vmatprep.subr.bf16.mxu0 0
      %5503 = vmatpush1.bf16.msra.mxu0 %v5460
      %5504 = vmatprep.subr.bf16.mxu0 0
      %5505 = vmatpush1.bf16.msra.mxu0 %v5459
      %5506 = vmatprep.subr.bf16.mxu0 0
      %5507 = vmatpush2.bf16.msra.mxu0 0
      %5508 = vmatprep.subr.bf16.mxu0 0
      %5509 = vmatpush2.bf16.msra.mxu0 0
      %5510 = vmatprep.subr.bf16.mxu0 0
      %5511 = vmatpush2.bf16.msra.mxu0 %v5472
      %5512 = vmatprep.subr.bf16.mxu0 0
      %5513 = vmatpush2.bf16.msra.mxu0 %v5471
      %5514 = vmatprep.subr.bf16.mxu0 0
      %5515 = vmatpush2.bf16.msra.mxu0 %v5470
      %5516 = vmatprep.subr.bf16.mxu0 0
      %5517 = vmatpush2.bf16.msra.mxu0 %v5469
      %5518 = vmatprep.subr.bf16.mxu0 0
      %5519 = vmatpush2.bf16.msra.mxu0 %v5468
      %5520 = vmatprep.subr.bf16.mxu0 0
      %5521 = vmatpush2.bf16.msra.mxu0 %v5467
      %5522 = vmatprep.mubr.bf16.mxu0 %v5488
      %5523 = vmatmul.mubr.bf16.gmra.mxu0 %v5210
      %v5524 = vpop.f32.mrf.mxu0
      %v5525 = vadd.f32 %v5397, %v5524
      %v5526 = vpop.f32.mrf.mxu0
      %v5527 = vpop.f32.mrf.mxu0
      %v5528 = vadd.f32 %v5400, %v5527
      %v5529 = vpop.f32.mrf.mxu0
      %5530 = vdwg.mxu0
      %s5531 = scalar_lea.vmem %s5, 224
      %v5532 = vld [vmem:[%s5531] sm:$0xf]
      %v5533 = vld [vmem:[%s5531 + $0x4] sm:$0xf]
      %v5534 = vld [vmem:[%s5531 + $0x8] sm:$0xf]
      %v5535 = vld [vmem:[%s5531 + $0xc] sm:$0xf]
      %v5536 = vld [vmem:[%s5531 + $0x10] sm:$0xf]
      %v5537 = vld [vmem:[%s5531 + $0x14] sm:$0xf]
      %v5538 = vld [vmem:[%s5531 + $0x18] sm:$0xf]
      %v5539 = vld [vmem:[%s5531 + $0x1c] sm:$0xf]
      %v5540 = vld [vmem:[%s5531 + $0x20] sm:$0xf]
      %v5541 = vld [vmem:[%s5531 + $0x24] sm:$0xf]
      %v5542 = vld [vmem:[%s5531 + $0x28] sm:$0xf]
      %v5543 = vld [vmem:[%s5531 + $0x2c] sm:$0xf]
      %v5544 = vld [vmem:[%s5531 + $0x30] sm:$0xf]
      %v5545 = vld [vmem:[%s5531 + $0x34] sm:$0xf]
      %v5546 = vld [vmem:[%s5531 + $0x38] sm:$0xf]
      %v5547 = vld [vmem:[%s5531 + $0x3c] sm:$0xf]
      %v5548 = vld [vmem:[%s5531 + $0x40] sm:$0xf]
      %v5549 = vld [vmem:[%s5531 + $0x44] sm:$0xf]
      %v5550 = vld [vmem:[%s5531 + $0x48] sm:$0xf]
      %v5551 = vld [vmem:[%s5531 + $0x4c] sm:$0xf]
      %v5552 = vld [vmem:[%s5531 + $0x50] sm:$0xf]
      %v5553 = vld [vmem:[%s5531 + $0x54] sm:$0xf]
      %v5554 = vld [vmem:[%s5531 + $0x58] sm:$0xf]
      %v5555 = vld [vmem:[%s5531 + $0x5c] sm:$0xf]
      %v5556 = vld [vmem:[%s5531 + $0x60] sm:$0xf]
      %v5557 = vld [vmem:[%s5531 + $0x64] sm:$0xf]
      %v5558 = vld [vmem:[%s5531 + $0x68] sm:$0xf]
      %v5559 = vld [vmem:[%s5531 + $0x6c] sm:$0xf]
      %v5588 = vunpack.c.l.b16 %v5532
      %v5589 = vunpack.c.l.b16 %v5533
      %v5590 = vunpack.c.l.b16 %v5534
      %v5591 = vunpack.c.l.b16 %v5535
      %v5592 = vunpack.c.l.b16 %v5536
      %v5593 = vunpack.c.l.b16 %v5537
      %v5594 = vunpack.c.l.b16 %v5538
      %v5595 = vunpack.c.l.b16 %v5539
      %v5596 = vunpack.c.l.b16 %v5540
      %v5597 = vunpack.c.l.b16 %v5541
      %v5598 = vunpack.c.l.b16 %v5542
      %v5599 = vunpack.c.l.b16 %v5543
      %v5600 = vunpack.c.l.b16 %v5544
      %v5601 = vunpack.c.l.b16 %v5545
      %v5602 = vunpack.c.l.b16 %v5546
      %v5603 = vunpack.c.l.b16 %v5547
      %v5604 = vunpack.c.l.b16 %v5548
      %v5605 = vunpack.c.l.b16 %v5549
      %v5606 = vunpack.c.l.b16 %v5550
      %v5607 = vunpack.c.l.b16 %v5551
      %v5608 = vunpack.c.l.b16 %v5552
      %v5609 = vunpack.c.l.b16 %v5553
      %v5610 = vunpack.c.l.b16 %v5554
      %v5611 = vunpack.c.l.b16 %v5555
      %v5612 = vunpack.c.l.b16 %v5556
      %v5613 = vunpack.c.l.b16 %v5557
      %v5614 = vunpack.c.l.b16 %v5558
      %v5615 = vunpack.c.l.b16 %v5559
      %v5616 = vpack.c.b16 %v5589, %v5588
      %v5617 = vpack.c.b16 %v5591, %v5590
      %v5618 = vpack.c.b16 %v5593, %v5592
      %v5619 = vpack.c.b16 %v5595, %v5594
      %v5620 = vpack.c.b16 %v5597, %v5596
      %v5621 = vpack.c.b16 %v5599, %v5598
      %v5622 = vpack.c.b16 %v5601, %v5600
      %v5623 = vpack.c.b16 %v5603, %v5602
      %v5624 = vpack.c.b16 %v5605, %v5604
      %v5625 = vpack.c.b16 %v5607, %v5606
      %v5626 = vpack.c.b16 %v5609, %v5608
      %v5627 = vpack.c.b16 %v5611, %v5610
      %v5628 = vpack.c.b16 %v5613, %v5612
      %v5629 = vpack.c.b16 %v5615, %v5614
      %v5645 = vsel %vm5169, %v5215, 0
      %5647 = vmatprep.subr.bf16.mxu0 0
      %5648 = vmatpush1.bf16.msra.mxu0 %v5623
      %5649 = vmatprep.subr.bf16.mxu0 0
      %5650 = vmatpush1.bf16.msra.mxu0 %v5622
      %5651 = vmatprep.subr.bf16.mxu0 0
      %5652 = vmatpush1.bf16.msra.mxu0 %v5621
      %5653 = vmatprep.subr.bf16.mxu0 0
      %5654 = vmatpush1.bf16.msra.mxu0 %v5620
      %5655 = vmatprep.subr.bf16.mxu0 0
      %5656 = vmatpush1.bf16.msra.mxu0 %v5619
      %5657 = vmatprep.subr.bf16.mxu0 0
      %5658 = vmatpush1.bf16.msra.mxu0 %v5618
      %5659 = vmatprep.subr.bf16.mxu0 0
      %5660 = vmatpush1.bf16.msra.mxu0 %v5617
      %5661 = vmatprep.subr.bf16.mxu0 0
      %5662 = vmatpush1.bf16.msra.mxu0 %v5616
      %5663 = vmatprep.subr.bf16.mxu0 0
      %5664 = vmatpush2.bf16.msra.mxu0 0
      %5665 = vmatprep.subr.bf16.mxu0 0
      %5666 = vmatpush2.bf16.msra.mxu0 0
      %5667 = vmatprep.subr.bf16.mxu0 0
      %5668 = vmatpush2.bf16.msra.mxu0 %v5629
      %5669 = vmatprep.subr.bf16.mxu0 0
      %5670 = vmatpush2.bf16.msra.mxu0 %v5628
      %5671 = vmatprep.subr.bf16.mxu0 0
      %5672 = vmatpush2.bf16.msra.mxu0 %v5627
      %5673 = vmatprep.subr.bf16.mxu0 0
      %5674 = vmatpush2.bf16.msra.mxu0 %v5626
      %5675 = vmatprep.subr.bf16.mxu0 0
      %5676 = vmatpush2.bf16.msra.mxu0 %v5625
      %5677 = vmatprep.subr.bf16.mxu0 0
      %5678 = vmatpush2.bf16.msra.mxu0 %v5624
      %5679 = vmatprep.mubr.bf16.mxu0 %v5645
      %5680 = vmatmul.mubr.bf16.gmra.mxu0 %v5214
      %v5681 = vpop.f32.mrf.mxu0
      %v5682 = vadd.f32 0.0, %v5681
      %v5683 = vpop.f32.mrf.mxu0
      %v5684 = vpop.f32.mrf.mxu0
      %v5685 = vadd.f32 0.0, %v5684
      %v5686 = vpop.f32.mrf.mxu0
      %5687 = vdwg.mxu0
      %v5688 = vadd.f32 %v5525, %v5682
      %v5689 = vadd.f32 %v5528, %v5685
      %s5690 = scalar_lea.vmem %s5, 336
      %v5691 = vld [vmem:[%s5690] sm:$0xf]
      %v5692 = vld [vmem:[%s5690 + $0x4] sm:$0xf]
      %v5693 = vld [vmem:[%s5690 + $0x8] sm:$0xf]
      %v5694 = vld [vmem:[%s5690 + $0xc] sm:$0xf]
      %v5695 = vld [vmem:[%s5690 + $0x10] sm:$0xf]
      %v5696 = vld [vmem:[%s5690 + $0x14] sm:$0xf]
      %v5697 = vld [vmem:[%s5690 + $0x18] sm:$0xf]
      %v5698 = vld [vmem:[%s5690 + $0x1c] sm:$0xf]
      %v5699 = vld [vmem:[%s5690 + $0x20] sm:$0xf]
      %v5700 = vld [vmem:[%s5690 + $0x24] sm:$0xf]
      %v5701 = vld [vmem:[%s5690 + $0x28] sm:$0xf]
      %v5702 = vld [vmem:[%s5690 + $0x2c] sm:$0xf]
      %v5703 = vld [vmem:[%s5690 + $0x30] sm:$0xf]
      %v5704 = vld [vmem:[%s5690 + $0x34] sm:$0xf]
      %v5705 = vld [vmem:[%s5690 + $0x38] sm:$0xf]
      %v5706 = vld [vmem:[%s5690 + $0x3c] sm:$0xf]
      %v5707 = vld [vmem:[%s5690 + $0x40] sm:$0xf]
      %v5708 = vld [vmem:[%s5690 + $0x44] sm:$0xf]
      %v5709 = vld [vmem:[%s5690 + $0x48] sm:$0xf]
      %v5710 = vld [vmem:[%s5690 + $0x4c] sm:$0xf]
      %v5711 = vld [vmem:[%s5690 + $0x50] sm:$0xf]
      %v5712 = vld [vmem:[%s5690 + $0x54] sm:$0xf]
      %v5713 = vld [vmem:[%s5690 + $0x58] sm:$0xf]
      %v5714 = vld [vmem:[%s5690 + $0x5c] sm:$0xf]
      %v5715 = vld [vmem:[%s5690 + $0x60] sm:$0xf]
      %v5716 = vld [vmem:[%s5690 + $0x64] sm:$0xf]
      %v5717 = vld [vmem:[%s5690 + $0x68] sm:$0xf]
      %v5718 = vld [vmem:[%s5690 + $0x6c] sm:$0xf]
      %v5747 = vunpack.c.l.b16 %v5691
      %v5748 = vunpack.c.l.b16 %v5692
      %v5749 = vunpack.c.l.b16 %v5693
      %v5750 = vunpack.c.l.b16 %v5694
      %v5751 = vunpack.c.l.b16 %v5695
      %v5752 = vunpack.c.l.b16 %v5696
      %v5753 = vunpack.c.l.b16 %v5697
      %v5754 = vunpack.c.l.b16 %v5698
      %v5755 = vunpack.c.l.b16 %v5699
      %v5756 = vunpack.c.l.b16 %v5700
      %v5757 = vunpack.c.l.b16 %v5701
      %v5758 = vunpack.c.l.b16 %v5702
      %v5759 = vunpack.c.l.b16 %v5703
      %v5760 = vunpack.c.l.b16 %v5704
      %v5761 = vunpack.c.l.b16 %v5705
      %v5762 = vunpack.c.l.b16 %v5706
      %v5763 = vunpack.c.l.b16 %v5707
      %v5764 = vunpack.c.l.b16 %v5708
      %v5765 = vunpack.c.l.b16 %v5709
      %v5766 = vunpack.c.l.b16 %v5710
      %v5767 = vunpack.c.l.b16 %v5711
      %v5768 = vunpack.c.l.b16 %v5712
      %v5769 = vunpack.c.l.b16 %v5713
      %v5770 = vunpack.c.l.b16 %v5714
      %v5771 = vunpack.c.l.b16 %v5715
      %v5772 = vunpack.c.l.b16 %v5716
      %v5773 = vunpack.c.l.b16 %v5717
      %v5774 = vunpack.c.l.b16 %v5718
      %v5775 = vpack.c.b16 %v5748, %v5747
      %v5776 = vpack.c.b16 %v5750, %v5749
      %v5777 = vpack.c.b16 %v5752, %v5751
      %v5778 = vpack.c.b16 %v5754, %v5753
      %v5779 = vpack.c.b16 %v5756, %v5755
      %v5780 = vpack.c.b16 %v5758, %v5757
      %v5781 = vpack.c.b16 %v5760, %v5759
      %v5782 = vpack.c.b16 %v5762, %v5761
      %v5783 = vpack.c.b16 %v5764, %v5763
      %v5784 = vpack.c.b16 %v5766, %v5765
      %v5785 = vpack.c.b16 %v5768, %v5767
      %v5786 = vpack.c.b16 %v5770, %v5769
      %v5787 = vpack.c.b16 %v5772, %v5771
      %v5788 = vpack.c.b16 %v5774, %v5773
      %v5804 = vsel %vm5169, %v5217, 0
      %5806 = vmatprep.subr.bf16.mxu0 0
      %5807 = vmatpush1.bf16.msra.mxu0 %v5782
      %5808 = vmatprep.subr.bf16.mxu0 0
      %5809 = vmatpush1.bf16.msra.mxu0 %v5781
      %5810 = vmatprep.subr.bf16.mxu0 0
      %5811 = vmatpush1.bf16.msra.mxu0 %v5780
      %5812 = vmatprep.subr.bf16.mxu0 0
      %5813 = vmatpush1.bf16.msra.mxu0 %v5779
      %5814 = vmatprep.subr.bf16.mxu0 0
      %5815 = vmatpush1.bf16.msra.mxu0 %v5778
      %5816 = vmatprep.subr.bf16.mxu0 0
      %5817 = vmatpush1.bf16.msra.mxu0 %v5777
      %5818 = vmatprep.subr.bf16.mxu0 0
      %5819 = vmatpush1.bf16.msra.mxu0 %v5776
      %5820 = vmatprep.subr.bf16.mxu0 0
      %5821 = vmatpush1.bf16.msra.mxu0 %v5775
      %5822 = vmatprep.subr.bf16.mxu0 0
      %5823 = vmatpush2.bf16.msra.mxu0 0
      %5824 = vmatprep.subr.bf16.mxu0 0
      %5825 = vmatpush2.bf16.msra.mxu0 0
      %5826 = vmatprep.subr.bf16.mxu0 0
      %5827 = vmatpush2.bf16.msra.mxu0 %v5788
      %5828 = vmatprep.subr.bf16.mxu0 0
      %5829 = vmatpush2.bf16.msra.mxu0 %v5787
      %5830 = vmatprep.subr.bf16.mxu0 0
      %5831 = vmatpush2.bf16.msra.mxu0 %v5786
      %5832 = vmatprep.subr.bf16.mxu0 0
      %5833 = vmatpush2.bf16.msra.mxu0 %v5785
      %5834 = vmatprep.subr.bf16.mxu0 0
      %5835 = vmatpush2.bf16.msra.mxu0 %v5784
      %5836 = vmatprep.subr.bf16.mxu0 0
      %5837 = vmatpush2.bf16.msra.mxu0 %v5783
      %5838 = vmatprep.mubr.bf16.mxu0 %v5804
      %5839 = vmatmul.mubr.bf16.gmra.mxu0 %v5216
      %v5840 = vpop.f32.mrf.mxu0
      %v5841 = vadd.f32 0.0, %v5840
      %v5842 = vpop.f32.mrf.mxu0
      %v5843 = vpop.f32.mrf.mxu0
      %v5844 = vadd.f32 0.0, %v5843
      %v5845 = vpop.f32.mrf.mxu0
      %5846 = vdwg.mxu0
      %v5847 = vadd.f32 %v5688, %v5841
      %v5848 = vadd.f32 %v5689, %v5844
      %v5849 = vld [vmem:[%s6] sm:$0x1]
      %v5851 = vlaneseq
      %v5852 = vshrl.u32 %v5851, 7
      %v5853 = vsub.s32 0, %v5852
      %v5854 = vrot.slane %v5849, %v5853
      %v5856 = vadd.f32 %v5847, %v5854
      %v5857 = vadd.f32 %v5848, %v5854
      %v5858 = vmax.f32 %v5856, 0.0
      %v5859 = vmax.f32 %v5857, 0.0
      %v5860 = vpack.c.bf16 %v5859, %v5858
      %v5861 = vld [vmem:[%s7] sm:$0xf]
      %v5862 = vld [vmem:[%s7 + $0x4] sm:$0xf]
      %v5863 = vld [vmem:[%s7 + $0x8] sm:$0xf]
      %v5864 = vld [vmem:[%s7 + $0xc] sm:$0xf]
      %v5865 = vld [vmem:[%s7 + $0x10] sm:$0xf]
      %v5866 = vld [vmem:[%s7 + $0x14] sm:$0xf]
      %v5867 = vld [vmem:[%s7 + $0x18] sm:$0xf]
      %v5868 = vld [vmem:[%s7 + $0x1c] sm:$0xf]
      %v5869 = vld [vmem:[%s7 + $0x20] sm:$0xf]
      %v5870 = vld [vmem:[%s7 + $0x24] sm:$0xf]
      %v5871 = vld [vmem:[%s7 + $0x28] sm:$0xf]
      %v5872 = vld [vmem:[%s7 + $0x2c] sm:$0xf]
      %v5873 = vld [vmem:[%s7 + $0x30] sm:$0xf]
      %v5874 = vld [vmem:[%s7 + $0x34] sm:$0xf]
      %v5875 = vld [vmem:[%s7 + $0x38] sm:$0xf]
      %v5876 = vld [vmem:[%s7 + $0x3c] sm:$0xf]
      %v5877 = vld [vmem:[%s8] sm:$0x1]
      %v5879 = vlaneseq
      %v5880 = vshrl.u32 %v5879, 7
      %v5881 = vsub.s32 0, %v5880
      %v5882 = vrot.slane %v5877, %v5881
      %v5900 = vunpack.c.l.b16 %v5861
      %v5901 = vunpack.c.l.b16 %v5862
      %v5902 = vunpack.c.l.b16 %v5863
      %v5903 = vunpack.c.l.b16 %v5864
      %v5904 = vunpack.c.l.b16 %v5865
      %v5905 = vunpack.c.l.b16 %v5866
      %v5906 = vunpack.c.l.b16 %v5867
      %v5907 = vunpack.c.l.b16 %v5868
      %v5908 = vunpack.c.l.b16 %v5869
      %v5909 = vunpack.c.l.b16 %v5870
      %v5910 = vunpack.c.l.b16 %v5871
      %v5911 = vunpack.c.l.b16 %v5872
      %v5912 = vunpack.c.l.b16 %v5873
      %v5913 = vunpack.c.l.b16 %v5874
      %v5914 = vunpack.c.l.b16 %v5875
      %v5915 = vunpack.c.l.b16 %v5876
      %v5916 = vpack.c.b16 %v5901, %v5900
      %v5917 = vpack.c.b16 %v5903, %v5902
      %v5918 = vpack.c.b16 %v5905, %v5904
      %v5919 = vpack.c.b16 %v5907, %v5906
      %v5920 = vpack.c.b16 %v5909, %v5908
      %v5921 = vpack.c.b16 %v5911, %v5910
      %v5922 = vpack.c.b16 %v5913, %v5912
      %v5923 = vpack.c.b16 %v5915, %v5914
      %5932 = vmatprep.subr.bf16.mxu0 0
      %5933 = vmatpush1.bf16.msra.mxu0 %v5923
      %5934 = vmatprep.subr.bf16.mxu0 0
      %5935 = vmatpush1.bf16.msra.mxu0 %v5922
      %5936 = vmatprep.subr.bf16.mxu0 0
      %5937 = vmatpush1.bf16.msra.mxu0 %v5921
      %5938 = vmatprep.subr.bf16.mxu0 0
      %5939 = vmatpush1.bf16.msra.mxu0 %v5920
      %5940 = vmatprep.subr.bf16.mxu0 0
      %5941 = vmatpush1.bf16.msra.mxu0 %v5919
      %5942 = vmatprep.subr.bf16.mxu0 0
      %5943 = vmatpush1.bf16.msra.mxu0 %v5918
      %5944 = vmatprep.subr.bf16.mxu0 0
      %5945 = vmatpush1.bf16.msra.mxu0 %v5917
      %5946 = vmatprep.subr.bf16.mxu0 0
      %5947 = vmatpush1.bf16.msra.mxu0 %v5916
      %5948 = vmatprep.subr.bf16.mxu0 0
      %5949 = vmatpush2.bf16.msra.mxu0 0
      %5950 = vmatprep.subr.bf16.mxu0 0
      %5951 = vmatpush2.bf16.msra.mxu0 0
      %5952 = vmatprep.subr.bf16.mxu0 0
      %5953 = vmatpush2.bf16.msra.mxu0 0
      %5954 = vmatprep.subr.bf16.mxu0 0
      %5955 = vmatpush2.bf16.msra.mxu0 0
      %5956 = vmatprep.subr.bf16.mxu0 0
      %5957 = vmatpush2.bf16.msra.mxu0 0
      %5958 = vmatprep.subr.bf16.mxu0 0
      %5959 = vmatpush2.bf16.msra.mxu0 0
      %5960 = vmatprep.subr.bf16.mxu0 0
      %5961 = vmatpush2.bf16.msra.mxu0 0
      %5962 = vmatprep.subr.bf16.mxu0 0
      %5963 = vmatpush2.bf16.msra.mxu0 0
      %5964 = vmatprep.mubr.bf16.mxu0 0
      %5965 = vmatmul.mubr.bf16.gmra.mxu0 %v5860
      %v5966 = vpop.f32.mrf.mxu0
      %v5967 = vadd.f32 %v5882, %v5966
      %v5968 = vpop.f32.mrf.mxu0
      %v5969 = vpop.f32.mrf.mxu0
      %v5970 = vadd.f32 %v5882, %v5969
      %v5971 = vpop.f32.mrf.mxu0
      %5972 = vdwg.mxu0
      %5973 = vst [vmem:[%s337] sm:$0xff] %v5967
      %5974 = vst [vmem:[%s337 + $0x8] sm:$0xff] %v5970
      %s5975 = smul.u32 2, %s20
      %p5976 = scmp.lt.s32.totalorder %s5975, 3
      %s5977 = scalar_select %p5976, %s5975, 3
      %s5978 = smul.addr %s5977, 8
      %s5979 = scalar_lea.vmem %s9, %s5978
      // Predicated region
      $region57: #{mnist_cnn_forward.1} parent=55 // pred_check
        %p5980 = pneg %p232
      $region58: #{mnist_cnn_forward.1} parent=55 // pred_check_branch
        %5982 = sbr.rel (%p5980) target = $region60
      $region59: #{mnist_cnn_forward.1} parent=55 // pred_region
        %s5983 = smul.u32 2, %s20
      $region60: #{mnist_cnn_forward.1} parent=55 // pred_fallthru
        _
    $region56: #{mnist_cnn_forward.1} parent=5 // pred_fallthru
      _
    %p5984 = scmp.le.s32.totalorder 2, %s15
    // Predicated region
    $region61: #{mnist_cnn_forward.1} parent=5 // pred_check
      %p5985 = pneg %p5984
    $region62: #{mnist_cnn_forward.1} parent=5 // pred_check_branch
      %5987 = sbr.rel (%p5985) target = $region64
    $region63: #{mnist_cnn_forward.1} parent=5 // pred_region
      %s5988 = ssub.s32 %s15, 2
      // Predicated region
      $region65: #{mnist_cnn_forward.1} parent=63 // pred_check
        %p5989 = pneg %p238
      $region66: #{mnist_cnn_forward.1} parent=63 // pred_check_branch
        %5991 = sbr.rel (%p5989) target = $region68
      $region67: #{mnist_cnn_forward.1} parent=63 // pred_region
        %s5992 = smul.u32 2, %s21
        %p5993 = scmp.lt.s32.totalorder %s5992, 3
        %s5994 = scalar_select %p5993, %s5992, 3
        %s5995 = smul.addr %s5994, 8
        %s5996 = scalar_lea.vmem %s9, %s5995
      $region68: #{mnist_cnn_forward.1} parent=63 // pred_fallthru
        _
    $region64: #{mnist_cnn_forward.1} parent=5 // pred_fallthru
      _
  $region6: #{mnist_cnn_forward.1} parent=0 // loop_footer
    %s19 = sadd.s32 1, %s15
  $region7: #{mnist_cnn_forward.1} parent=0 // loop_footer_branch
    %14 = sbr.rel target = $region3
  $region8: #{mnist_cnn_forward.1} parent=0 // loop_exit
    _

</llo_original>
